<compile_context>
chip_gen: v7x
topology: tpu7x:2x2x1
jax: 0.10.0
libtpu: 0.0.40
codegen_flags: <defaults>
</compile_context>

<pallas_src>
import functools

import jax
import jax.numpy as jnp
from jax.experimental import pallas as pl
from jax.experimental.pallas import tpu as pltpu


_VMEM_LIMIT = 32 * 1024 * 1024  # explicit scoped-VMEM budget (fits v7x's 64 MiB)


def _pick_tile(n, desired, lane=128):
    """Largest lane-multiple tile <= `desired` that still yields >= 2 grid
    steps whenever n allows it (keeps both v7x TensorCores busy)."""
    half = ((n + 1) // 2 + lane - 1) // lane * lane
    return max(lane, min(desired, half))


# ----------------------------------------------------------------------------
# Pallas kernel 1: encoder conv3d as an im2col matmul, transposed/lane-dense.
#   out[Cenc, tile] = W[Cenc, K] @ patches_T[K, tile] + b[Cenc, 1]
# Patches/weights are bf16 (MXU), bias/accumulation f32.
# ----------------------------------------------------------------------------
def _conv_mm_kernel(p_ref, w_ref, b_ref, o_ref):
    o_ref[...] = (
        jnp.dot(w_ref[...], p_ref[...], preferred_element_type=jnp.float32)
        + b_ref[...]
    )


def conv3d_via_pallas(patches_t, w_t, b_col, *, desired_tile_cols=2048):
    """patches_t: [K, R] bf16, w_t: [Cenc, K] bf16, b_col: [Cenc,1] f32 -> [Cenc, R] f32."""
    K, R = patches_t.shape
    Cenc = w_t.shape[0]
    tile_cols = _pick_tile(R, desired_tile_cols)
    n_tiles = pl.cdiv(R, tile_cols)
    R_pad = n_tiles * tile_cols
    if R_pad != R:
        patches_t = jnp.pad(patches_t, ((0, 0), (0, R_pad - R)))
    out = pl.pallas_call(
        _conv_mm_kernel,
        out_shape=jax.ShapeDtypeStruct((Cenc, R_pad), jnp.float32),
        grid_spec=pltpu.PrefetchScalarGridSpec(
            num_scalar_prefetch=0,
            grid=(n_tiles,),
            in_specs=[
                pl.BlockSpec((K, tile_cols), lambda i: (0, i)),
                pl.BlockSpec((Cenc, K), lambda i: (0, 0)),     # resident weight
                pl.BlockSpec((Cenc, 1), lambda i: (0, 0)),     # resident bias
            ],
            out_specs=pl.BlockSpec((Cenc, tile_cols), lambda i: (0, i)),
        ),
        compiler_params=pltpu.CompilerParams(
            dimension_semantics=("parallel",),
            vmem_limit_bytes=_VMEM_LIMIT,
        ),
    )(patches_t, w_t, b_col)
    return out[:, :R]


# ----------------------------------------------------------------------------
# Pallas kernel 2: imnet MLP (4 -> 256x4 -> Cenc*27) fused with the per-query
# dot against the gathered feature (the torch.bmm).  Feature-major layout:
# every activation is [features, tile]; inter-layer activations are bf16,
# MXU accumulation f32, final (1, T) store is lane-dense/unmasked.
# ----------------------------------------------------------------------------
def _imnet_kernel(x_ref, qf_ref,
                  w1_ref, b1_ref, w2_ref, b2_ref, w3_ref, b3_ref,
                  w4_ref, b4_ref, w5_ref, b5_ref,
                  o_ref):
    xt = x_ref[...]                       # (4, T)   f32
    w1 = w1_ref[...]                      # (H, 4)   f32
    in_dim = x_ref.shape[0]

    # Layer 1: K=4 is a degenerate MXU contraction -> 4 VPU broadcast-FMAs
    # in f32 (keeps the rel_coord inputs at full precision).
    h32 = w1[:, 0:1] * xt[0:1, :]
    for k in range(1, in_dim):
        h32 = h32 + w1[:, k:k + 1] * xt[k:k + 1, :]
    h = jnp.maximum(h32 + b1_ref[...], 0.0).astype(jnp.bfloat16)   # (H, T) bf16

    def layer(h_b, w_ref, b_ref):
        # bf16 MXU inputs (weights pre-cast outside), f32 accumulation; a
        # single downcast after bias+ReLU keeps inter-layer traffic in bf16.
        z = jnp.dot(w_ref[...], h_b, preferred_element_type=jnp.float32)
        return jnp.maximum(z + b_ref[...], 0.0).astype(jnp.bfloat16)

    h = layer(h, w2_ref, b2_ref)
    h = layer(h, w3_ref, b3_ref)
    h = layer(h, w4_ref, b4_ref)
    p = jnp.dot(w5_ref[...], h, preferred_element_type=jnp.float32) + b5_ref[...]  # (C27,T) f32

    # Fused torch.bmm(q_feat[N,1,C27], pred[N,C27,1]): per-column dot over the
    # sublane (feature) axis; the (1, T) result is lane-dense (unmasked vst).
    qf = qf_ref[...].astype(jnp.float32)          # bf16 -> f32 once per tile
    o_ref[...] = jnp.sum(p * qf, axis=0, keepdims=True)


def imnet_fused_pallas(x_t, qf_t, wp, *, desired_tile=2048):
    """x_t: [4, N] f32, qf_t: [C27, N] bf16 (feature-major) -> [1, N] f32."""
    (w1t, b1t, w2t, b2t, w3t, b3t, w4t, b4t, w5t, b5t) = wp
    in_dim, N = x_t.shape
    C27 = qf_t.shape[0]
    tile = _pick_tile(N, desired_tile)
    n_tiles = pl.cdiv(N, tile)
    N_pad = n_tiles * tile
    if N_pad != N:
        pad = N_pad - N
        x_t = jnp.pad(x_t, ((0, 0), (0, pad)))
        qf_t = jnp.pad(qf_t, ((0, 0), (0, pad)))

    def resident(arr):  # constant index_map -> weight stays resident in VMEM
        return pl.BlockSpec(arr.shape, lambda i: (0, 0))

    out = pl.pallas_call(
        _imnet_kernel,
        out_shape=jax.ShapeDtypeStruct((1, N_pad), jnp.float32),
        grid_spec=pltpu.PrefetchScalarGridSpec(
            num_scalar_prefetch=0,
            grid=(n_tiles,),
            in_specs=[
                pl.BlockSpec((in_dim, tile), lambda i: (0, i)),
                pl.BlockSpec((C27, tile), lambda i: (0, i)),
                resident(w1t), resident(b1t),
                resident(w2t), resident(b2t),
                resident(w3t), resident(b3t),
                resident(w4t), resident(b4t),
                resident(w5t), resident(b5t),
            ],
            out_specs=pl.BlockSpec((1, tile), lambda i: (0, i)),
        ),
        compiler_params=pltpu.CompilerParams(
            dimension_semantics=("parallel",),
            vmem_limit_bytes=_VMEM_LIMIT,
        ),
    )(x_t, qf_t, w1t, b1t, w2t, b2t, w3t, b3t, w4t, b4t, w5t, b5t)
    return out[:, :N]


# ----------------------------------------------------------------------------
# Plain-JAX glue: nearest-index math, fused neighborhood gather, analytic
# q_coord, encoder im2col.
# ----------------------------------------------------------------------------
def _round_half_away_from_zero(x):
    # torch CUDA grid_sample(nearest) uses ::round (half away from zero);
    # jnp.round is half-to-even and differs exactly at .5 boundaries.
    return jnp.where(x >= 0.0, jnp.floor(x + 0.5), jnp.ceil(x - 0.5))


def _nearest_index(c, size):
    # align_corners=False unnormalization followed by nearest rounding.
    return _round_half_away_from_zero(((c + 1.0) * size - 1.0) / 2.0)


def gather_unfold_neighborhood_t(feat, coord_q):
    """Gather the 27-neighborhood of feat at the nearest voxel of each query,
    replacing unfoldNd(feat, 3, pad=1) + grid_sample(nearest) without ever
    materializing the 27x-inflated feature volume, using a single fused gather.

    feat: [B, C, D, H, W] f32; coord_q: [B, Q, 3] (d,h,w order, clamped).
    Returns bf16 q_feat_t: [C*27, B*Q], row order c*27 + kd*9 + kh*3 + kw,
    column order b*Q + q (feature-major layout expected by the imnet kernel)."""
    B, C, D, Hh, W = feat.shape
    Q = coord_q.shape[1]
    iz = jnp.clip(_nearest_index(coord_q[..., 0], D), 0, D - 1).astype(jnp.int32)
    iy = jnp.clip(_nearest_index(coord_q[..., 1], Hh), 0, Hh - 1).astype(jnp.int32)
    ix = jnp.clip(_nearest_index(coord_q[..., 2], W), 0, W - 1).astype(jnp.int32)
    # zero spatial padding == unfoldNd(padding=1); coord_q is clamped so the
    # grid_sample 'zeros' padding never triggers for q_feat.
    fpad = jnp.pad(feat.astype(jnp.bfloat16),
                   ((0, 0), (0, 0), (1, 1), (1, 1), (1, 1)))
    Pp = (D + 2) * (Hh + 2) * (W + 2)
    fflat = fpad.reshape(B, C, Pp)
    tap_off = jnp.array(
        [(kd * (Hh + 2) + kh) * (W + 2) + kw
         for kd in range(3) for kh in range(3) for kw in range(3)],
        jnp.int32)                                              # [27]
    base = (iz * (Hh + 2) + iy) * (W + 2) + ix                  # [B, Q]
    idx = (base[:, None, :] + tap_off[None, :, None]).reshape(B, 1, 27 * Q)
    g = jnp.take_along_axis(fflat, idx, axis=2)                 # [B, C, 27*Q]
    g = g.reshape(B, C, 27, Q)
    return jnp.transpose(g, (1, 2, 0, 3)).reshape(C * 27, B * Q)


def analytic_q_coord(coord_, D, Hh, W):
    """q_coord = grid_sample_nearest(feat_coord, coord_) computed analytically
    (pure VPU arithmetic, no [B,3,D,H,W] materialization, no gather).

    Reproduces the reference's literal feat_coord[:, :, 0/1/3] -= ... slicing:
    on a [D,H,W,3] tensor those slices index the W *spatial* axis, subtracting
    1/D, 1/H, 1/W from ALL 3 channels at w == 0, 1, 3 (reference needs W>=4).
    Out-of-bounds coords get zeros (grid_sample padding_mode='zeros')."""
    iz = _nearest_index(coord_[..., 0], D)
    iy = _nearest_index(coord_[..., 1], Hh)
    ix = _nearest_index(coord_[..., 2], W)
    valid = ((iz >= 0) & (iz < D) & (iy >= 0) & (iy < Hh)
             & (ix >= 0) & (ix < W)).astype(jnp.float32)
    izc = jnp.clip(iz, 0, D - 1)
    iyc = jnp.clip(iy, 0, Hh - 1)
    ixc = jnp.clip(ix, 0, W - 1)
    base0 = -1.0 + (2.0 * izc + 1.0) / D
    base1 = -1.0 + (2.0 * iyc + 1.0) / Hh
    base2 = -1.0 + (2.0 * ixc + 1.0) / W
    delta = jnp.where(ixc == 0.0, 1.0 / D,
            jnp.where(ixc == 1.0, 1.0 / Hh,
            jnp.where(ixc == 3.0, 1.0 / W, 0.0)))
    return jnp.stack([(base0 - delta) * valid,
                      (base1 - delta) * valid,
                      (base2 - delta) * valid], axis=-1)


def unfold3x3x3(x):
    """unfoldNd(x, 3, padding=1); ordering c*27 + kd*9 + kh*3 + kw.
    Only used for the (small, Cin-channel) encoder im2col."""
    B, C, D, Hh, W = x.shape
    xp = jnp.pad(x, ((0, 0), (0, 0), (1, 1), (1, 1), (1, 1)))
    pats = []
    for kd in range(3):
        for kh in range(3):
            for kw in range(3):
                pats.append(xp[:, :, kd:kd + D, kh:kh + Hh, kw:kw + W])
    out = jnp.stack(pats, axis=2)                             # [B, C, 27, D, H, W]
    return out.reshape(B, C * 27, D, Hh, W)


# ----------------------------------------------------------------------------
# MetaSR forward
# ----------------------------------------------------------------------------
def metasr_forward(params, inp, coord, cell):
    B, Cin, D, Hh, W = inp.shape
    Cenc = params["conv_w"].shape[0]
    Q = coord.shape[1]

    # ---- encoder: stand-in single Conv3d(Cin, Cenc, 3, padding=1) as an
    # im2col matmul with a transposed, lane-dense output [Cenc, B*D*H*W].
    # Patches/weights in bf16 (halves the inflated HBM traffic); K padded to a
    # multiple of 16 for packing-friendly sublanes.
    # TODO(synk): encoder_spec is unspecified in the module; modeled as one
    # Conv3d.  TODO(synk): stream the 27 taps from the padded volume inside
    # the kernel instead of materializing the im2col on real SR volume sizes.
    K = Cin * 27
    K_pad = ((K + 15) // 16) * 16
    unf_in = unfold3x3x3(inp.astype(jnp.bfloat16))            # [B, Cin*27, D, H, W]
    patches_t = jnp.transpose(unf_in.reshape(B, K, D * Hh * W),
                              (1, 0, 2)).reshape(K, B * D * Hh * W)
    w_t = params["conv_w"].reshape(Cenc, K).astype(jnp.bfloat16)
    if K_pad != K:
        patches_t = jnp.pad(patches_t, ((0, K_pad - K), (0, 0)))
        w_t = jnp.pad(w_t, ((0, 0), (0, K_pad - K)))
    b_col = params["conv_b"].reshape(Cenc, 1)
    feat_t = conv3d_via_pallas(patches_t, w_t, b_col)         # [Cenc, B*D*H*W] f32
    feat = jnp.transpose(feat_t.reshape(Cenc, B, D, Hh, W), (1, 0, 2, 3, 4))

    # ---- query_rgb
    coord_ = coord - cell / 2.0
    # NOTE: the reference clamps into a *new* tensor coord_q (non in-place
    # clamp); q_coord / rel_coord intentionally use the unclamped coord_.
    coord_q = jnp.clip(coord_ + 1e-6, -1.0 + 1e-6, 1.0 - 1e-6)

    q_feat_t = gather_unfold_neighborhood_t(feat, coord_q)    # [Cenc*27, B*Q] bf16
    q_coord = analytic_q_coord(coord_, D, Hh, W)              # [B, Q, 3] f32

    rel_coord = (coord_ - q_coord) * jnp.array([D, Hh, W], jnp.float32)
    r_rev = cell[:, :, 0] * (Hh / 2.0)
    mlp_in = jnp.concatenate([rel_coord, r_rev[..., None]], axis=-1)  # [B, Q, 4]

    N = B * Q
    x_t = mlp_in.reshape(N, 4).T                              # [4, N] f32

    # Pre-transpose weights (feature-major) and pre-cast hidden weights to
    # bf16 for the MXU; layer-1 weight and all biases stay f32.
    wp = (
        params["w1"].T, params["b1"].reshape(-1, 1),
        params["w2"].T.astype(jnp.bfloat16), params["b2"].reshape(-1, 1),
        params["w3"].T.astype(jnp.bfloat16), params["b3"].reshape(-1, 1),
        params["w4"].T.astype(jnp.bfloat16), params["b4"].reshape(-1, 1),
        params["w5"].T.astype(jnp.bfloat16), params["b5"].reshape(-1, 1),
    )
    pred = imnet_fused_pallas(x_t, q_feat_t, wp)              # [1, N]
    return pred[0].reshape(B, Q, 1)


# ----------------------------------------------------------------------------
# Deterministic parameter init (synthetic; shapes follow the module's __init__)
# ----------------------------------------------------------------------------
def init_params(key, cin=3, cenc=8, hidden=256):
    c27 = cenc * 27

    def lin(k, fan_in, fan_out):
        kw, kb = jax.random.split(k)
        bound = 1.0 / jnp.sqrt(float(fan_in))
        w = jax.random.uniform(kw, (fan_in, fan_out), jnp.float32, -bound, bound)
        b = jax.random.uniform(kb, (1, fan_out), jnp.float32, -bound, bound)
        return w, b

    keys = jax.random.split(key, 7)
    conv_bound = 1.0 / jnp.sqrt(float(cin * 27))
    params = {
        "conv_w": jax.random.uniform(keys[0], (cenc, cin, 3, 3, 3), jnp.float32,
                                     -conv_bound, conv_bound),
        "conv_b": jax.random.uniform(keys[1], (cenc,), jnp.float32,
                                     -conv_bound, conv_bound),
    }
    params["w1"], params["b1"] = lin(keys[2], 4, hidden)
    params["w2"], params["b2"] = lin(keys[3], hidden, hidden)
    params["w3"], params["b3"] = lin(keys[4], hidden, hidden)
    params["w4"], params["b4"] = lin(keys[5], hidden, hidden)
    params["w5"], params["b5"] = lin(keys[6], hidden, c27)
    return params


if __name__ == "__main__":
    key = jax.random.PRNGKey(0)
    kp, kx, kc = jax.random.split(key, 3)

    B, Cin, D, Hh, W = 2, 3, 8, 8, 8
    Q = 256  # number of query coordinates -> N = 512 -> 2 imnet grid steps

    params = init_params(kp, cin=Cin, cenc=8, hidden=256)
    inp = jax.random.normal(kx, (B, Cin, D, Hh, W), jnp.float32)
    coord = jax.random.uniform(kc, (B, Q, 3), jnp.float32, -1.0, 1.0)
    cell = jnp.full((B, Q, 3), 2.0 / 16.0, jnp.float32)

    fwd = jax.jit(functools.partial(metasr_forward, params))
    out = fwd(inp, coord, cell)
    jax.block_until_ready(out)
    assert out.shape == (B, Q, 1) and out.dtype == jnp.float32
    print("KERNEL_OK")
</pallas_src>

<mosaic_0001>
module attributes {stable_mosaic.version = 11 : i64} {
  func.func @_conv_mm_kernel(%arg0: i32, %arg1: memref<96x512xbf16, #tpu.memory_space<vmem>>, %arg2: memref<8x96xbf16, #tpu.memory_space<vmem>>, %arg3: memref<8x1xf32, #tpu.memory_space<vmem>>, %arg4: memref<8x512xf32, #tpu.memory_space<vmem>>) attributes {dimension_semantics = [#tpu.dimension_semantics<parallel>], iteration_bounds = array<i64: 2>, scalar_prefetch = 0 : i64, scratch_operands = 0 : i64, tpu.core_type = #tpu.core_type<tc>, window_params = [{transform_indices = @transform_0, window_bounds = array<i64: 96, 512>}, {pipeline_mode = #tpu.pipeline_mode<synchronous>, transform_indices = @transform_1, window_bounds = array<i64: 8, 96>}, {pipeline_mode = #tpu.pipeline_mode<synchronous>, transform_indices = @transform_2, window_bounds = array<i64: 8, 1>}, {transform_indices = @transform_3, window_bounds = array<i64: 8, 512>}]} {
    %c0 = arith.constant 0 : index
    %c0_0 = arith.constant 0 : index
    %0 = vector.load %arg2[%c0, %c0_0] : memref<8x96xbf16, #tpu.memory_space<vmem>>, vector<8x96xbf16>
    %c0_1 = arith.constant 0 : index
    %c0_2 = arith.constant 0 : index
    %1 = vector.load %arg1[%c0_1, %c0_2] : memref<96x512xbf16, #tpu.memory_space<vmem>>, vector<96x512xbf16>
    %cst = arith.constant dense<0.000000e+00> : vector<8x512xf32>
    %2 = tpu.matmul %0, %1, %cst {dimension_numbers = #tpu.dot_dimension_numbers<[1], [0], [0], [1], [0, 0, 1, 1], [], []>} : vector<8x96xbf16>, vector<96x512xbf16>, vector<8x512xf32> -> vector<8x512xf32>
    %c0_3 = arith.constant 0 : index
    %c0_4 = arith.constant 0 : index
    %3 = vector.load %arg3[%c0_3, %c0_4] : memref<8x1xf32, #tpu.memory_space<vmem>>, vector<8x1xf32>
    %4 = vector.broadcast %3 : vector<8x1xf32> to vector<8x512xf32>
    %5 = arith.addf %2, %4 : vector<8x512xf32>
    %c0_5 = arith.constant 0 : index
    %c0_6 = arith.constant 0 : index
    %6 = vector.load %arg4[%c0_5, %c0_6] : memref<8x512xf32, #tpu.memory_space<vmem>>, vector<8x512xf32>
    tpu.vector_store %arg4[%c0_5, %c0_6], %5 {strides = array<i32>} : memref<8x512xf32, #tpu.memory_space<vmem>>, vector<8x512xf32>,
    return
  }
  func.func @transform_0(%arg0: i32) -> (i32, i32) {
    %c0_i32 = arith.constant 0 : i32
    %c0_i32_0 = arith.constant 0 : i32
    return %c0_i32, %arg0 : i32, i32
  }
  func.func @transform_1(%arg0: i32) -> (i32, i32) {
    %c0_i32 = arith.constant 0 : i32
    %c0_i32_0 = arith.constant 0 : i32
    %c0_i32_1 = arith.constant 0 : i32
    return %c0_i32, %c0_i32_0 : i32, i32
  }
  func.func @transform_2(%arg0: i32) -> (i32, i32) {
    %c0_i32 = arith.constant 0 : i32
    %c0_i32_0 = arith.constant 0 : i32
    %c0_i32_1 = arith.constant 0 : i32
    return %c0_i32, %c0_i32_0 : i32, i32
  }
  func.func @transform_3(%arg0: i32) -> (i32, i32) {
    %c0_i32 = arith.constant 0 : i32
    %c0_i32_0 = arith.constant 0 : i32
    return %c0_i32, %arg0 : i32, i32
  }
}

module attributes {stable_mosaic.version = 11 : i64} {
  func.func @_imnet_kernel(%arg0: i32, %arg1: memref<4x256xf32, #tpu.memory_space<vmem>>, %arg2: memref<216x256xbf16, #tpu.memory_space<vmem>>, %arg3: memref<256x4xf32, #tpu.memory_space<vmem>>, %arg4: memref<256x1xf32, #tpu.memory_space<vmem>>, %arg5: memref<256x256xbf16, #tpu.memory_space<vmem>>, %arg6: memref<256x1xf32, #tpu.memory_space<vmem>>, %arg7: memref<256x256xbf16, #tpu.memory_space<vmem>>, %arg8: memref<256x1xf32, #tpu.memory_space<vmem>>, %arg9: memref<256x256xbf16, #tpu.memory_space<vmem>>, %arg10: memref<256x1xf32, #tpu.memory_space<vmem>>, %arg11: memref<216x256xbf16, #tpu.memory_space<vmem>>, %arg12: memref<216x1xf32, #tpu.memory_space<vmem>>, %arg13: memref<1x256xf32, #tpu.memory_space<vmem>>) attributes {dimension_semantics = [#tpu.dimension_semantics<parallel>], iteration_bounds = array<i64: 2>, scalar_prefetch = 0 : i64, scratch_operands = 0 : i64, tpu.core_type = #tpu.core_type<tc>, window_params = [{transform_indices = @transform_0, window_bounds = array<i64: 4, 256>}, {transform_indices = @transform_1, window_bounds = array<i64: 216, 256>}, {pipeline_mode = #tpu.pipeline_mode<synchronous>, transform_indices = @transform_2, window_bounds = array<i64: 256, 4>}, {pipeline_mode = #tpu.pipeline_mode<synchronous>, transform_indices = @transform_3, window_bounds = array<i64: 256, 1>}, {pipeline_mode = #tpu.pipeline_mode<synchronous>, transform_indices = @transform_4, window_bounds = array<i64: 256, 256>}, {pipeline_mode = #tpu.pipeline_mode<synchronous>, transform_indices = @transform_5, window_bounds = array<i64: 256, 1>}, {pipeline_mode = #tpu.pipeline_mode<synchronous>, transform_indices = @transform_6, window_bounds = array<i64: 256, 256>}, {pipeline_mode = #tpu.pipeline_mode<synchronous>, transform_indices = @transform_7, window_bounds = array<i64: 256, 1>}, {pipeline_mode = #tpu.pipeline_mode<synchronous>, transform_indices = @transform_8, window_bounds = array<i64: 256, 256>}, {pipeline_mode = #tpu.pipeline_mode<synchronous>, transform_indices = @transform_9, window_bounds = array<i64: 256, 1>}, {pipeline_mode = #tpu.pipeline_mode<synchronous>, transform_indices = @transform_10, window_bounds = array<i64: 216, 256>}, {pipeline_mode = #tpu.pipeline_mode<synchronous>, transform_indices = @transform_11, window_bounds = array<i64: 216, 1>}, {transform_indices = @transform_12, window_bounds = array<i64: 1, 256>}]} {
    %c0 = arith.constant 0 : index
    %c0_0 = arith.constant 0 : index
    %0 = vector.load %arg1[%c0, %c0_0] : memref<4x256xf32, #tpu.memory_space<vmem>>, vector<4x256xf32>
    %c0_1 = arith.constant 0 : index
    %c0_2 = arith.constant 0 : index
    %1 = vector.load %arg3[%c0_1, %c0_2] : memref<256x4xf32, #tpu.memory_space<vmem>>, vector<256x4xf32>
    %2 = vector.extract_strided_slice %1 {offsets = [0, 0], sizes = [256, 1], strides = [1, 1]} : vector<256x4xf32> to vector<256x1xf32>
    %3 = vector.extract_strided_slice %0 {offsets = [0, 0], sizes = [1, 256], strides = [1, 1]} : vector<4x256xf32> to vector<1x256xf32>
    %4 = vector.broadcast %2 : vector<256x1xf32> to vector<256x256xf32>
    %5 = vector.broadcast %3 : vector<1x256xf32> to vector<256x256xf32>
    %6 = arith.mulf %4, %5 : vector<256x256xf32>
    %7 = vector.extract_strided_slice %1 {offsets = [0, 1], sizes = [256, 1], strides = [1, 1]} : vector<256x4xf32> to vector<256x1xf32>
    %8 = vector.extract_strided_slice %0 {offsets = [1, 0], sizes = [1, 256], strides = [1, 1]} : vector<4x256xf32> to vector<1x256xf32>
    %9 = vector.broadcast %7 : vector<256x1xf32> to vector<256x256xf32>
    %10 = vector.broadcast %8 : vector<1x256xf32> to vector<256x256xf32>
    %11 = arith.mulf %9, %10 : vector<256x256xf32>
    %12 = arith.addf %6, %11 : vector<256x256xf32>
    %13 = vector.extract_strided_slice %1 {offsets = [0, 2], sizes = [256, 1], strides = [1, 1]} : vector<256x4xf32> to vector<256x1xf32>
    %14 = vector.extract_strided_slice %0 {offsets = [2, 0], sizes = [1, 256], strides = [1, 1]} : vector<4x256xf32> to vector<1x256xf32>
    %15 = vector.broadcast %13 : vector<256x1xf32> to vector<256x256xf32>
    %16 = vector.broadcast %14 : vector<1x256xf32> to vector<256x256xf32>
    %17 = arith.mulf %15, %16 : vector<256x256xf32>
    %18 = arith.addf %12, %17 : vector<256x256xf32>
    %19 = vector.extract_strided_slice %1 {offsets = [0, 3], sizes = [256, 1], strides = [1, 1]} : vector<256x4xf32> to vector<256x1xf32>
    %20 = vector.extract_strided_slice %0 {offsets = [3, 0], sizes = [1, 256], strides = [1, 1]} : vector<4x256xf32> to vector<1x256xf32>
    %21 = vector.broadcast %19 : vector<256x1xf32> to vector<256x256xf32>
    %22 = vector.broadcast %20 : vector<1x256xf32> to vector<256x256xf32>
    %23 = arith.mulf %21, %22 : vector<256x256xf32>
    %24 = arith.addf %18, %23 : vector<256x256xf32>
    %c0_3 = arith.constant 0 : index
    %c0_4 = arith.constant 0 : index
    %25 = vector.load %arg4[%c0_3, %c0_4] : memref<256x1xf32, #tpu.memory_space<vmem>>, vector<256x1xf32>
    %26 = vector.broadcast %25 : vector<256x1xf32> to vector<256x256xf32>
    %27 = arith.addf %24, %26 : vector<256x256xf32>
    %cst = arith.constant 0.000000e+00 : f32
    %28 = vector.broadcast %cst : f32 to vector<256x256xf32>
    %29 = arith.maximumf %27, %28 : vector<256x256xf32>
    %30 = arith.truncf %29 : vector<256x256xf32> to vector<256x256xbf16>
    %c0_5 = arith.constant 0 : index
    %c0_6 = arith.constant 0 : index
    %31 = vector.load %arg5[%c0_5, %c0_6] : memref<256x256xbf16, #tpu.memory_space<vmem>>, vector<256x256xbf16>
    %cst_7 = arith.constant dense<0.000000e+00> : vector<256x256xf32>
    %32 = tpu.matmul %31, %30, %cst_7 {dimension_numbers = #tpu.dot_dimension_numbers<[1], [0], [0], [1], [0, 0, 1, 1], [], []>} : vector<256x256xbf16>, vector<256x256xbf16>, vector<256x256xf32> -> vector<256x256xf32>
    %c0_8 = arith.constant 0 : index
    %c0_9 = arith.constant 0 : index
    %33 = vector.load %arg6[%c0_8, %c0_9] : memref<256x1xf32, #tpu.memory_space<vmem>>, vector<256x1xf32>
    %34 = vector.broadcast %33 : vector<256x1xf32> to vector<256x256xf32>
    %35 = arith.addf %32, %34 : vector<256x256xf32>
    %cst_10 = arith.constant 0.000000e+00 : f32
    %36 = vector.broadcast %cst_10 : f32 to vector<256x256xf32>
    %37 = arith.maximumf %35, %36 : vector<256x256xf32>
    %38 = arith.truncf %37 : vector<256x256xf32> to vector<256x256xbf16>
    %c0_11 = arith.constant 0 : index
    %c0_12 = arith.constant 0 : index
    %39 = vector.load %arg7[%c0_11, %c0_12] : memref<256x256xbf16, #tpu.memory_space<vmem>>, vector<256x256xbf16>
    %cst_13 = arith.constant dense<0.000000e+00> : vector<256x256xf32>
    %40 = tpu.matmul %39, %38, %cst_13 {dimension_numbers = #tpu.dot_dimension_numbers<[1], [0], [0], [1], [0, 0, 1, 1], [], []>} : vector<256x256xbf16>, vector<256x256xbf16>, vector<256x256xf32> -> vector<256x256xf32>
    %c0_14 = arith.constant 0 : index
    %c0_15 = arith.constant 0 : index
    %41 = vector.load %arg8[%c0_14, %c0_15] : memref<256x1xf32, #tpu.memory_space<vmem>>, vector<256x1xf32>
    %42 = vector.broadcast %41 : vector<256x1xf32> to vector<256x256xf32>
    %43 = arith.addf %40, %42 : vector<256x256xf32>
    %cst_16 = arith.constant 0.000000e+00 : f32
    %44 = vector.broadcast %cst_16 : f32 to vector<256x256xf32>
    %45 = arith.maximumf %43, %44 : vector<256x256xf32>
    %46 = arith.truncf %45 : vector<256x256xf32> to vector<256x256xbf16>
    %c0_17 = arith.constant 0 : index
    %c0_18 = arith.constant 0 : index
    %47 = vector.load %arg9[%c0_17, %c0_18] : memref<256x256xbf16, #tpu.memory_space<vmem>>, vector<256x256xbf16>
    %cst_19 = arith.constant dense<0.000000e+00> : vector<256x256xf32>
    %48 = tpu.matmul %47, %46, %cst_19 {dimension_numbers = #tpu.dot_dimension_numbers<[1], [0], [0], [1], [0, 0, 1, 1], [], []>} : vector<256x256xbf16>, vector<256x256xbf16>, vector<256x256xf32> -> vector<256x256xf32>
    %c0_20 = arith.constant 0 : index
    %c0_21 = arith.constant 0 : index
    %49 = vector.load %arg10[%c0_20, %c0_21] : memref<256x1xf32, #tpu.memory_space<vmem>>, vector<256x1xf32>
    %50 = vector.broadcast %49 : vector<256x1xf32> to vector<256x256xf32>
    %51 = arith.addf %48, %50 : vector<256x256xf32>
    %cst_22 = arith.constant 0.000000e+00 : f32
    %52 = vector.broadcast %cst_22 : f32 to vector<256x256xf32>
    %53 = arith.maximumf %51, %52 : vector<256x256xf32>
    %54 = arith.truncf %53 : vector<256x256xf32> to vector<256x256xbf16>
    %c0_23 = arith.constant 0 : index
    %c0_24 = arith.constant 0 : index
    %55 = vector.load %arg11[%c0_23, %c0_24] : memref<216x256xbf16, #tpu.memory_space<vmem>>, vector<216x256xbf16>
    %cst_25 = arith.constant dense<0.000000e+00> : vector<216x256xf32>
    %56 = tpu.matmul %55, %54, %cst_25 {dimension_numbers = #tpu.dot_dimension_numbers<[1], [0], [0], [1], [0, 0, 1, 1], [], []>} : vector<216x256xbf16>, vector<256x256xbf16>, vector<216x256xf32> -> vector<216x256xf32>
    %c0_26 = arith.constant 0 : index
    %c0_27 = arith.constant 0 : index
    %57 = vector.load %arg12[%c0_26, %c0_27] : memref<216x1xf32, #tpu.memory_space<vmem>>, vector<216x1xf32>
    %58 = vector.broadcast %57 : vector<216x1xf32> to vector<216x256xf32>
    %59 = arith.addf %56, %58 : vector<216x256xf32>
    %c0_28 = arith.constant 0 : index
    %c0_29 = arith.constant 0 : index
    %60 = vector.load %arg2[%c0_28, %c0_29] : memref<216x256xbf16, #tpu.memory_space<vmem>>, vector<216x256xbf16>
    %61 = arith.extf %60 : vector<216x256xbf16> to vector<216x256xf32>
    %62 = arith.mulf %59, %61 : vector<216x256xf32>
    %cst_30 = arith.constant dense<0.000000e+00> : vector<256xf32>
    %63 = vector.multi_reduction <add>, %62, %cst_30 [0] : vector<216x256xf32> to vector<256xf32>
    %64 = vector.shape_cast %63 : vector<256xf32> to vector<1x256xf32>
    %c0_31 = arith.constant 0 : index
    %c0_32 = arith.constant 0 : index
    %65 = vector.load %arg13[%c0_31, %c0_32] : memref<1x256xf32, #tpu.memory_space<vmem>>, vector<1x256xf32>
    tpu.vector_store %arg13[%c0_31, %c0_32], %64 {strides = array<i32>} : memref<1x256xf32, #tpu.memory_space<vmem>>, vector<1x256xf32>,
    return
  }
  func.func @transform_0(%arg0: i32) -> (i32, i32) {
    %c0_i32 = arith.constant 0 : i32
    %c0_i32_0 = arith.constant 0 : i32
    return %c0_i32, %arg0 : i32, i32
  }
  func.func @transform_1(%arg0: i32) -> (i32, i32) {
    %c0_i32 = arith.constant 0 : i32
    %c0_i32_0 = arith.constant 0 : i32
    return %c0_i32, %arg0 : i32, i32
  }
  func.func @transform_2(%arg0: i32) -> (i32, i32) {
    %c0_i32 = arith.constant 0 : i32
    %c0_i32_0 = arith.constant 0 : i32
    %c0_i32_1 = arith.constant 0 : i32
    return %c0_i32, %c0_i32_0 : i32, i32
  }
  func.func @transform_3(%arg0: i32) -> (i32, i32) {
    %c0_i32 = arith.constant 0 : i32
    %c0_i32_0 = arith.constant 0 : i32
    %c0_i32_1 = arith.constant 0 : i32
    return %c0_i32, %c0_i32_0 : i32, i32
  }
  func.func @transform_4(%arg0: i32) -> (i32, i32) {
    %c0_i32 = arith.constant 0 : i32
    %c0_i32_0 = arith.constant 0 : i32
    %c0_i32_1 = arith.constant 0 : i32
    return %c0_i32, %c0_i32_0 : i32, i32
  }
  func.func @transform_5(%arg0: i32) -> (i32, i32) {
    %c0_i32 = arith.constant 0 : i32
    %c0_i32_0 = arith.constant 0 : i32
    %c0_i32_1 = arith.constant 0 : i32
    return %c0_i32, %c0_i32_0 : i32, i32
  }
  func.func @transform_6(%arg0: i32) -> (i32, i32) {
    %c0_i32 = arith.constant 0 : i32
    %c0_i32_0 = arith.constant 0 : i32
    %c0_i32_1 = arith.constant 0 : i32
    return %c0_i32, %c0_i32_0 : i32, i32
  }
  func.func @transform_7(%arg0: i32) -> (i32, i32) {
    %c0_i32 = arith.constant 0 : i32
    %c0_i32_0 = arith.constant 0 : i32
    %c0_i32_1 = arith.constant 0 : i32
    return %c0_i32, %c0_i32_0 : i32, i32
  }
  func.func @transform_8(%arg0: i32) -> (i32, i32) {
    %c0_i32 = arith.constant 0 : i32
    %c0_i32_0 = arith.constant 0 : i32
    %c0_i32_1 = arith.constant 0 : i32
    return %c0_i32, %c0_i32_0 : i32, i32
  }
  func.func @transform_9(%arg0: i32) -> (i32, i32) {
    %c0_i32 = arith.constant 0 : i32
    %c0_i32_0 = arith.constant 0 : i32
    %c0_i32_1 = arith.constant 0 : i32
    return %c0_i32, %c0_i32_0 : i32, i32
  }
  func.func @transform_10(%arg0: i32) -> (i32, i32) {
    %c0_i32 = arith.constant 0 : i32
    %c0_i32_0 = arith.constant 0 : i32
    %c0_i32_1 = arith.constant 0 : i32
    return %c0_i32, %c0_i32_0 : i32, i32
  }
  func.func @transform_11(%arg0: i32) -> (i32, i32) {
    %c0_i32 = arith.constant 0 : i32
    %c0_i32_0 = arith.constant 0 : i32
    %c0_i32_1 = arith.constant 0 : i32
    return %c0_i32, %c0_i32_0 : i32, i32
  }
  func.func @transform_12(%arg0: i32) -> (i32, i32) {
    %c0_i32 = arith.constant 0 : i32
    %c0_i32_0 = arith.constant 0 : i32
    return %c0_i32, %arg0 : i32, i32
  }
}

</mosaic_0001>

<llo_original>
// kernel: metasr_forward.2
$region0: #{metasr_forward.2}
  #allocation0 [shape = 'u32[]', space=smem, size = 0x4, offset = 0x4, fixed_abs, tag = 'smem constant byte address 0x4 - core index']
  #allocation1 [shape = 'u32[144,128]{1,0:T(1,128)}', space=vmem, size = 0x12000, scoped, tag = 'internal scratch']
  %s0 = inlined_call_operand.vmem [shape: bf16[96,1024], index: 0, kind: input, shape index: {}]
  %s1 = inlined_call_operand.vmem [shape: bf16[8,96], index: 1, kind: input, shape index: {}]
  %s2 = inlined_call_operand.vmem [shape: f32[8,1], index: 2, kind: input, shape index: {}]
  %s3 = inlined_call_operand.vmem [shape: f32[8,1024], index: 3, kind: output, shape index: {}]
  %s4 = sld [smem:[#allocation0]]
  $region68: #{metasr_forward.2} parent=0
    _
  %s6 = ssub.s32 1, %s4
  %s7 = scalar_select 0, %s6, %s4
  $region1: #{metasr_forward.2} parent=0
    #allocation2 [shape = 'u8[196608]{0}', space=vmem, size = 0x30000, scoped, tag = 'input window, operand 0']
    loop: start=0, step=1, limit=4
    $region2: #{metasr_forward.2} parent=1 // loop_pre_header
      _
    $region3: #{metasr_forward.2} parent=1 // loop_header
      %s9 = sphi 0, %s13
      %p10 = scmp.ge.s32.totalorder %s9, 4
      %s19 = sphi 0, %s21
      %s22 = sphi 0, %s19
      %s23 = sphi 0, %s22
      %s39 = sphi 0, %s23
      %s43 = sphi 0, %s43
      %s45 = sphi 0, %s43
      %s46 = sphi 0, %s45
      %s60 = sphi 0, %s46
      %s64 = sphi 0, %s64
      %s66 = sphi 0, %s64
      %s67 = sphi 0, %s66
      %s81 = sphi 0, %s67
      %s87 = sphi 0, %s89
      %s90 = sphi 0, %s87
      %s91 = sphi 0, %s90
      %s107 = sphi 0, %s91
    $region4: #{metasr_forward.2} parent=1 // loop_header_branch
      %12 = sbr.rel (%p10) target = $region8
    $region5: #{metasr_forward.2} parent=1 // loop_body
      %s14 = ssub.s32 %s9, 1
      %s15 = ssub.s32 %s9, 2
      %s16 = sadd.s32 %s9, 1
      %s17 = ssub.s32 %s9, %s16
      %p18 = scmp.eq.s32.totalorder %s17, 0
      %s20 = sadd.s32 %s19, 1
      %s21 = scalar_select %p18, %s19, %s20
      %p24 = pneg %p18
      %p25 = scmp.eq.s32.totalorder %s9, 1
      %p26 = por %p24, %p25
      %p27 = scmp.ne.s32.totalorder %s19, %s22
      %p28 = scmp.eq.s32.totalorder %s9, 0
      %p29 = por %p27, %p28
      %p30 = scmp.ne.s32.totalorder %s19, %s22
      %p31 = scmp.eq.s32.totalorder %s14, 1
      %p32 = por %p30, %p31
      %p33 = scmp.ne.s32.totalorder %s22, %s23
      %p34 = scmp.eq.s32.totalorder %s14, 0
      %p35 = por %p33, %p34
      %p36 = scmp.ne.s32.totalorder %s22, %s23
      %p37 = scmp.eq.s32.totalorder %s15, 1
      %p38 = por %p36, %p37
      %p40 = scmp.ne.s32.totalorder %s23, %s39
      %p41 = scmp.eq.s32.totalorder %s15, 0
      %p42 = por %p40, %p41
      %s44 = sadd.s32 %s43, 1
      %p47 = scmp.eq.s32.totalorder %s9, 1
      %p48 = scmp.ne.s32.totalorder %s43, %s45
      %p49 = scmp.eq.s32.totalorder %s9, 0
      %p50 = por %p48, %p49
      %p51 = scmp.ne.s32.totalorder %s43, %s45
      %p52 = scmp.eq.s32.totalorder %s14, 1
      %p53 = por %p51, %p52
      %p54 = scmp.ne.s32.totalorder %s45, %s46
      %p55 = scmp.eq.s32.totalorder %s14, 0
      %p56 = por %p54, %p55
      %p57 = scmp.ne.s32.totalorder %s45, %s46
      %p58 = scmp.eq.s32.totalorder %s15, 1
      %p59 = por %p57, %p58
      %p61 = scmp.ne.s32.totalorder %s46, %s60
      %p62 = scmp.eq.s32.totalorder %s15, 0
      %p63 = por %p61, %p62
      %s65 = sadd.s32 %s64, 1
      %p68 = scmp.eq.s32.totalorder %s9, 1
      %p69 = scmp.ne.s32.totalorder %s64, %s66
      %p70 = scmp.eq.s32.totalorder %s9, 0
      %p71 = por %p69, %p70
      %p72 = scmp.ne.s32.totalorder %s64, %s66
      %p73 = scmp.eq.s32.totalorder %s14, 1
      %p74 = por %p72, %p73
      %p75 = scmp.ne.s32.totalorder %s66, %s67
      %p76 = scmp.eq.s32.totalorder %s14, 0
      %p77 = por %p75, %p76
      %p78 = scmp.ne.s32.totalorder %s66, %s67
      %p79 = scmp.eq.s32.totalorder %s15, 1
      %p80 = por %p78, %p79
      %p82 = scmp.ne.s32.totalorder %s67, %s81
      %p83 = scmp.eq.s32.totalorder %s15, 0
      %p84 = por %p82, %p83
      %s85 = ssub.s32 %s9, %s16
      %p86 = scmp.eq.s32.totalorder %s85, 0
      %s88 = sadd.s32 %s87, 1
      %s89 = scalar_select %p86, %s87, %s88
      %p92 = pneg %p86
      %p93 = scmp.eq.s32.totalorder %s9, 1
      %p94 = por %p92, %p93
      %p95 = scmp.ne.s32.totalorder %s87, %s90
      %p96 = scmp.eq.s32.totalorder %s9, 0
      %p97 = por %p95, %p96
      %p98 = scmp.ne.s32.totalorder %s87, %s90
      %p99 = scmp.eq.s32.totalorder %s14, 1
      %p100 = por %p98, %p99
      %p101 = scmp.ne.s32.totalorder %s90, %s91
      %p102 = scmp.eq.s32.totalorder %s14, 0
      %p103 = por %p101, %p102
      %p104 = scmp.ne.s32.totalorder %s90, %s91
      %p105 = scmp.eq.s32.totalorder %s15, 1
      %p106 = por %p104, %p105
      %p108 = scmp.ne.s32.totalorder %s91, %s107
      %p109 = scmp.eq.s32.totalorder %s15, 0
      %p110 = por %p108, %p109
      %p111 = scmp.le.s32.totalorder 1, %s9
      %p112 = scmp.lt.s32.totalorder %s9, 3
      %p113 = pnand %p111, %p112
      %p114 = pneg %p113
      // Predicated region
      $region9: #{metasr_forward.2} parent=5 // pred_check
        _
      $region10: #{metasr_forward.2} parent=5 // pred_check_branch
        %116 = sbr.rel (%p113) target = $region12
      $region11: #{metasr_forward.2} parent=5 // pred_region
        %s117 = ssub.s32 %s9, 1
        // Predicated region
        $region13: #{metasr_forward.2} parent=11 // pred_check
          %p118 = pneg %p56
        $region14: #{metasr_forward.2} parent=11 // pred_check_branch
          %120 = sbr.rel (%p118) target = $region16
        $region15: #{metasr_forward.2} parent=11 // pred_region
          _
        $region16: #{metasr_forward.2} parent=11 // pred_fallthru
          _
        // Predicated region
        $region17: #{metasr_forward.2} parent=11 // pred_check
          %p121 = pneg %p77
        $region18: #{metasr_forward.2} parent=11 // pred_check_branch
          %123 = sbr.rel (%p121) target = $region20
        $region19: #{metasr_forward.2} parent=11 // pred_region
          _
        $region20: #{metasr_forward.2} parent=11 // pred_fallthru
          _
      $region12: #{metasr_forward.2} parent=5 // pred_fallthru
        _
      %p124 = scmp.lt.s32.totalorder %s9, 2
      // Predicated region
      $region21: #{metasr_forward.2} parent=5 // pred_check
        %p125 = pneg %p124
      $region22: #{metasr_forward.2} parent=5 // pred_check_branch
        %127 = sbr.rel (%p125) target = $region24
      $region23: #{metasr_forward.2} parent=5 // pred_region
        // Predicated region
        $region25: #{metasr_forward.2} parent=23 // pred_check
          %p128 = pneg %p29
        $region26: #{metasr_forward.2} parent=23 // pred_check_branch
          %130 = sbr.rel (%p128) target = $region28
        $region27: #{metasr_forward.2} parent=23 // pred_region
          %s131 = sand.u32 %s19, 1
          %s132 = sand.u32 %s19, 1
          %s133 = smul.addr %s132, 192
          %s134 = scalar_lea.vmem [#allocation2], %s133
          %s135 = smul.u32 4, %s9
          %s136 = smul.addr %s135, 4
          %s137 = scalar_lea.vmem %s0, %s136
          // Predicated region
          $region29: #{metasr_forward.2} parent=27 // pred_check
            _
          $region30: #{metasr_forward.2} parent=27 // pred_check_branch
            %139 = sbr.rel (0) target = $region32
          $region31: #{metasr_forward.2} parent=27 // pred_region
            // Predicated region
            $region33: #{metasr_forward.2} parent=31 // pred_check
              _
            $region34: #{metasr_forward.2} parent=31 // pred_check_branch
              %141 = sbr.rel (0) target = $region36
            $region35: #{metasr_forward.2} parent=31 // pred_region
              loop: start=0, step=1, limit=1
              $region37: #{metasr_forward.2} parent=35 // loop_pre_header
                _
              $region38: #{metasr_forward.2} parent=35 // loop_header
                %s143 = sphi 0, %s147
                %p144 = scmp.ge.s32.totalorder %s143, 1
                %s148 = sphi %s137, %s137
                %s149 = sphi %s134, %s134
              $region39: #{metasr_forward.2} parent=35 // loop_header_branch
                %146 = sbr.rel (%p144) target = $region43
              $region40: #{metasr_forward.2} parent=35 // loop_body
                %v150 = vld [vmem:[%s148] sm:$0xff]
                %151 = vst [vmem:[%s149] sm:$0xff] %v150
                %v152 = vld [vmem:[%s148 + $0x8] sm:$0xff]
                %153 = vst [vmem:[%s149 + $0x8] sm:$0xff] %v152
                %v154 = vld [vmem:[%s148 + $0x20] sm:$0xff]
                %155 = vst [vmem:[%s149 + $0x10] sm:$0xff] %v154
                %v156 = vld [vmem:[%s148 + $0x28] sm:$0xff]
                %157 = vst [vmem:[%s149 + $0x18] sm:$0xff] %v156
                %v158 = vld [vmem:[%s148 + $0x40] sm:$0xff]
                %159 = vst [vmem:[%s149 + $0x20] sm:$0xff] %v158
                %v160 = vld [vmem:[%s148 + $0x48] sm:$0xff]
                %161 = vst [vmem:[%s149 + $0x28] sm:$0xff] %v160
                %v162 = vld [vmem:[%s148 + $0x60] sm:$0xff]
                %163 = vst [vmem:[%s149 + $0x30] sm:$0xff] %v162
                %v164 = vld [vmem:[%s148 + $0x68] sm:$0xff]
                %165 = vst [vmem:[%s149 + $0x38] sm:$0xff] %v164
                %v166 = vld [vmem:[%s148 + $0x80] sm:$0xff]
                %167 = vst [vmem:[%s149 + $0x40] sm:$0xff] %v166
                %v168 = vld [vmem:[%s148 + $0x88] sm:$0xff]
                %169 = vst [vmem:[%s149 + $0x48] sm:$0xff] %v168
                %v170 = vld [vmem:[%s148 + $0xa0] sm:$0xff]
                %171 = vst [vmem:[%s149 + $0x50] sm:$0xff] %v170
                %v172 = vld [vmem:[%s148 + $0xa8] sm:$0xff]
                %173 = vst [vmem:[%s149 + $0x58] sm:$0xff] %v172
                %v174 = vld [vmem:[%s148 + $0xc0] sm:$0xff]
                %175 = vst [vmem:[%s149 + $0x60] sm:$0xff] %v174
                %v176 = vld [vmem:[%s148 + $0xc8] sm:$0xff]
                %177 = vst [vmem:[%s149 + $0x68] sm:$0xff] %v176
                %v178 = vld [vmem:[%s148 + $0xe0] sm:$0xff]
                %179 = vst [vmem:[%s149 + $0x70] sm:$0xff] %v178
                %v180 = vld [vmem:[%s148 + $0xe8] sm:$0xff]
                %181 = vst [vmem:[%s149 + $0x78] sm:$0xff] %v180
                %v182 = vld [vmem:[%s148 + $0x100] sm:$0xff]
                %183 = vst [vmem:[%s149 + $0x80] sm:$0xff] %v182
                %v184 = vld [vmem:[%s148 + $0x108] sm:$0xff]
                %185 = vst [vmem:[%s149 + $0x88] sm:$0xff] %v184
                %v186 = vld [vmem:[%s148 + $0x120] sm:$0xff]
                %187 = vst [vmem:[%s149 + $0x90] sm:$0xff] %v186
                %v188 = vld [vmem:[%s148 + $0x128] sm:$0xff]
                %189 = vst [vmem:[%s149 + $0x98] sm:$0xff] %v188
                %v190 = vld [vmem:[%s148 + $0x140] sm:$0xff]
                %191 = vst [vmem:[%s149 + $0xa0] sm:$0xff] %v190
                %v192 = vld [vmem:[%s148 + $0x148] sm:$0xff]
                %193 = vst [vmem:[%s149 + $0xa8] sm:$0xff] %v192
                %v194 = vld [vmem:[%s148 + $0x160] sm:$0xff]
                %195 = vst [vmem:[%s149 + $0xb0] sm:$0xff] %v194
                %v196 = vld [vmem:[%s148 + $0x168] sm:$0xff]
                %197 = vst [vmem:[%s149 + $0xb8] sm:$0xff] %v196
              $region41: #{metasr_forward.2} parent=35 // loop_footer
                %s147 = sadd.s32 1, %s143
              $region42: #{metasr_forward.2} parent=35 // loop_footer_branch
                %142 = sbr.rel target = $region38
              $region43: #{metasr_forward.2} parent=35 // loop_exit
                _
            $region36: #{metasr_forward.2} parent=31 // pred_fallthru
              _
            // Predicated region
            $region44: #{metasr_forward.2} parent=31 // pred_check
              _
            $region45: #{metasr_forward.2} parent=31 // pred_check_branch
              %199 = sbr.rel target = $region47
            $region46: #{metasr_forward.2} parent=31 // pred_region
              _
            $region47: #{metasr_forward.2} parent=31 // pred_fallthru
              _
          $region32: #{metasr_forward.2} parent=27 // pred_fallthru
            _
          %200 = vnop
        $region28: #{metasr_forward.2} parent=23 // pred_fallthru
          _
      $region24: #{metasr_forward.2} parent=5 // pred_fallthru
        _
      %p201 = scmp.le.s32.totalorder 1, %s9
      %p202 = scmp.lt.s32.totalorder %s9, 3
      %p203 = pnand %p201, %p202
      %p204 = pneg %p203
      // Predicated region
      $region48: #{metasr_forward.2} parent=5 // pred_check
        _
      $region49: #{metasr_forward.2} parent=5 // pred_check_branch
        %206 = sbr.rel (%p203) target = $region51
      $region50: #{metasr_forward.2} parent=5 // pred_region
        %s207 = ssub.s32 %s9, 1
        %s208 = sand.u32 %s22, 1
        %s209 = sand.u32 %s22, 1
        %s210 = smul.addr %s209, 192
        %s211 = scalar_lea.vmem [#allocation2], %s210
        // Predicated region
        $region52: #{metasr_forward.2} parent=50 // pred_check
          %p212 = pneg %p35
        $region53: #{metasr_forward.2} parent=50 // pred_check_branch
          %214 = sbr.rel (%p212) target = $region55
        $region54: #{metasr_forward.2} parent=50 // pred_region
          _
        $region55: #{metasr_forward.2} parent=50 // pred_fallthru
          _
        %s215 = sand.u32 %s22, 1
        %s216 = sand.u32 %s22, 1
        %s217 = smul.addr %s216, 192
        %s218 = scalar_lea.vmem [#allocation2], %s217
        %p219 = pneg %p35
        %p220 = pneg %p32
        %p221 = pneg %p56
        %p222 = pneg %p53
        %p223 = pneg %p77
        %p224 = pneg %p74
        %p225 = pneg %p103
        %p226 = pneg %p100
        %s227 = smul.u32 4, %s14
        %p228 = scmp.lt.s32.totalorder %s227, 7
        %s229 = scalar_select %p228, %s227, 7
        %s230 = smul.addr %s229, 8
        %s231 = scalar_lea.vmem %s3, %s230
        %s232 = smul.u32 4, %s14
        %s233 = smul.u32 4, %s14
        %p234 = scmp.lt.s32.totalorder %s233, 7
        %s235 = scalar_select %p234, %s233, 7
        %s236 = smul.addr %s235, 8
        %s237 = scalar_lea.vmem %s3, %s236
        %s238 = smul.u32 4, %s14
        %v240 = vld [vmem:[%s1] sm:$0xf]
        %v241 = vld [vmem:[%s211] sm:$0xff]
        %v242 = vld [vmem:[%s211 + $0x8] sm:$0xff]
        %v243 = vld [vmem:[%s211 + $0x10] sm:$0xff]
        %v244 = vld [vmem:[%s211 + $0x18] sm:$0xff]
        %v245 = vld [vmem:[%s211 + $0x20] sm:$0xff]
        %v246 = vld [vmem:[%s211 + $0x28] sm:$0xff]
        %v247 = vld [vmem:[%s211 + $0x30] sm:$0xff]
        %v248 = vld [vmem:[%s211 + $0x38] sm:$0xff]
        %v249 = vld [vmem:[%s211 + $0x40] sm:$0xff]
        %v250 = vld [vmem:[%s211 + $0x48] sm:$0xff]
        %v251 = vld [vmem:[%s211 + $0x50] sm:$0xff]
        %v252 = vld [vmem:[%s211 + $0x58] sm:$0xff]
        %v253 = vld [vmem:[%s211 + $0x60] sm:$0xff]
        %v254 = vld [vmem:[%s211 + $0x68] sm:$0xff]
        %v255 = vld [vmem:[%s211 + $0x70] sm:$0xff]
        %v256 = vld [vmem:[%s211 + $0x78] sm:$0xff]
        %v257 = vld [vmem:[%s211 + $0x80] sm:$0xff]
        %v258 = vld [vmem:[%s211 + $0x88] sm:$0xff]
        %v259 = vld [vmem:[%s211 + $0x90] sm:$0xff]
        %v260 = vld [vmem:[%s211 + $0x98] sm:$0xff]
        %v261 = vld [vmem:[%s211 + $0xa0] sm:$0xff]
        %v262 = vld [vmem:[%s211 + $0xa8] sm:$0xff]
        %v263 = vld [vmem:[%s211 + $0xb0] sm:$0xff]
        %v264 = vld [vmem:[%s211 + $0xb8] sm:$0xff]
        %v265 = vld [vmem:[%s2] sm:$0xff]
        %267 = vset.pattern.permute.xlu0 0
        %268 = vperm.xlu0 %267, %v265
        %v269 = vpop.permute.xlu0 %268
        %v295 = vunpack.c.l.b16 %v241
        %v296 = vunpack.c.h.b16 %v241
        %v297 = vunpack.c.l.b16 %v242
        %v298 = vunpack.c.h.b16 %v242
        %v299 = vunpack.c.l.b16 %v243
        %v300 = vunpack.c.h.b16 %v243
        %v301 = vunpack.c.l.b16 %v244
        %v302 = vunpack.c.h.b16 %v244
        %v303 = vunpack.c.l.b16 %v245
        %v304 = vunpack.c.h.b16 %v245
        %v305 = vunpack.c.l.b16 %v246
        %v306 = vunpack.c.h.b16 %v246
        %v307 = vunpack.c.l.b16 %v247
        %v308 = vunpack.c.h.b16 %v247
        %v309 = vunpack.c.l.b16 %v248
        %v310 = vunpack.c.h.b16 %v248
        %v311 = vunpack.c.l.b16 %v249
        %v312 = vunpack.c.h.b16 %v249
        %v313 = vunpack.c.l.b16 %v250
        %v314 = vunpack.c.h.b16 %v250
        %v315 = vunpack.c.l.b16 %v251
        %v316 = vunpack.c.h.b16 %v251
        %v317 = vunpack.c.l.b16 %v252
        %v318 = vunpack.c.h.b16 %v252
        %v319 = vunpack.c.l.b16 %v253
        %v320 = vunpack.c.h.b16 %v253
        %v321 = vunpack.c.l.b16 %v254
        %v322 = vunpack.c.h.b16 %v254
        %v323 = vunpack.c.l.b16 %v255
        %v324 = vunpack.c.h.b16 %v255
        %v325 = vunpack.c.l.b16 %v256
        %v326 = vunpack.c.h.b16 %v256
        %v327 = vunpack.c.l.b16 %v257
        %v328 = vunpack.c.h.b16 %v257
        %v329 = vunpack.c.l.b16 %v258
        %v330 = vunpack.c.h.b16 %v258
        %v331 = vunpack.c.l.b16 %v259
        %v332 = vunpack.c.h.b16 %v259
        %v333 = vunpack.c.l.b16 %v260
        %v334 = vunpack.c.h.b16 %v260
        %v335 = vunpack.c.l.b16 %v261
        %v336 = vunpack.c.h.b16 %v261
        %v337 = vunpack.c.l.b16 %v262
        %v338 = vunpack.c.h.b16 %v262
        %v339 = vunpack.c.l.b16 %v263
        %v340 = vunpack.c.h.b16 %v263
        %v341 = vunpack.c.l.b16 %v264
        %v342 = vunpack.c.h.b16 %v264
        %v343 = vpack.c.b16 %v299, %v295
        %v344 = vpack.c.b16 %v300, %v296
        %v345 = vpack.c.b16 %v301, %v297
        %v346 = vpack.c.b16 %v302, %v298
        %v347 = vpack.c.b16 %v307, %v303
        %v348 = vpack.c.b16 %v308, %v304
        %v349 = vpack.c.b16 %v309, %v305
        %v350 = vpack.c.b16 %v310, %v306
        %v351 = vpack.c.b16 %v315, %v311
        %v352 = vpack.c.b16 %v316, %v312
        %v353 = vpack.c.b16 %v317, %v313
        %v354 = vpack.c.b16 %v318, %v314
        %v355 = vpack.c.b16 %v323, %v319
        %v356 = vpack.c.b16 %v324, %v320
        %v357 = vpack.c.b16 %v325, %v321
        %v358 = vpack.c.b16 %v326, %v322
        %v359 = vpack.c.b16 %v331, %v327
        %v360 = vpack.c.b16 %v332, %v328
        %v361 = vpack.c.b16 %v333, %v329
        %v362 = vpack.c.b16 %v334, %v330
        %v363 = vpack.c.b16 %v339, %v335
        %v364 = vpack.c.b16 %v340, %v336
        %v365 = vpack.c.b16 %v341, %v337
        %v366 = vpack.c.b16 %v342, %v338
        %vm391 = vcmask 785408
        %v393 = vsel %vm391, %v240, 0
        %395 = vmatprep.subr.bf16.mxu0 %v344
        %396 = vmatpush1.bf16.msra.mxu0 %v343
        %397 = vmatprep.subr.bf16.mxu0 %v348
        %398 = vmatpush1.bf16.msra.mxu0 %v347
        %399 = vmatprep.subr.bf16.mxu0 %v352
        %400 = vmatpush1.bf16.msra.mxu0 %v351
        %401 = vmatprep.subr.bf16.mxu0 %v356
        %402 = vmatpush1.bf16.msra.mxu0 %v355
        %403 = vmatprep.subr.bf16.mxu0 %v360
        %404 = vmatpush1.bf16.msra.mxu0 %v359
        %405 = vmatprep.subr.bf16.mxu0 %v364
        %406 = vmatpush1.bf16.msra.mxu0 %v363
        %407 = vmatprep.subr.bf16.mxu0 0
        %408 = vmatpush1.bf16.msra.mxu0 0
        %409 = vmatprep.subr.bf16.mxu0 0
        %410 = vmatpush1.bf16.msra.mxu0 0
        %411 = vmatprep.subr.bf16.mxu0 0
        %412 = vmatpush1.bf16.msra.mxu0 0
        %413 = vmatprep.subr.bf16.mxu0 0
        %414 = vmatpush1.bf16.msra.mxu0 0
        %415 = vmatprep.subr.bf16.mxu0 0
        %416 = vmatpush1.bf16.msra.mxu0 0
        %417 = vmatprep.subr.bf16.mxu0 0
        %418 = vmatpush1.bf16.msra.mxu0 0
        %419 = vmatprep.subr.bf16.mxu0 0
        %420 = vmatpush1.bf16.msra.mxu0 0
        %421 = vmatprep.subr.bf16.mxu0 0
        %422 = vmatpush1.bf16.msra.mxu0 0
        %423 = vmatprep.subr.bf16.mxu0 0
        %424 = vmatpush1.bf16.msra.mxu0 0
        %425 = vmatprep.subr.bf16.mxu0 0
        %426 = vmatpush1.bf16.msra.mxu0 0
        %427 = vmatprep.mubr.bf16.mxu0 0
        %428 = vmatmul.mubr.bf16.gmra.mrb[0].mxu0 %v393
        %v429 = vpop.f32.mrb[0].mxu0
        %v430 = vadd.f32 %v269, %v429
        %v431 = vpop.f32.mrb[0].mxu0
        %v432 = vadd.f32 %v269, %v431
        %v433 = vpop.f32.mrb[0].mxu0
        %v434 = vpop.f32.mrb[0].mxu0
        %435 = vdwg.mxu0
        %436 = vmatprep.subr.bf16.mxu0 %v346
        %437 = vmatpush1.bf16.msra.mxu0 %v345
        %438 = vmatprep.subr.bf16.mxu0 %v350
        %439 = vmatpush1.bf16.msra.mxu0 %v349
        %440 = vmatprep.subr.bf16.mxu0 %v354
        %441 = vmatpush1.bf16.msra.mxu0 %v353
        %442 = vmatprep.subr.bf16.mxu0 %v358
        %443 = vmatpush1.bf16.msra.mxu0 %v357
        %444 = vmatprep.subr.bf16.mxu0 %v362
        %445 = vmatpush1.bf16.msra.mxu0 %v361
        %446 = vmatprep.subr.bf16.mxu0 %v366
        %447 = vmatpush1.bf16.msra.mxu0 %v365
        %448 = vmatprep.subr.bf16.mxu0 0
        %449 = vmatpush1.bf16.msra.mxu0 0
        %450 = vmatprep.subr.bf16.mxu0 0
        %451 = vmatpush1.bf16.msra.mxu0 0
        %452 = vmatprep.subr.bf16.mxu0 0
        %453 = vmatpush1.bf16.msra.mxu0 0
        %454 = vmatprep.subr.bf16.mxu0 0
        %455 = vmatpush1.bf16.msra.mxu0 0
        %456 = vmatprep.subr.bf16.mxu0 0
        %457 = vmatpush1.bf16.msra.mxu0 0
        %458 = vmatprep.subr.bf16.mxu0 0
        %459 = vmatpush1.bf16.msra.mxu0 0
        %460 = vmatprep.subr.bf16.mxu0 0
        %461 = vmatpush1.bf16.msra.mxu0 0
        %462 = vmatprep.subr.bf16.mxu0 0
        %463 = vmatpush1.bf16.msra.mxu0 0
        %464 = vmatprep.subr.bf16.mxu0 0
        %465 = vmatpush1.bf16.msra.mxu0 0
        %466 = vmatprep.subr.bf16.mxu0 0
        %467 = vmatpush1.bf16.msra.mxu0 0
        %468 = vmatprep.mubr.bf16.mxu0 0
        %469 = vmatmul.mubr.bf16.gmra.mrb[0].mxu0 %v393
        %v470 = vpop.f32.mrb[0].mxu0
        %v471 = vadd.f32 %v269, %v470
        %v472 = vpop.f32.mrb[0].mxu0
        %v473 = vadd.f32 %v269, %v472
        %v474 = vpop.f32.mrb[0].mxu0
        %v475 = vpop.f32.mrb[0].mxu0
        %476 = vdwg.mxu0
        %477 = vst [vmem:[%s237] sm:$0xff] %v430
        %478 = vst [vmem:[%s237 + $0x8] sm:$0xff] %v432
        %479 = vst [vmem:[%s237 + $0x10] sm:$0xff] %v471
        %480 = vst [vmem:[%s237 + $0x18] sm:$0xff] %v473
        %s481 = smul.u32 4, %s14
        %p482 = scmp.lt.s32.totalorder %s481, 7
        %s483 = scalar_select %p482, %s481, 7
        %s484 = smul.addr %s483, 8
        %s485 = scalar_lea.vmem %s3, %s484
        // Predicated region
        $region56: #{metasr_forward.2} parent=50 // pred_check
          %p486 = pneg %p100
        $region57: #{metasr_forward.2} parent=50 // pred_check_branch
          %488 = sbr.rel (%p486) target = $region59
        $region58: #{metasr_forward.2} parent=50 // pred_region
          %s489 = smul.u32 4, %s14
        $region59: #{metasr_forward.2} parent=50 // pred_fallthru
          _
      $region51: #{metasr_forward.2} parent=5 // pred_fallthru
        _
      %p490 = scmp.le.s32.totalorder 2, %s9
      // Predicated region
      $region60: #{metasr_forward.2} parent=5 // pred_check
        %p491 = pneg %p490
      $region61: #{metasr_forward.2} parent=5 // pred_check_branch
        %493 = sbr.rel (%p491) target = $region63
      $region62: #{metasr_forward.2} parent=5 // pred_region
        %s494 = ssub.s32 %s9, 2
        // Predicated region
        $region64: #{metasr_forward.2} parent=62 // pred_check
          %p495 = pneg %p106
        $region65: #{metasr_forward.2} parent=62 // pred_check_branch
          %497 = sbr.rel (%p495) target = $region67
        $region66: #{metasr_forward.2} parent=62 // pred_region
          %s498 = smul.u32 4, %s15
          %p499 = scmp.lt.s32.totalorder %s498, 7
          %s500 = scalar_select %p499, %s498, 7
          %s501 = smul.addr %s500, 8
          %s502 = scalar_lea.vmem %s3, %s501
        $region67: #{metasr_forward.2} parent=62 // pred_fallthru
          _
      $region63: #{metasr_forward.2} parent=5 // pred_fallthru
        _
    $region6: #{metasr_forward.2} parent=1 // loop_footer
      %s13 = sadd.s32 1, %s9
    $region7: #{metasr_forward.2} parent=1 // loop_footer_branch
      %8 = sbr.rel target = $region3
    $region8: #{metasr_forward.2} parent=1 // loop_exit
      _

// kernel: metasr_forward.3
$region0: #{metasr_forward.3}
  #allocation0 [shape = 'u32[]', space=smem, size = 0x4, offset = 0x4, fixed_abs, tag = 'smem constant byte address 0x4 - core index']
  #allocation1 [shape = 'u32[144,128]{1,0:T(1,128)}', space=vmem, size = 0x12000, scoped, tag = 'internal scratch']
  %s0 = inlined_call_operand.vmem [shape: f32[4,512], index: 0, kind: input, shape index: {}]
  %s1 = inlined_call_operand.vmem [shape: bf16[216,512], index: 1, kind: input, shape index: {}]
  %s2 = inlined_call_operand.vmem [shape: f32[256,4], index: 2, kind: input, shape index: {}]
  %s3 = inlined_call_operand.vmem [shape: f32[256,1], index: 3, kind: input, shape index: {}]
  %s4 = inlined_call_operand.vmem [shape: bf16[256,256], index: 4, kind: input, shape index: {}]
  %s5 = inlined_call_operand.vmem [shape: f32[256,1], index: 5, kind: input, shape index: {}]
  %s6 = inlined_call_operand.vmem [shape: bf16[256,256], index: 6, kind: input, shape index: {}]
  %s7 = inlined_call_operand.vmem [shape: f32[256,1], index: 7, kind: input, shape index: {}]
  %s8 = inlined_call_operand.vmem [shape: bf16[256,256], index: 8, kind: input, shape index: {}]
  %s9 = inlined_call_operand.vmem [shape: f32[256,1], index: 9, kind: input, shape index: {}]
  %s10 = inlined_call_operand.vmem [shape: bf16[216,256], index: 10, kind: input, shape index: {}]
  %s11 = inlined_call_operand.vmem [shape: f32[216,1], index: 11, kind: input, shape index: {}]
  %s12 = inlined_call_operand.hbm [shape: f32[1,512], index: 12, kind: output, shape index: {}]
  %s13 = sld [smem:[#allocation0]]
  $region119: #{metasr_forward.3} parent=0
    _
  %s15 = ssub.s32 1, %s13
  %s16 = scalar_select 0, %s15, %s13
  $region1: #{metasr_forward.3} parent=0
    #allocation2 [shape = 'u8[221184]{0}', space=vmem, size = 0x36000, scoped, tag = 'input window, operand 1']
    #allocation3 [shape = 'u8[2048]{0}', space=vmem, size = 0x800, scoped, tag = 'output window, operand 0']
    #allocation4 [shape = 's32[2]{0}', space=sflag, size = 0x8, scoped, tag = 'scoped memory for metasr_forward.3']
    %17 = vsyncpa [#allocation4], 0
    %s18 = scalar_lea.sflag [#allocation4], 1
    %19 = vsyncpa %s18, 0
    loop: start=0, step=1, limit=4
    $region2: #{metasr_forward.3} parent=1 // loop_pre_header
      _
    $region3: #{metasr_forward.3} parent=1 // loop_header
      %s21 = sphi 0, %s25
      %p22 = scmp.ge.s32.totalorder %s21, 4
      %s31 = sphi 0, %s33
      %s34 = sphi 0, %s31
      %s35 = sphi 0, %s34
      %s51 = sphi 0, %s35
      %s57 = sphi 0, %s59
      %s60 = sphi 0, %s57
      %s61 = sphi 0, %s60
      %s77 = sphi 0, %s61
      %s81 = sphi 0, %s81
      %s83 = sphi 0, %s81
      %s84 = sphi 0, %s83
      %s98 = sphi 0, %s84
      %s102 = sphi 0, %s102
      %s104 = sphi 0, %s102
      %s105 = sphi 0, %s104
      %s119 = sphi 0, %s105
      %s123 = sphi 0, %s123
      %s125 = sphi 0, %s123
      %s126 = sphi 0, %s125
      %s140 = sphi 0, %s126
      %s144 = sphi 0, %s144
      %s146 = sphi 0, %s144
      %s147 = sphi 0, %s146
      %s161 = sphi 0, %s147
      %s165 = sphi 0, %s165
      %s167 = sphi 0, %s165
      %s168 = sphi 0, %s167
      %s182 = sphi 0, %s168
      %s186 = sphi 0, %s186
      %s188 = sphi 0, %s186
      %s189 = sphi 0, %s188
      %s203 = sphi 0, %s189
      %s207 = sphi 0, %s207
      %s209 = sphi 0, %s207
      %s210 = sphi 0, %s209
      %s224 = sphi 0, %s210
      %s228 = sphi 0, %s228
      %s230 = sphi 0, %s228
      %s231 = sphi 0, %s230
      %s245 = sphi 0, %s231
      %s249 = sphi 0, %s249
      %s251 = sphi 0, %s249
      %s252 = sphi 0, %s251
      %s266 = sphi 0, %s252
      %s270 = sphi 0, %s270
      %s272 = sphi 0, %s270
      %s273 = sphi 0, %s272
      %s287 = sphi 0, %s273
      %s293 = sphi 0, %s295
      %s296 = sphi 0, %s293
      %s297 = sphi 0, %s296
      %s313 = sphi 0, %s297
    $region4: #{metasr_forward.3} parent=1 // loop_header_branch
      %24 = sbr.rel (%p22) target = $region8
    $region5: #{metasr_forward.3} parent=1 // loop_body
      %s26 = ssub.s32 %s21, 1
      %s27 = ssub.s32 %s21, 2
      %s28 = sadd.s32 %s21, 1
      %s29 = ssub.s32 %s21, %s28
      %p30 = scmp.eq.s32.totalorder %s29, 0
      %s32 = sadd.s32 %s31, 1
      %s33 = scalar_select %p30, %s31, %s32
      %p36 = pneg %p30
      %p37 = scmp.eq.s32.totalorder %s21, 1
      %p38 = por %p36, %p37
      %p39 = scmp.ne.s32.totalorder %s31, %s34
      %p40 = scmp.eq.s32.totalorder %s21, 0
      %p41 = por %p39, %p40
      %p42 = scmp.ne.s32.totalorder %s31, %s34
      %p43 = scmp.eq.s32.totalorder %s26, 1
      %p44 = por %p42, %p43
      %p45 = scmp.ne.s32.totalorder %s34, %s35
      %p46 = scmp.eq.s32.totalorder %s26, 0
      %p47 = por %p45, %p46
      %p48 = scmp.ne.s32.totalorder %s34, %s35
      %p49 = scmp.eq.s32.totalorder %s27, 1
      %p50 = por %p48, %p49
      %p52 = scmp.ne.s32.totalorder %s35, %s51
      %p53 = scmp.eq.s32.totalorder %s27, 0
      %p54 = por %p52, %p53
      %s55 = ssub.s32 %s21, %s28
      %p56 = scmp.eq.s32.totalorder %s55, 0
      %s58 = sadd.s32 %s57, 1
      %s59 = scalar_select %p56, %s57, %s58
      %p62 = pneg %p56
      %p63 = scmp.eq.s32.totalorder %s21, 1
      %p64 = por %p62, %p63
      %p65 = scmp.ne.s32.totalorder %s57, %s60
      %p66 = scmp.eq.s32.totalorder %s21, 0
      %p67 = por %p65, %p66
      %p68 = scmp.ne.s32.totalorder %s57, %s60
      %p69 = scmp.eq.s32.totalorder %s26, 1
      %p70 = por %p68, %p69
      %p71 = scmp.ne.s32.totalorder %s60, %s61
      %p72 = scmp.eq.s32.totalorder %s26, 0
      %p73 = por %p71, %p72
      %p74 = scmp.ne.s32.totalorder %s60, %s61
      %p75 = scmp.eq.s32.totalorder %s27, 1
      %p76 = por %p74, %p75
      %p78 = scmp.ne.s32.totalorder %s61, %s77
      %p79 = scmp.eq.s32.totalorder %s27, 0
      %p80 = por %p78, %p79
      %s82 = sadd.s32 %s81, 1
      %p85 = scmp.eq.s32.totalorder %s21, 1
      %p86 = scmp.ne.s32.totalorder %s81, %s83
      %p87 = scmp.eq.s32.totalorder %s21, 0
      %p88 = por %p86, %p87
      %p89 = scmp.ne.s32.totalorder %s81, %s83
      %p90 = scmp.eq.s32.totalorder %s26, 1
      %p91 = por %p89, %p90
      %p92 = scmp.ne.s32.totalorder %s83, %s84
      %p93 = scmp.eq.s32.totalorder %s26, 0
      %p94 = por %p92, %p93
      %p95 = scmp.ne.s32.totalorder %s83, %s84
      %p96 = scmp.eq.s32.totalorder %s27, 1
      %p97 = por %p95, %p96
      %p99 = scmp.ne.s32.totalorder %s84, %s98
      %p100 = scmp.eq.s32.totalorder %s27, 0
      %p101 = por %p99, %p100
      %s103 = sadd.s32 %s102, 1
      %p106 = scmp.eq.s32.totalorder %s21, 1
      %p107 = scmp.ne.s32.totalorder %s102, %s104
      %p108 = scmp.eq.s32.totalorder %s21, 0
      %p109 = por %p107, %p108
      %p110 = scmp.ne.s32.totalorder %s102, %s104
      %p111 = scmp.eq.s32.totalorder %s26, 1
      %p112 = por %p110, %p111
      %p113 = scmp.ne.s32.totalorder %s104, %s105
      %p114 = scmp.eq.s32.totalorder %s26, 0
      %p115 = por %p113, %p114
      %p116 = scmp.ne.s32.totalorder %s104, %s105
      %p117 = scmp.eq.s32.totalorder %s27, 1
      %p118 = por %p116, %p117
      %p120 = scmp.ne.s32.totalorder %s105, %s119
      %p121 = scmp.eq.s32.totalorder %s27, 0
      %p122 = por %p120, %p121
      %s124 = sadd.s32 %s123, 1
      %p127 = scmp.eq.s32.totalorder %s21, 1
      %p128 = scmp.ne.s32.totalorder %s123, %s125
      %p129 = scmp.eq.s32.totalorder %s21, 0
      %p130 = por %p128, %p129
      %p131 = scmp.ne.s32.totalorder %s123, %s125
      %p132 = scmp.eq.s32.totalorder %s26, 1
      %p133 = por %p131, %p132
      %p134 = scmp.ne.s32.totalorder %s125, %s126
      %p135 = scmp.eq.s32.totalorder %s26, 0
      %p136 = por %p134, %p135
      %p137 = scmp.ne.s32.totalorder %s125, %s126
      %p138 = scmp.eq.s32.totalorder %s27, 1
      %p139 = por %p137, %p138
      %p141 = scmp.ne.s32.totalorder %s126, %s140
      %p142 = scmp.eq.s32.totalorder %s27, 0
      %p143 = por %p141, %p142
      %s145 = sadd.s32 %s144, 1
      %p148 = scmp.eq.s32.totalorder %s21, 1
      %p149 = scmp.ne.s32.totalorder %s144, %s146
      %p150 = scmp.eq.s32.totalorder %s21, 0
      %p151 = por %p149, %p150
      %p152 = scmp.ne.s32.totalorder %s144, %s146
      %p153 = scmp.eq.s32.totalorder %s26, 1
      %p154 = por %p152, %p153
      %p155 = scmp.ne.s32.totalorder %s146, %s147
      %p156 = scmp.eq.s32.totalorder %s26, 0
      %p157 = por %p155, %p156
      %p158 = scmp.ne.s32.totalorder %s146, %s147
      %p159 = scmp.eq.s32.totalorder %s27, 1
      %p160 = por %p158, %p159
      %p162 = scmp.ne.s32.totalorder %s147, %s161
      %p163 = scmp.eq.s32.totalorder %s27, 0
      %p164 = por %p162, %p163
      %s166 = sadd.s32 %s165, 1
      %p169 = scmp.eq.s32.totalorder %s21, 1
      %p170 = scmp.ne.s32.totalorder %s165, %s167
      %p171 = scmp.eq.s32.totalorder %s21, 0
      %p172 = por %p170, %p171
      %p173 = scmp.ne.s32.totalorder %s165, %s167
      %p174 = scmp.eq.s32.totalorder %s26, 1
      %p175 = por %p173, %p174
      %p176 = scmp.ne.s32.totalorder %s167, %s168
      %p177 = scmp.eq.s32.totalorder %s26, 0
      %p178 = por %p176, %p177
      %p179 = scmp.ne.s32.totalorder %s167, %s168
      %p180 = scmp.eq.s32.totalorder %s27, 1
      %p181 = por %p179, %p180
      %p183 = scmp.ne.s32.totalorder %s168, %s182
      %p184 = scmp.eq.s32.totalorder %s27, 0
      %p185 = por %p183, %p184
      %s187 = sadd.s32 %s186, 1
      %p190 = scmp.eq.s32.totalorder %s21, 1
      %p191 = scmp.ne.s32.totalorder %s186, %s188
      %p192 = scmp.eq.s32.totalorder %s21, 0
      %p193 = por %p191, %p192
      %p194 = scmp.ne.s32.totalorder %s186, %s188
      %p195 = scmp.eq.s32.totalorder %s26, 1
      %p196 = por %p194, %p195
      %p197 = scmp.ne.s32.totalorder %s188, %s189
      %p198 = scmp.eq.s32.totalorder %s26, 0
      %p199 = por %p197, %p198
      %p200 = scmp.ne.s32.totalorder %s188, %s189
      %p201 = scmp.eq.s32.totalorder %s27, 1
      %p202 = por %p200, %p201
      %p204 = scmp.ne.s32.totalorder %s189, %s203
      %p205 = scmp.eq.s32.totalorder %s27, 0
      %p206 = por %p204, %p205
      %s208 = sadd.s32 %s207, 1
      %p211 = scmp.eq.s32.totalorder %s21, 1
      %p212 = scmp.ne.s32.totalorder %s207, %s209
      %p213 = scmp.eq.s32.totalorder %s21, 0
      %p214 = por %p212, %p213
      %p215 = scmp.ne.s32.totalorder %s207, %s209
      %p216 = scmp.eq.s32.totalorder %s26, 1
      %p217 = por %p215, %p216
      %p218 = scmp.ne.s32.totalorder %s209, %s210
      %p219 = scmp.eq.s32.totalorder %s26, 0
      %p220 = por %p218, %p219
      %p221 = scmp.ne.s32.totalorder %s209, %s210
      %p222 = scmp.eq.s32.totalorder %s27, 1
      %p223 = por %p221, %p222
      %p225 = scmp.ne.s32.totalorder %s210, %s224
      %p226 = scmp.eq.s32.totalorder %s27, 0
      %p227 = por %p225, %p226
      %s229 = sadd.s32 %s228, 1
      %p232 = scmp.eq.s32.totalorder %s21, 1
      %p233 = scmp.ne.s32.totalorder %s228, %s230
      %p234 = scmp.eq.s32.totalorder %s21, 0
      %p235 = por %p233, %p234
      %p236 = scmp.ne.s32.totalorder %s228, %s230
      %p237 = scmp.eq.s32.totalorder %s26, 1
      %p238 = por %p236, %p237
      %p239 = scmp.ne.s32.totalorder %s230, %s231
      %p240 = scmp.eq.s32.totalorder %s26, 0
      %p241 = por %p239, %p240
      %p242 = scmp.ne.s32.totalorder %s230, %s231
      %p243 = scmp.eq.s32.totalorder %s27, 1
      %p244 = por %p242, %p243
      %p246 = scmp.ne.s32.totalorder %s231, %s245
      %p247 = scmp.eq.s32.totalorder %s27, 0
      %p248 = por %p246, %p247
      %s250 = sadd.s32 %s249, 1
      %p253 = scmp.eq.s32.totalorder %s21, 1
      %p254 = scmp.ne.s32.totalorder %s249, %s251
      %p255 = scmp.eq.s32.totalorder %s21, 0
      %p256 = por %p254, %p255
      %p257 = scmp.ne.s32.totalorder %s249, %s251
      %p258 = scmp.eq.s32.totalorder %s26, 1
      %p259 = por %p257, %p258
      %p260 = scmp.ne.s32.totalorder %s251, %s252
      %p261 = scmp.eq.s32.totalorder %s26, 0
      %p262 = por %p260, %p261
      %p263 = scmp.ne.s32.totalorder %s251, %s252
      %p264 = scmp.eq.s32.totalorder %s27, 1
      %p265 = por %p263, %p264
      %p267 = scmp.ne.s32.totalorder %s252, %s266
      %p268 = scmp.eq.s32.totalorder %s27, 0
      %p269 = por %p267, %p268
      %s271 = sadd.s32 %s270, 1
      %p274 = scmp.eq.s32.totalorder %s21, 1
      %p275 = scmp.ne.s32.totalorder %s270, %s272
      %p276 = scmp.eq.s32.totalorder %s21, 0
      %p277 = por %p275, %p276
      %p278 = scmp.ne.s32.totalorder %s270, %s272
      %p279 = scmp.eq.s32.totalorder %s26, 1
      %p280 = por %p278, %p279
      %p281 = scmp.ne.s32.totalorder %s272, %s273
      %p282 = scmp.eq.s32.totalorder %s26, 0
      %p283 = por %p281, %p282
      %p284 = scmp.ne.s32.totalorder %s272, %s273
      %p285 = scmp.eq.s32.totalorder %s27, 1
      %p286 = por %p284, %p285
      %p288 = scmp.ne.s32.totalorder %s273, %s287
      %p289 = scmp.eq.s32.totalorder %s27, 0
      %p290 = por %p288, %p289
      %s291 = ssub.s32 %s21, %s28
      %p292 = scmp.eq.s32.totalorder %s291, 0
      %s294 = sadd.s32 %s293, 1
      %s295 = scalar_select %p292, %s293, %s294
      %p298 = pneg %p292
      %p299 = scmp.eq.s32.totalorder %s21, 1
      %p300 = por %p298, %p299
      %p301 = scmp.ne.s32.totalorder %s293, %s296
      %p302 = scmp.eq.s32.totalorder %s21, 0
      %p303 = por %p301, %p302
      %p304 = scmp.ne.s32.totalorder %s293, %s296
      %p305 = scmp.eq.s32.totalorder %s26, 1
      %p306 = por %p304, %p305
      %p307 = scmp.ne.s32.totalorder %s296, %s297
      %p308 = scmp.eq.s32.totalorder %s26, 0
      %p309 = por %p307, %p308
      %p310 = scmp.ne.s32.totalorder %s296, %s297
      %p311 = scmp.eq.s32.totalorder %s27, 1
      %p312 = por %p310, %p311
      %p314 = scmp.ne.s32.totalorder %s297, %s313
      %p315 = scmp.eq.s32.totalorder %s27, 0
      %p316 = por %p314, %p315
      %p317 = scmp.le.s32.totalorder 1, %s21
      %p318 = scmp.lt.s32.totalorder %s21, 3
      %p319 = pnand %p317, %p318
      %p320 = pneg %p319
      // Predicated region
      $region9: #{metasr_forward.3} parent=5 // pred_check
        _
      $region10: #{metasr_forward.3} parent=5 // pred_check_branch
        %322 = sbr.rel (%p319) target = $region12
      $region11: #{metasr_forward.3} parent=5 // pred_region
        %s323 = ssub.s32 %s21, 1
        // Predicated region
        $region13: #{metasr_forward.3} parent=11 // pred_check
          %p324 = pneg %p94
        $region14: #{metasr_forward.3} parent=11 // pred_check_branch
          %326 = sbr.rel (%p324) target = $region16
        $region15: #{metasr_forward.3} parent=11 // pred_region
          _
        $region16: #{metasr_forward.3} parent=11 // pred_fallthru
          _
        // Predicated region
        $region17: #{metasr_forward.3} parent=11 // pred_check
          %p327 = pneg %p115
        $region18: #{metasr_forward.3} parent=11 // pred_check_branch
          %329 = sbr.rel (%p327) target = $region20
        $region19: #{metasr_forward.3} parent=11 // pred_region
          _
        $region20: #{metasr_forward.3} parent=11 // pred_fallthru
          _
        // Predicated region
        $region21: #{metasr_forward.3} parent=11 // pred_check
          %p330 = pneg %p136
        $region22: #{metasr_forward.3} parent=11 // pred_check_branch
          %332 = sbr.rel (%p330) target = $region24
        $region23: #{metasr_forward.3} parent=11 // pred_region
          _
        $region24: #{metasr_forward.3} parent=11 // pred_fallthru
          _
        // Predicated region
        $region25: #{metasr_forward.3} parent=11 // pred_check
          %p333 = pneg %p157
        $region26: #{metasr_forward.3} parent=11 // pred_check_branch
          %335 = sbr.rel (%p333) target = $region28
        $region27: #{metasr_forward.3} parent=11 // pred_region
          _
        $region28: #{metasr_forward.3} parent=11 // pred_fallthru
          _
        // Predicated region
        $region29: #{metasr_forward.3} parent=11 // pred_check
          %p336 = pneg %p178
        $region30: #{metasr_forward.3} parent=11 // pred_check_branch
          %338 = sbr.rel (%p336) target = $region32
        $region31: #{metasr_forward.3} parent=11 // pred_region
          _
        $region32: #{metasr_forward.3} parent=11 // pred_fallthru
          _
        // Predicated region
        $region33: #{metasr_forward.3} parent=11 // pred_check
          %p339 = pneg %p199
        $region34: #{metasr_forward.3} parent=11 // pred_check_branch
          %341 = sbr.rel (%p339) target = $region36
        $region35: #{metasr_forward.3} parent=11 // pred_region
          _
        $region36: #{metasr_forward.3} parent=11 // pred_fallthru
          _
        // Predicated region
        $region37: #{metasr_forward.3} parent=11 // pred_check
          %p342 = pneg %p220
        $region38: #{metasr_forward.3} parent=11 // pred_check_branch
          %344 = sbr.rel (%p342) target = $region40
        $region39: #{metasr_forward.3} parent=11 // pred_region
          _
        $region40: #{metasr_forward.3} parent=11 // pred_fallthru
          _
        // Predicated region
        $region41: #{metasr_forward.3} parent=11 // pred_check
          %p345 = pneg %p241
        $region42: #{metasr_forward.3} parent=11 // pred_check_branch
          %347 = sbr.rel (%p345) target = $region44
        $region43: #{metasr_forward.3} parent=11 // pred_region
          _
        $region44: #{metasr_forward.3} parent=11 // pred_fallthru
          _
        // Predicated region
        $region45: #{metasr_forward.3} parent=11 // pred_check
          %p348 = pneg %p262
        $region46: #{metasr_forward.3} parent=11 // pred_check_branch
          %350 = sbr.rel (%p348) target = $region48
        $region47: #{metasr_forward.3} parent=11 // pred_region
          _
        $region48: #{metasr_forward.3} parent=11 // pred_fallthru
          _
        // Predicated region
        $region49: #{metasr_forward.3} parent=11 // pred_check
          %p351 = pneg %p283
        $region50: #{metasr_forward.3} parent=11 // pred_check_branch
          %353 = sbr.rel (%p351) target = $region52
        $region51: #{metasr_forward.3} parent=11 // pred_region
          _
        $region52: #{metasr_forward.3} parent=11 // pred_fallthru
          _
      $region12: #{metasr_forward.3} parent=5 // pred_fallthru
        _
      %p354 = scmp.lt.s32.totalorder %s21, 2
      // Predicated region
      $region53: #{metasr_forward.3} parent=5 // pred_check
        %p355 = pneg %p354
      $region54: #{metasr_forward.3} parent=5 // pred_check_branch
        %357 = sbr.rel (%p355) target = $region56
      $region55: #{metasr_forward.3} parent=5 // pred_region
        // Predicated region
        $region57: #{metasr_forward.3} parent=55 // pred_check
          %p358 = pneg %p41
        $region58: #{metasr_forward.3} parent=55 // pred_check_branch
          %360 = sbr.rel (%p358) target = $region60
        $region59: #{metasr_forward.3} parent=55 // pred_region
          %s361 = smul.u32 2, %s21
          %p362 = scmp.lt.s32.totalorder %s361, 3
          %s363 = scalar_select %p362, %s361, 3
          %s364 = smul.addr %s363, 4
          %s365 = scalar_lea.vmem %s0, %s364
          %s366 = smul.u32 2, %s21
        $region60: #{metasr_forward.3} parent=55 // pred_fallthru
          _
        // Predicated region
        $region61: #{metasr_forward.3} parent=55 // pred_check
          %p367 = pneg %p67
        $region62: #{metasr_forward.3} parent=55 // pred_check_branch
          %369 = sbr.rel (%p367) target = $region64
        $region63: #{metasr_forward.3} parent=55 // pred_region
          %s370 = sand.u32 %s57, 1
          %s371 = sand.u32 %s57, 1
          %s372 = smul.addr %s371, 216
          %s373 = scalar_lea.vmem [#allocation2], %s372
          %s374 = smul.u32 2, %s21
          %s375 = smul.addr %s374, 4
          %s376 = scalar_lea.vmem %s1, %s375
          // Predicated region
          $region65: #{metasr_forward.3} parent=63 // pred_check
            _
          $region66: #{metasr_forward.3} parent=63 // pred_check_branch
            %378 = sbr.rel (0) target = $region68
          $region67: #{metasr_forward.3} parent=63 // pred_region
            // Predicated region
            $region69: #{metasr_forward.3} parent=67 // pred_check
              _
            $region70: #{metasr_forward.3} parent=67 // pred_check_branch
              %380 = sbr.rel (0) target = $region72
            $region71: #{metasr_forward.3} parent=67 // pred_region
              // Predicated region
              $region84: #{metasr_forward.3} parent=71 // pred_check
                _
              $region85: #{metasr_forward.3} parent=71 // pred_check_branch
                %447 = sbr.rel (0) target = $region87
              $region86: #{metasr_forward.3} parent=71 // pred_region
                loop: start=0, step=1, limit=1
                $region88: #{metasr_forward.3} parent=86 // loop_pre_header
                  _
                $region89: #{metasr_forward.3} parent=86 // loop_header
                  %s449 = sphi 0, %s453
                  %p450 = scmp.ge.s32.totalorder %s449, 1
                  %s454 = sphi %s376, %s376
                  %s455 = sphi %s373, %s373
                $region90: #{metasr_forward.3} parent=86 // loop_header_branch
                  %452 = sbr.rel (%p450) target = $region94
                $region91: #{metasr_forward.3} parent=86 // loop_body
                  %v456 = vld [vmem:[%s454] sm:$0xff]
                  %457 = vst [vmem:[%s455] sm:$0xff] %v456
                  %v458 = vld [vmem:[%s454 + $0x10] sm:$0xff]
                  %459 = vst [vmem:[%s455 + $0x8] sm:$0xff] %v458
                  %v460 = vld [vmem:[%s454 + $0x20] sm:$0xff]
                  %461 = vst [vmem:[%s455 + $0x10] sm:$0xff] %v460
                  %v462 = vld [vmem:[%s454 + $0x30] sm:$0xff]
                  %463 = vst [vmem:[%s455 + $0x18] sm:$0xff] %v462
                  %v464 = vld [vmem:[%s454 + $0x40] sm:$0xff]
                  %465 = vst [vmem:[%s455 + $0x20] sm:$0xff] %v464
                  %v466 = vld [vmem:[%s454 + $0x50] sm:$0xff]
                  %467 = vst [vmem:[%s455 + $0x28] sm:$0xff] %v466
                  %v468 = vld [vmem:[%s454 + $0x60] sm:$0xff]
                  %469 = vst [vmem:[%s455 + $0x30] sm:$0xff] %v468
                  %v470 = vld [vmem:[%s454 + $0x70] sm:$0xff]
                  %471 = vst [vmem:[%s455 + $0x38] sm:$0xff] %v470
                  %v472 = vld [vmem:[%s454 + $0x80] sm:$0xff]
                  %473 = vst [vmem:[%s455 + $0x40] sm:$0xff] %v472
                  %v474 = vld [vmem:[%s454 + $0x90] sm:$0xff]
                  %475 = vst [vmem:[%s455 + $0x48] sm:$0xff] %v474
                  %v476 = vld [vmem:[%s454 + $0xa0] sm:$0xff]
                  %477 = vst [vmem:[%s455 + $0x50] sm:$0xff] %v476
                  %v478 = vld [vmem:[%s454 + $0xb0] sm:$0xff]
                  %479 = vst [vmem:[%s455 + $0x58] sm:$0xff] %v478
                  %v480 = vld [vmem:[%s454 + $0xc0] sm:$0xff]
                  %481 = vst [vmem:[%s455 + $0x60] sm:$0xff] %v480
                  %v482 = vld [vmem:[%s454 + $0xd0] sm:$0xff]
                  %483 = vst [vmem:[%s455 + $0x68] sm:$0xff] %v482
                  %v484 = vld [vmem:[%s454 + $0xe0] sm:$0xff]
                  %485 = vst [vmem:[%s455 + $0x70] sm:$0xff] %v484
                  %v486 = vld [vmem:[%s454 + $0xf0] sm:$0xff]
                  %487 = vst [vmem:[%s455 + $0x78] sm:$0xff] %v486
                  %v488 = vld [vmem:[%s454 + $0x100] sm:$0xff]
                  %489 = vst [vmem:[%s455 + $0x80] sm:$0xff] %v488
                  %v490 = vld [vmem:[%s454 + $0x110] sm:$0xff]
                  %491 = vst [vmem:[%s455 + $0x88] sm:$0xff] %v490
                  %v492 = vld [vmem:[%s454 + $0x120] sm:$0xff]
                  %493 = vst [vmem:[%s455 + $0x90] sm:$0xff] %v492
                  %v494 = vld [vmem:[%s454 + $0x130] sm:$0xff]
                  %495 = vst [vmem:[%s455 + $0x98] sm:$0xff] %v494
                  %v496 = vld [vmem:[%s454 + $0x140] sm:$0xff]
                  %497 = vst [vmem:[%s455 + $0xa0] sm:$0xff] %v496
                  %v498 = vld [vmem:[%s454 + $0x150] sm:$0xff]
                  %499 = vst [vmem:[%s455 + $0xa8] sm:$0xff] %v498
                  %v500 = vld [vmem:[%s454 + $0x160] sm:$0xff]
                  %501 = vst [vmem:[%s455 + $0xb0] sm:$0xff] %v500
                  %v502 = vld [vmem:[%s454 + $0x170] sm:$0xff]
                  %503 = vst [vmem:[%s455 + $0xb8] sm:$0xff] %v502
                  %v504 = vld [vmem:[%s454 + $0x180] sm:$0xff]
                  %505 = vst [vmem:[%s455 + $0xc0] sm:$0xff] %v504
                  %v506 = vld [vmem:[%s454 + $0x190] sm:$0xff]
                  %507 = vst [vmem:[%s455 + $0xc8] sm:$0xff] %v506
                  %v508 = vld [vmem:[%s454 + $0x1a0] sm:$0xff]
                  %509 = vst [vmem:[%s455 + $0xd0] sm:$0xff] %v508
                $region92: #{metasr_forward.3} parent=86 // loop_footer
                  %s453 = sadd.s32 1, %s449
                $region93: #{metasr_forward.3} parent=86 // loop_footer_branch
                  %448 = sbr.rel target = $region89
                $region94: #{metasr_forward.3} parent=86 // loop_exit
                  _
              $region87: #{metasr_forward.3} parent=71 // pred_fallthru
                _
              // Predicated region
              $region95: #{metasr_forward.3} parent=71 // pred_check
                _
              $region96: #{metasr_forward.3} parent=71 // pred_check_branch
                %511 = sbr.rel target = $region98
              $region97: #{metasr_forward.3} parent=71 // pred_region
                _
              $region98: #{metasr_forward.3} parent=71 // pred_fallthru
                _
            $region72: #{metasr_forward.3} parent=67 // pred_fallthru
              _
            // Predicated region
            $region73: #{metasr_forward.3} parent=67 // pred_check
              _
            $region74: #{metasr_forward.3} parent=67 // pred_check_branch
              %382 = sbr.rel target = $region76
            $region75: #{metasr_forward.3} parent=67 // pred_region
              loop: start=0, step=1, limit=1
              $region77: #{metasr_forward.3} parent=75 // loop_pre_header
                _
              $region78: #{metasr_forward.3} parent=75 // loop_header
                %s385 = sphi 0, %s389
                %p386 = scmp.ge.s32.totalorder %s385, 1
                %s390 = sphi %s376, %s376
                %s391 = sphi %s373, %s373
              $region79: #{metasr_forward.3} parent=75 // loop_header_branch
                %388 = sbr.rel (%p386) target = $region83
              $region80: #{metasr_forward.3} parent=75 // loop_body
                %v392 = vld [vmem:[%s390] sm:$0xff]
                %393 = vst [vmem:[%s391] sm:$0xff] %v392
                %v394 = vld [vmem:[%s390 + $0x10] sm:$0xff]
                %395 = vst [vmem:[%s391 + $0x8] sm:$0xff] %v394
                %v396 = vld [vmem:[%s390 + $0x20] sm:$0xff]
                %397 = vst [vmem:[%s391 + $0x10] sm:$0xff] %v396
                %v398 = vld [vmem:[%s390 + $0x30] sm:$0xff]
                %399 = vst [vmem:[%s391 + $0x18] sm:$0xff] %v398
                %v400 = vld [vmem:[%s390 + $0x40] sm:$0xff]
                %401 = vst [vmem:[%s391 + $0x20] sm:$0xff] %v400
                %v402 = vld [vmem:[%s390 + $0x50] sm:$0xff]
                %403 = vst [vmem:[%s391 + $0x28] sm:$0xff] %v402
                %v404 = vld [vmem:[%s390 + $0x60] sm:$0xff]
                %405 = vst [vmem:[%s391 + $0x30] sm:$0xff] %v404
                %v406 = vld [vmem:[%s390 + $0x70] sm:$0xff]
                %407 = vst [vmem:[%s391 + $0x38] sm:$0xff] %v406
                %v408 = vld [vmem:[%s390 + $0x80] sm:$0xff]
                %409 = vst [vmem:[%s391 + $0x40] sm:$0xff] %v408
                %v410 = vld [vmem:[%s390 + $0x90] sm:$0xff]
                %411 = vst [vmem:[%s391 + $0x48] sm:$0xff] %v410
                %v412 = vld [vmem:[%s390 + $0xa0] sm:$0xff]
                %413 = vst [vmem:[%s391 + $0x50] sm:$0xff] %v412
                %v414 = vld [vmem:[%s390 + $0xb0] sm:$0xff]
                %415 = vst [vmem:[%s391 + $0x58] sm:$0xff] %v414
                %v416 = vld [vmem:[%s390 + $0xc0] sm:$0xff]
                %417 = vst [vmem:[%s391 + $0x60] sm:$0xff] %v416
                %v418 = vld [vmem:[%s390 + $0xd0] sm:$0xff]
                %419 = vst [vmem:[%s391 + $0x68] sm:$0xff] %v418
                %v420 = vld [vmem:[%s390 + $0xe0] sm:$0xff]
                %421 = vst [vmem:[%s391 + $0x70] sm:$0xff] %v420
                %v422 = vld [vmem:[%s390 + $0xf0] sm:$0xff]
                %423 = vst [vmem:[%s391 + $0x78] sm:$0xff] %v422
                %v424 = vld [vmem:[%s390 + $0x100] sm:$0xff]
                %425 = vst [vmem:[%s391 + $0x80] sm:$0xff] %v424
                %v426 = vld [vmem:[%s390 + $0x110] sm:$0xff]
                %427 = vst [vmem:[%s391 + $0x88] sm:$0xff] %v426
                %v428 = vld [vmem:[%s390 + $0x120] sm:$0xff]
                %429 = vst [vmem:[%s391 + $0x90] sm:$0xff] %v428
                %v430 = vld [vmem:[%s390 + $0x130] sm:$0xff]
                %431 = vst [vmem:[%s391 + $0x98] sm:$0xff] %v430
                %v432 = vld [vmem:[%s390 + $0x140] sm:$0xff]
                %433 = vst [vmem:[%s391 + $0xa0] sm:$0xff] %v432
                %v434 = vld [vmem:[%s390 + $0x150] sm:$0xff]
                %435 = vst [vmem:[%s391 + $0xa8] sm:$0xff] %v434
                %v436 = vld [vmem:[%s390 + $0x160] sm:$0xff]
                %437 = vst [vmem:[%s391 + $0xb0] sm:$0xff] %v436
                %v438 = vld [vmem:[%s390 + $0x170] sm:$0xff]
                %439 = vst [vmem:[%s391 + $0xb8] sm:$0xff] %v438
                %v440 = vld [vmem:[%s390 + $0x180] sm:$0xff]
                %441 = vst [vmem:[%s391 + $0xc0] sm:$0xff] %v440
                %v442 = vld [vmem:[%s390 + $0x190] sm:$0xff]
                %443 = vst [vmem:[%s391 + $0xc8] sm:$0xff] %v442
                %v444 = vld [vmem:[%s390 + $0x1a0] sm:$0xff]
                %445 = vst [vmem:[%s391 + $0xd0] sm:$0xff] %v444
              $region81: #{metasr_forward.3} parent=75 // loop_footer
                %s389 = sadd.s32 1, %s385
              $region82: #{metasr_forward.3} parent=75 // loop_footer_branch
                %384 = sbr.rel target = $region78
              $region83: #{metasr_forward.3} parent=75 // loop_exit
                _
            $region76: #{metasr_forward.3} parent=67 // pred_fallthru
              _
          $region68: #{metasr_forward.3} parent=63 // pred_fallthru
            _
          %512 = vnop
        $region64: #{metasr_forward.3} parent=55 // pred_fallthru
          _
      $region56: #{metasr_forward.3} parent=5 // pred_fallthru
        _
      %p513 = scmp.le.s32.totalorder 1, %s21
      %p514 = scmp.lt.s32.totalorder %s21, 3
      %p515 = pnand %p513, %p514
      %p516 = pneg %p515
      // Predicated region
      $region99: #{metasr_forward.3} parent=5 // pred_check
        _
      $region100: #{metasr_forward.3} parent=5 // pred_check_branch
        %518 = sbr.rel (%p515) target = $region102
      $region101: #{metasr_forward.3} parent=5 // pred_region
        %s519 = ssub.s32 %s21, 1
        %s520 = sand.u32 %s60, 1
        %s521 = sand.u32 %s60, 1
        %s522 = smul.addr %s521, 216
        %s523 = scalar_lea.vmem [#allocation2], %s522
        // Predicated region
        $region103: #{metasr_forward.3} parent=101 // pred_check
          %p524 = pneg %p73
        $region104: #{metasr_forward.3} parent=101 // pred_check_branch
          %526 = sbr.rel (%p524) target = $region106
        $region105: #{metasr_forward.3} parent=101 // pred_region
          _
        $region106: #{metasr_forward.3} parent=101 // pred_fallthru
          _
        %s527 = smul.u32 2, %s26
        %p528 = scmp.lt.s32.totalorder %s527, 3
        %s529 = scalar_select %p528, %s527, 3
        %s530 = smul.addr %s529, 4
        %s531 = scalar_lea.vmem %s0, %s530
        %p532 = pneg %p47
        %p533 = pneg %p44
        %s534 = sand.u32 %s60, 1
        %s535 = sand.u32 %s60, 1
        %s536 = smul.addr %s535, 216
        %s537 = scalar_lea.vmem [#allocation2], %s536
        %p538 = pneg %p73
        %p539 = pneg %p70
        %p540 = pneg %p94
        %p541 = pneg %p91
        %p542 = pneg %p115
        %p543 = pneg %p112
        %p544 = pneg %p136
        %p545 = pneg %p133
        %p546 = pneg %p157
        %p547 = pneg %p154
        %p548 = pneg %p178
        %p549 = pneg %p175
        %p550 = pneg %p199
        %p551 = pneg %p196
        %p552 = pneg %p220
        %p553 = pneg %p217
        %p554 = pneg %p241
        %p555 = pneg %p238
        %p556 = pneg %p262
        %p557 = pneg %p259
        %p558 = pneg %p283
        %p559 = pneg %p280
        %p560 = pneg %p309
        %p561 = pneg %p306
        %s562 = sand.u32 %s296, 1
        %s563 = scalar_lea.sflag [#allocation4], %s562
        %s564 = sand.u32 %s296, 1
        %s565 = smul.addr %s564, 2
        %s566 = scalar_lea.vmem [#allocation3], %s565
        %s567 = smul.u32 2, %s26
        %p568 = scmp.lt.s32.totalorder %s567, 3
        %s569 = scalar_select %p568, %s567, 3
        %s570 = smul.addr %s569, 4
        %s571 = scalar_lea.vmem %s0, %s570
        %s572 = smul.u32 2, %s26
        %s573 = smul.u32 2, %s26
        %s574 = smul.u32 2, %s26
        %v575 = vld [vmem:[%s571] sm:$0xff]
        %v576 = vld [vmem:[%s2] sm:$0xff]
        %v577 = vld [vmem:[%s2 + $0x8] sm:$0xff]
        %v578 = vld [vmem:[%s2 + $0x10] sm:$0xff]
        %v579 = vld [vmem:[%s2 + $0x18] sm:$0xff]
        %v580 = vld [vmem:[%s2 + $0x20] sm:$0xff]
        %v581 = vld [vmem:[%s2 + $0x28] sm:$0xff]
        %v582 = vld [vmem:[%s2 + $0x30] sm:$0xff]
        %v583 = vld [vmem:[%s2 + $0x38] sm:$0xff]
        %v584 = vld [vmem:[%s2 + $0x40] sm:$0xff]
        %v585 = vld [vmem:[%s2 + $0x48] sm:$0xff]
        %v586 = vld [vmem:[%s2 + $0x50] sm:$0xff]
        %v587 = vld [vmem:[%s2 + $0x58] sm:$0xff]
        %v588 = vld [vmem:[%s2 + $0x60] sm:$0xff]
        %v589 = vld [vmem:[%s2 + $0x68] sm:$0xff]
        %v590 = vld [vmem:[%s2 + $0x70] sm:$0xff]
        %v591 = vld [vmem:[%s2 + $0x78] sm:$0xff]
        %v592 = vld [vmem:[%s2 + $0x80] sm:$0xff]
        %v593 = vld [vmem:[%s2 + $0x88] sm:$0xff]
        %v594 = vld [vmem:[%s2 + $0x90] sm:$0xff]
        %v595 = vld [vmem:[%s2 + $0x98] sm:$0xff]
        %v596 = vld [vmem:[%s2 + $0xa0] sm:$0xff]
        %v597 = vld [vmem:[%s2 + $0xa8] sm:$0xff]
        %v598 = vld [vmem:[%s2 + $0xb0] sm:$0xff]
        %v599 = vld [vmem:[%s2 + $0xb8] sm:$0xff]
        %v600 = vld [vmem:[%s2 + $0xc0] sm:$0xff]
        %v601 = vld [vmem:[%s2 + $0xc8] sm:$0xff]
        %v602 = vld [vmem:[%s2 + $0xd0] sm:$0xff]
        %v603 = vld [vmem:[%s2 + $0xd8] sm:$0xff]
        %v604 = vld [vmem:[%s2 + $0xe0] sm:$0xff]
        %v605 = vld [vmem:[%s2 + $0xe8] sm:$0xff]
        %v606 = vld [vmem:[%s2 + $0xf0] sm:$0xff]
        %v607 = vld [vmem:[%s2 + $0xf8] sm:$0xff]
        %609 = vset.pattern.permute.xlu0 0
        %610 = vperm.xlu0 %609, %v576
        %v611 = vpop.permute.xlu0 %610
        %614 = vset.pattern.permute.xlu0 0
        %615 = vperm.xlu0 %614, %v577
        %v616 = vpop.permute.xlu0 %615
        %619 = vset.pattern.permute.xlu0 0
        %620 = vperm.xlu0 %619, %v578
        %v621 = vpop.permute.xlu0 %620
        %624 = vset.pattern.permute.xlu0 0
        %625 = vperm.xlu0 %624, %v579
        %v626 = vpop.permute.xlu0 %625
        %629 = vset.pattern.permute.xlu0 0
        %630 = vperm.xlu0 %629, %v580
        %v631 = vpop.permute.xlu0 %630
        %634 = vset.pattern.permute.xlu0 0
        %635 = vperm.xlu0 %634, %v581
        %v636 = vpop.permute.xlu0 %635
        %639 = vset.pattern.permute.xlu0 0
        %640 = vperm.xlu0 %639, %v582
        %v641 = vpop.permute.xlu0 %640
        %644 = vset.pattern.permute.xlu0 0
        %645 = vperm.xlu0 %644, %v583
        %v646 = vpop.permute.xlu0 %645
        %649 = vset.pattern.permute.xlu0 0
        %650 = vperm.xlu0 %649, %v584
        %v651 = vpop.permute.xlu0 %650
        %654 = vset.pattern.permute.xlu0 0
        %655 = vperm.xlu0 %654, %v585
        %v656 = vpop.permute.xlu0 %655
        %659 = vset.pattern.permute.xlu0 0
        %660 = vperm.xlu0 %659, %v586
        %v661 = vpop.permute.xlu0 %660
        %664 = vset.pattern.permute.xlu0 0
        %665 = vperm.xlu0 %664, %v587
        %v666 = vpop.permute.xlu0 %665
        %669 = vset.pattern.permute.xlu0 0
        %670 = vperm.xlu0 %669, %v588
        %v671 = vpop.permute.xlu0 %670
        %674 = vset.pattern.permute.xlu0 0
        %675 = vperm.xlu0 %674, %v589
        %v676 = vpop.permute.xlu0 %675
        %679 = vset.pattern.permute.xlu0 0
        %680 = vperm.xlu0 %679, %v590
        %v681 = vpop.permute.xlu0 %680
        %684 = vset.pattern.permute.xlu0 0
        %685 = vperm.xlu0 %684, %v591
        %v686 = vpop.permute.xlu0 %685
        %689 = vset.pattern.permute.xlu0 0
        %690 = vperm.xlu0 %689, %v592
        %v691 = vpop.permute.xlu0 %690
        %694 = vset.pattern.permute.xlu0 0
        %695 = vperm.xlu0 %694, %v593
        %v696 = vpop.permute.xlu0 %695
        %699 = vset.pattern.permute.xlu0 0
        %700 = vperm.xlu0 %699, %v594
        %v701 = vpop.permute.xlu0 %700
        %704 = vset.pattern.permute.xlu0 0
        %705 = vperm.xlu0 %704, %v595
        %v706 = vpop.permute.xlu0 %705
        %709 = vset.pattern.permute.xlu0 0
        %710 = vperm.xlu0 %709, %v596
        %v711 = vpop.permute.xlu0 %710
        %714 = vset.pattern.permute.xlu0 0
        %715 = vperm.xlu0 %714, %v597
        %v716 = vpop.permute.xlu0 %715
        %719 = vset.pattern.permute.xlu0 0
        %720 = vperm.xlu0 %719, %v598
        %v721 = vpop.permute.xlu0 %720
        %724 = vset.pattern.permute.xlu0 0
        %725 = vperm.xlu0 %724, %v599
        %v726 = vpop.permute.xlu0 %725
        %729 = vset.pattern.permute.xlu0 0
        %730 = vperm.xlu0 %729, %v600
        %v731 = vpop.permute.xlu0 %730
        %734 = vset.pattern.permute.xlu0 0
        %735 = vperm.xlu0 %734, %v601
        %v736 = vpop.permute.xlu0 %735
        %739 = vset.pattern.permute.xlu0 0
        %740 = vperm.xlu0 %739, %v602
        %v741 = vpop.permute.xlu0 %740
        %744 = vset.pattern.permute.xlu0 0
        %745 = vperm.xlu0 %744, %v603
        %v746 = vpop.permute.xlu0 %745
        %749 = vset.pattern.permute.xlu0 0
        %750 = vperm.xlu0 %749, %v604
        %v751 = vpop.permute.xlu0 %750
        %754 = vset.pattern.permute.xlu0 0
        %755 = vperm.xlu0 %754, %v605
        %v756 = vpop.permute.xlu0 %755
        %759 = vset.pattern.permute.xlu0 0
        %760 = vperm.xlu0 %759, %v606
        %v761 = vpop.permute.xlu0 %760
        %764 = vset.pattern.permute.xlu0 0
        %765 = vperm.xlu0 %764, %v607
        %v766 = vpop.permute.xlu0 %765
        %v769 = vlaneseq
        %v770 = vshrl.u32 %v769, 7
        %v771 = vsub.s32 0, %v770
        %v772 = vrot.slane %v575, %v771
        %v773 = vlaneseq
        %v774 = vshrl.u32 %v773, 7
        %v775 = vsub.s32 4, %v774
        %v776 = vrot.slane %v575, %v775
        %v779 = vlaneseq
        %v780 = vshrl.u32 %v779, 7
        %v781 = vsub.s32 0, %v780
        %v782 = vrot.slane %v772, %v781
        %v783 = vlaneseq
        %v784 = vshrl.u32 %v783, 7
        %v785 = vsub.s32 0, %v784
        %v786 = vrot.slane %v776, %v785
        %v787 = vmul.f32 %v611, %v782
        %v788 = vmul.f32 %v611, %v786
        %v789 = vmul.f32 %v616, %v782
        %v790 = vmul.f32 %v616, %v786
        %v791 = vmul.f32 %v621, %v782
        %v792 = vmul.f32 %v621, %v786
        %v793 = vmul.f32 %v626, %v782
        %v794 = vmul.f32 %v626, %v786
        %v795 = vmul.f32 %v631, %v782
        %v796 = vmul.f32 %v631, %v786
        %v797 = vmul.f32 %v636, %v782
        %v798 = vmul.f32 %v636, %v786
        %v799 = vmul.f32 %v641, %v782
        %v800 = vmul.f32 %v641, %v786
        %v801 = vmul.f32 %v646, %v782
        %v802 = vmul.f32 %v646, %v786
        %v803 = vmul.f32 %v651, %v782
        %v804 = vmul.f32 %v651, %v786
        %v805 = vmul.f32 %v656, %v782
        %v806 = vmul.f32 %v656, %v786
        %v807 = vmul.f32 %v661, %v782
        %v808 = vmul.f32 %v661, %v786
        %v809 = vmul.f32 %v666, %v782
        %v810 = vmul.f32 %v666, %v786
        %v811 = vmul.f32 %v671, %v782
        %v812 = vmul.f32 %v671, %v786
        %v813 = vmul.f32 %v676, %v782
        %v814 = vmul.f32 %v676, %v786
        %v815 = vmul.f32 %v681, %v782
        %v816 = vmul.f32 %v681, %v786
        %v817 = vmul.f32 %v686, %v782
        %v818 = vmul.f32 %v686, %v786
        %v819 = vmul.f32 %v691, %v782
        %v820 = vmul.f32 %v691, %v786
        %v821 = vmul.f32 %v696, %v782
        %v822 = vmul.f32 %v696, %v786
        %v823 = vmul.f32 %v701, %v782
        %v824 = vmul.f32 %v701, %v786
        %v825 = vmul.f32 %v706, %v782
        %v826 = vmul.f32 %v706, %v786
        %v827 = vmul.f32 %v711, %v782
        %v828 = vmul.f32 %v711, %v786
        %v829 = vmul.f32 %v716, %v782
        %v830 = vmul.f32 %v716, %v786
        %v831 = vmul.f32 %v721, %v782
        %v832 = vmul.f32 %v721, %v786
        %v833 = vmul.f32 %v726, %v782
        %v834 = vmul.f32 %v726, %v786
        %v835 = vmul.f32 %v731, %v782
        %v836 = vmul.f32 %v731, %v786
        %v837 = vmul.f32 %v736, %v782
        %v838 = vmul.f32 %v736, %v786
        %v839 = vmul.f32 %v741, %v782
        %v840 = vmul.f32 %v741, %v786
        %v841 = vmul.f32 %v746, %v782
        %v842 = vmul.f32 %v746, %v786
        %v843 = vmul.f32 %v751, %v782
        %v844 = vmul.f32 %v751, %v786
        %v845 = vmul.f32 %v756, %v782
        %v846 = vmul.f32 %v756, %v786
        %v847 = vmul.f32 %v761, %v782
        %v848 = vmul.f32 %v761, %v786
        %v849 = vmul.f32 %v766, %v782
        %v850 = vmul.f32 %v766, %v786
        %851 = vset.pattern.permute.xlu0 1
        %852 = vperm.xlu0 %851, %v576
        %v853 = vpop.permute.xlu0 %852
        %855 = vset.pattern.permute.xlu0 1
        %856 = vperm.xlu0 %855, %v577
        %v857 = vpop.permute.xlu0 %856
        %859 = vset.pattern.permute.xlu0 1
        %860 = vperm.xlu0 %859, %v578
        %v861 = vpop.permute.xlu0 %860
        %863 = vset.pattern.permute.xlu0 1
        %864 = vperm.xlu0 %863, %v579
        %v865 = vpop.permute.xlu0 %864
        %867 = vset.pattern.permute.xlu0 1
        %868 = vperm.xlu0 %867, %v580
        %v869 = vpop.permute.xlu0 %868
        %871 = vset.pattern.permute.xlu0 1
        %872 = vperm.xlu0 %871, %v581
        %v873 = vpop.permute.xlu0 %872
        %875 = vset.pattern.permute.xlu0 1
        %876 = vperm.xlu0 %875, %v582
        %v877 = vpop.permute.xlu0 %876
        %879 = vset.pattern.permute.xlu0 1
        %880 = vperm.xlu0 %879, %v583
        %v881 = vpop.permute.xlu0 %880
        %883 = vset.pattern.permute.xlu0 1
        %884 = vperm.xlu0 %883, %v584
        %v885 = vpop.permute.xlu0 %884
        %887 = vset.pattern.permute.xlu0 1
        %888 = vperm.xlu0 %887, %v585
        %v889 = vpop.permute.xlu0 %888
        %891 = vset.pattern.permute.xlu0 1
        %892 = vperm.xlu0 %891, %v586
        %v893 = vpop.permute.xlu0 %892
        %895 = vset.pattern.permute.xlu0 1
        %896 = vperm.xlu0 %895, %v587
        %v897 = vpop.permute.xlu0 %896
        %899 = vset.pattern.permute.xlu0 1
        %900 = vperm.xlu0 %899, %v588
        %v901 = vpop.permute.xlu0 %900
        %903 = vset.pattern.permute.xlu0 1
        %904 = vperm.xlu0 %903, %v589
        %v905 = vpop.permute.xlu0 %904
        %907 = vset.pattern.permute.xlu0 1
        %908 = vperm.xlu0 %907, %v590
        %v909 = vpop.permute.xlu0 %908
        %911 = vset.pattern.permute.xlu0 1
        %912 = vperm.xlu0 %911, %v591
        %v913 = vpop.permute.xlu0 %912
        %915 = vset.pattern.permute.xlu0 1
        %916 = vperm.xlu0 %915, %v592
        %v917 = vpop.permute.xlu0 %916
        %919 = vset.pattern.permute.xlu0 1
        %920 = vperm.xlu0 %919, %v593
        %v921 = vpop.permute.xlu0 %920
        %923 = vset.pattern.permute.xlu0 1
        %924 = vperm.xlu0 %923, %v594
        %v925 = vpop.permute.xlu0 %924
        %927 = vset.pattern.permute.xlu0 1
        %928 = vperm.xlu0 %927, %v595
        %v929 = vpop.permute.xlu0 %928
        %931 = vset.pattern.permute.xlu0 1
        %932 = vperm.xlu0 %931, %v596
        %v933 = vpop.permute.xlu0 %932
        %935 = vset.pattern.permute.xlu0 1
        %936 = vperm.xlu0 %935, %v597
        %v937 = vpop.permute.xlu0 %936
        %939 = vset.pattern.permute.xlu0 1
        %940 = vperm.xlu0 %939, %v598
        %v941 = vpop.permute.xlu0 %940
        %943 = vset.pattern.permute.xlu0 1
        %944 = vperm.xlu0 %943, %v599
        %v945 = vpop.permute.xlu0 %944
        %947 = vset.pattern.permute.xlu0 1
        %948 = vperm.xlu0 %947, %v600
        %v949 = vpop.permute.xlu0 %948
        %951 = vset.pattern.permute.xlu0 1
        %952 = vperm.xlu0 %951, %v601
        %v953 = vpop.permute.xlu0 %952
        %955 = vset.pattern.permute.xlu0 1
        %956 = vperm.xlu0 %955, %v602
        %v957 = vpop.permute.xlu0 %956
        %959 = vset.pattern.permute.xlu0 1
        %960 = vperm.xlu0 %959, %v603
        %v961 = vpop.permute.xlu0 %960
        %963 = vset.pattern.permute.xlu0 1
        %964 = vperm.xlu0 %963, %v604
        %v965 = vpop.permute.xlu0 %964
        %967 = vset.pattern.permute.xlu0 1
        %968 = vperm.xlu0 %967, %v605
        %v969 = vpop.permute.xlu0 %968
        %971 = vset.pattern.permute.xlu0 1
        %972 = vperm.xlu0 %971, %v606
        %v973 = vpop.permute.xlu0 %972
        %975 = vset.pattern.permute.xlu0 1
        %976 = vperm.xlu0 %975, %v607
        %v977 = vpop.permute.xlu0 %976
        %v979 = vlaneseq
        %v980 = vshrl.u32 %v979, 7
        %v981 = vsub.s32 1, %v980
        %v982 = vrot.slane %v575, %v981
        %v983 = vlaneseq
        %v984 = vshrl.u32 %v983, 7
        %v985 = vsub.s32 5, %v984
        %v986 = vrot.slane %v575, %v985
        %v989 = vlaneseq
        %v990 = vshrl.u32 %v989, 7
        %v991 = vsub.s32 1, %v990
        %v992 = vrot.slane %v982, %v991
        %v993 = vlaneseq
        %v994 = vshrl.u32 %v993, 7
        %v995 = vsub.s32 1, %v994
        %v996 = vrot.slane %v986, %v995
        %v997 = vmul.f32 %v853, %v992
        %v998 = vmul.f32 %v853, %v996
        %v999 = vmul.f32 %v857, %v992
        %v1000 = vmul.f32 %v857, %v996
        %v1001 = vmul.f32 %v861, %v992
        %v1002 = vmul.f32 %v861, %v996
        %v1003 = vmul.f32 %v865, %v992
        %v1004 = vmul.f32 %v865, %v996
        %v1005 = vmul.f32 %v869, %v992
        %v1006 = vmul.f32 %v869, %v996
        %v1007 = vmul.f32 %v873, %v992
        %v1008 = vmul.f32 %v873, %v996
        %v1009 = vmul.f32 %v877, %v992
        %v1010 = vmul.f32 %v877, %v996
        %v1011 = vmul.f32 %v881, %v992
        %v1012 = vmul.f32 %v881, %v996
        %v1013 = vmul.f32 %v885, %v992
        %v1014 = vmul.f32 %v885, %v996
        %v1015 = vmul.f32 %v889, %v992
        %v1016 = vmul.f32 %v889, %v996
        %v1017 = vmul.f32 %v893, %v992
        %v1018 = vmul.f32 %v893, %v996
        %v1019 = vmul.f32 %v897, %v992
        %v1020 = vmul.f32 %v897, %v996
        %v1021 = vmul.f32 %v901, %v992
        %v1022 = vmul.f32 %v901, %v996
        %v1023 = vmul.f32 %v905, %v992
        %v1024 = vmul.f32 %v905, %v996
        %v1025 = vmul.f32 %v909, %v992
        %v1026 = vmul.f32 %v909, %v996
        %v1027 = vmul.f32 %v913, %v992
        %v1028 = vmul.f32 %v913, %v996
        %v1029 = vmul.f32 %v917, %v992
        %v1030 = vmul.f32 %v917, %v996
        %v1031 = vmul.f32 %v921, %v992
        %v1032 = vmul.f32 %v921, %v996
        %v1033 = vmul.f32 %v925, %v992
        %v1034 = vmul.f32 %v925, %v996
        %v1035 = vmul.f32 %v929, %v992
        %v1036 = vmul.f32 %v929, %v996
        %v1037 = vmul.f32 %v933, %v992
        %v1038 = vmul.f32 %v933, %v996
        %v1039 = vmul.f32 %v937, %v992
        %v1040 = vmul.f32 %v937, %v996
        %v1041 = vmul.f32 %v941, %v992
        %v1042 = vmul.f32 %v941, %v996
        %v1043 = vmul.f32 %v945, %v992
        %v1044 = vmul.f32 %v945, %v996
        %v1045 = vmul.f32 %v949, %v992
        %v1046 = vmul.f32 %v949, %v996
        %v1047 = vmul.f32 %v953, %v992
        %v1048 = vmul.f32 %v953, %v996
        %v1049 = vmul.f32 %v957, %v992
        %v1050 = vmul.f32 %v957, %v996
        %v1051 = vmul.f32 %v961, %v992
        %v1052 = vmul.f32 %v961, %v996
        %v1053 = vmul.f32 %v965, %v992
        %v1054 = vmul.f32 %v965, %v996
        %v1055 = vmul.f32 %v969, %v992
        %v1056 = vmul.f32 %v969, %v996
        %v1057 = vmul.f32 %v973, %v992
        %v1058 = vmul.f32 %v973, %v996
        %v1059 = vmul.f32 %v977, %v992
        %v1060 = vmul.f32 %v977, %v996
        %v1061 = vadd.f32 %v787, %v997
        %v1062 = vadd.f32 %v788, %v998
        %v1063 = vadd.f32 %v789, %v999
        %v1064 = vadd.f32 %v790, %v1000
        %v1065 = vadd.f32 %v791, %v1001
        %v1066 = vadd.f32 %v792, %v1002
        %v1067 = vadd.f32 %v793, %v1003
        %v1068 = vadd.f32 %v794, %v1004
        %v1069 = vadd.f32 %v795, %v1005
        %v1070 = vadd.f32 %v796, %v1006
        %v1071 = vadd.f32 %v797, %v1007
        %v1072 = vadd.f32 %v798, %v1008
        %v1073 = vadd.f32 %v799, %v1009
        %v1074 = vadd.f32 %v800, %v1010
        %v1075 = vadd.f32 %v801, %v1011
        %v1076 = vadd.f32 %v802, %v1012
        %v1077 = vadd.f32 %v803, %v1013
        %v1078 = vadd.f32 %v804, %v1014
        %v1079 = vadd.f32 %v805, %v1015
        %v1080 = vadd.f32 %v806, %v1016
        %v1081 = vadd.f32 %v807, %v1017
        %v1082 = vadd.f32 %v808, %v1018
        %v1083 = vadd.f32 %v809, %v1019
        %v1084 = vadd.f32 %v810, %v1020
        %v1085 = vadd.f32 %v811, %v1021
        %v1086 = vadd.f32 %v812, %v1022
        %v1087 = vadd.f32 %v813, %v1023
        %v1088 = vadd.f32 %v814, %v1024
        %v1089 = vadd.f32 %v815, %v1025
        %v1090 = vadd.f32 %v816, %v1026
        %v1091 = vadd.f32 %v817, %v1027
        %v1092 = vadd.f32 %v818, %v1028
        %v1093 = vadd.f32 %v819, %v1029
        %v1094 = vadd.f32 %v820, %v1030
        %v1095 = vadd.f32 %v821, %v1031
        %v1096 = vadd.f32 %v822, %v1032
        %v1097 = vadd.f32 %v823, %v1033
        %v1098 = vadd.f32 %v824, %v1034
        %v1099 = vadd.f32 %v825, %v1035
        %v1100 = vadd.f32 %v826, %v1036
        %v1101 = vadd.f32 %v827, %v1037
        %v1102 = vadd.f32 %v828, %v1038
        %v1103 = vadd.f32 %v829, %v1039
        %v1104 = vadd.f32 %v830, %v1040
        %v1105 = vadd.f32 %v831, %v1041
        %v1106 = vadd.f32 %v832, %v1042
        %v1107 = vadd.f32 %v833, %v1043
        %v1108 = vadd.f32 %v834, %v1044
        %v1109 = vadd.f32 %v835, %v1045
        %v1110 = vadd.f32 %v836, %v1046
        %v1111 = vadd.f32 %v837, %v1047
        %v1112 = vadd.f32 %v838, %v1048
        %v1113 = vadd.f32 %v839, %v1049
        %v1114 = vadd.f32 %v840, %v1050
        %v1115 = vadd.f32 %v841, %v1051
        %v1116 = vadd.f32 %v842, %v1052
        %v1117 = vadd.f32 %v843, %v1053
        %v1118 = vadd.f32 %v844, %v1054
        %v1119 = vadd.f32 %v845, %v1055
        %v1120 = vadd.f32 %v846, %v1056
        %v1121 = vadd.f32 %v847, %v1057
        %v1122 = vadd.f32 %v848, %v1058
        %v1123 = vadd.f32 %v849, %v1059
        %v1124 = vadd.f32 %v850, %v1060
        %1125 = vset.pattern.permute.xlu0 2
        %1126 = vperm.xlu0 %1125, %v576
        %v1127 = vpop.permute.xlu0 %1126
        %1129 = vset.pattern.permute.xlu0 2
        %1130 = vperm.xlu0 %1129, %v577
        %v1131 = vpop.permute.xlu0 %1130
        %1133 = vset.pattern.permute.xlu0 2
        %1134 = vperm.xlu0 %1133, %v578
        %v1135 = vpop.permute.xlu0 %1134
        %1137 = vset.pattern.permute.xlu0 2
        %1138 = vperm.xlu0 %1137, %v579
        %v1139 = vpop.permute.xlu0 %1138
        %1141 = vset.pattern.permute.xlu0 2
        %1142 = vperm.xlu0 %1141, %v580
        %v1143 = vpop.permute.xlu0 %1142
        %1145 = vset.pattern.permute.xlu0 2
        %1146 = vperm.xlu0 %1145, %v581
        %v1147 = vpop.permute.xlu0 %1146
        %1149 = vset.pattern.permute.xlu0 2
        %1150 = vperm.xlu0 %1149, %v582
        %v1151 = vpop.permute.xlu0 %1150
        %1153 = vset.pattern.permute.xlu0 2
        %1154 = vperm.xlu0 %1153, %v583
        %v1155 = vpop.permute.xlu0 %1154
        %1157 = vset.pattern.permute.xlu0 2
        %1158 = vperm.xlu0 %1157, %v584
        %v1159 = vpop.permute.xlu0 %1158
        %1161 = vset.pattern.permute.xlu0 2
        %1162 = vperm.xlu0 %1161, %v585
        %v1163 = vpop.permute.xlu0 %1162
        %1165 = vset.pattern.permute.xlu0 2
        %1166 = vperm.xlu0 %1165, %v586
        %v1167 = vpop.permute.xlu0 %1166
        %1169 = vset.pattern.permute.xlu0 2
        %1170 = vperm.xlu0 %1169, %v587
        %v1171 = vpop.permute.xlu0 %1170
        %1173 = vset.pattern.permute.xlu0 2
        %1174 = vperm.xlu0 %1173, %v588
        %v1175 = vpop.permute.xlu0 %1174
        %1177 = vset.pattern.permute.xlu0 2
        %1178 = vperm.xlu0 %1177, %v589
        %v1179 = vpop.permute.xlu0 %1178
        %1181 = vset.pattern.permute.xlu0 2
        %1182 = vperm.xlu0 %1181, %v590
        %v1183 = vpop.permute.xlu0 %1182
        %1185 = vset.pattern.permute.xlu0 2
        %1186 = vperm.xlu0 %1185, %v591
        %v1187 = vpop.permute.xlu0 %1186
        %1189 = vset.pattern.permute.xlu0 2
        %1190 = vperm.xlu0 %1189, %v592
        %v1191 = vpop.permute.xlu0 %1190
        %1193 = vset.pattern.permute.xlu0 2
        %1194 = vperm.xlu0 %1193, %v593
        %v1195 = vpop.permute.xlu0 %1194
        %1197 = vset.pattern.permute.xlu0 2
        %1198 = vperm.xlu0 %1197, %v594
        %v1199 = vpop.permute.xlu0 %1198
        %1201 = vset.pattern.permute.xlu0 2
        %1202 = vperm.xlu0 %1201, %v595
        %v1203 = vpop.permute.xlu0 %1202
        %1205 = vset.pattern.permute.xlu0 2
        %1206 = vperm.xlu0 %1205, %v596
        %v1207 = vpop.permute.xlu0 %1206
        %1209 = vset.pattern.permute.xlu0 2
        %1210 = vperm.xlu0 %1209, %v597
        %v1211 = vpop.permute.xlu0 %1210
        %1213 = vset.pattern.permute.xlu0 2
        %1214 = vperm.xlu0 %1213, %v598
        %v1215 = vpop.permute.xlu0 %1214
        %1217 = vset.pattern.permute.xlu0 2
        %1218 = vperm.xlu0 %1217, %v599
        %v1219 = vpop.permute.xlu0 %1218
        %1221 = vset.pattern.permute.xlu0 2
        %1222 = vperm.xlu0 %1221, %v600
        %v1223 = vpop.permute.xlu0 %1222
        %1225 = vset.pattern.permute.xlu0 2
        %1226 = vperm.xlu0 %1225, %v601
        %v1227 = vpop.permute.xlu0 %1226
        %1229 = vset.pattern.permute.xlu0 2
        %1230 = vperm.xlu0 %1229, %v602
        %v1231 = vpop.permute.xlu0 %1230
        %1233 = vset.pattern.permute.xlu0 2
        %1234 = vperm.xlu0 %1233, %v603
        %v1235 = vpop.permute.xlu0 %1234
        %1237 = vset.pattern.permute.xlu0 2
        %1238 = vperm.xlu0 %1237, %v604
        %v1239 = vpop.permute.xlu0 %1238
        %1241 = vset.pattern.permute.xlu0 2
        %1242 = vperm.xlu0 %1241, %v605
        %v1243 = vpop.permute.xlu0 %1242
        %1245 = vset.pattern.permute.xlu0 2
        %1246 = vperm.xlu0 %1245, %v606
        %v1247 = vpop.permute.xlu0 %1246
        %1249 = vset.pattern.permute.xlu0 2
        %1250 = vperm.xlu0 %1249, %v607
        %v1251 = vpop.permute.xlu0 %1250
        %v1253 = vlaneseq
        %v1254 = vshrl.u32 %v1253, 7
        %v1255 = vsub.s32 2, %v1254
        %v1256 = vrot.slane %v575, %v1255
        %v1257 = vlaneseq
        %v1258 = vshrl.u32 %v1257, 7
        %v1259 = vsub.s32 6, %v1258
        %v1260 = vrot.slane %v575, %v1259
        %v1263 = vlaneseq
        %v1264 = vshrl.u32 %v1263, 7
        %v1265 = vsub.s32 2, %v1264
        %v1266 = vrot.slane %v1256, %v1265
        %v1267 = vlaneseq
        %v1268 = vshrl.u32 %v1267, 7
        %v1269 = vsub.s32 2, %v1268
        %v1270 = vrot.slane %v1260, %v1269
        %v1271 = vmul.f32 %v1127, %v1266
        %v1272 = vmul.f32 %v1127, %v1270
        %v1273 = vmul.f32 %v1131, %v1266
        %v1274 = vmul.f32 %v1131, %v1270
        %v1275 = vmul.f32 %v1135, %v1266
        %v1276 = vmul.f32 %v1135, %v1270
        %v1277 = vmul.f32 %v1139, %v1266
        %v1278 = vmul.f32 %v1139, %v1270
        %v1279 = vmul.f32 %v1143, %v1266
        %v1280 = vmul.f32 %v1143, %v1270
        %v1281 = vmul.f32 %v1147, %v1266
        %v1282 = vmul.f32 %v1147, %v1270
        %v1283 = vmul.f32 %v1151, %v1266
        %v1284 = vmul.f32 %v1151, %v1270
        %v1285 = vmul.f32 %v1155, %v1266
        %v1286 = vmul.f32 %v1155, %v1270
        %v1287 = vmul.f32 %v1159, %v1266
        %v1288 = vmul.f32 %v1159, %v1270
        %v1289 = vmul.f32 %v1163, %v1266
        %v1290 = vmul.f32 %v1163, %v1270
        %v1291 = vmul.f32 %v1167, %v1266
        %v1292 = vmul.f32 %v1167, %v1270
        %v1293 = vmul.f32 %v1171, %v1266
        %v1294 = vmul.f32 %v1171, %v1270
        %v1295 = vmul.f32 %v1175, %v1266
        %v1296 = vmul.f32 %v1175, %v1270
        %v1297 = vmul.f32 %v1179, %v1266
        %v1298 = vmul.f32 %v1179, %v1270
        %v1299 = vmul.f32 %v1183, %v1266
        %v1300 = vmul.f32 %v1183, %v1270
        %v1301 = vmul.f32 %v1187, %v1266
        %v1302 = vmul.f32 %v1187, %v1270
        %v1303 = vmul.f32 %v1191, %v1266
        %v1304 = vmul.f32 %v1191, %v1270
        %v1305 = vmul.f32 %v1195, %v1266
        %v1306 = vmul.f32 %v1195, %v1270
        %v1307 = vmul.f32 %v1199, %v1266
        %v1308 = vmul.f32 %v1199, %v1270
        %v1309 = vmul.f32 %v1203, %v1266
        %v1310 = vmul.f32 %v1203, %v1270
        %v1311 = vmul.f32 %v1207, %v1266
        %v1312 = vmul.f32 %v1207, %v1270
        %v1313 = vmul.f32 %v1211, %v1266
        %v1314 = vmul.f32 %v1211, %v1270
        %v1315 = vmul.f32 %v1215, %v1266
        %v1316 = vmul.f32 %v1215, %v1270
        %v1317 = vmul.f32 %v1219, %v1266
        %v1318 = vmul.f32 %v1219, %v1270
        %v1319 = vmul.f32 %v1223, %v1266
        %v1320 = vmul.f32 %v1223, %v1270
        %v1321 = vmul.f32 %v1227, %v1266
        %v1322 = vmul.f32 %v1227, %v1270
        %v1323 = vmul.f32 %v1231, %v1266
        %v1324 = vmul.f32 %v1231, %v1270
        %v1325 = vmul.f32 %v1235, %v1266
        %v1326 = vmul.f32 %v1235, %v1270
        %v1327 = vmul.f32 %v1239, %v1266
        %v1328 = vmul.f32 %v1239, %v1270
        %v1329 = vmul.f32 %v1243, %v1266
        %v1330 = vmul.f32 %v1243, %v1270
        %v1331 = vmul.f32 %v1247, %v1266
        %v1332 = vmul.f32 %v1247, %v1270
        %v1333 = vmul.f32 %v1251, %v1266
        %v1334 = vmul.f32 %v1251, %v1270
        %v1335 = vadd.f32 %v1061, %v1271
        %v1336 = vadd.f32 %v1062, %v1272
        %v1337 = vadd.f32 %v1063, %v1273
        %v1338 = vadd.f32 %v1064, %v1274
        %v1339 = vadd.f32 %v1065, %v1275
        %v1340 = vadd.f32 %v1066, %v1276
        %v1341 = vadd.f32 %v1067, %v1277
        %v1342 = vadd.f32 %v1068, %v1278
        %v1343 = vadd.f32 %v1069, %v1279
        %v1344 = vadd.f32 %v1070, %v1280
        %v1345 = vadd.f32 %v1071, %v1281
        %v1346 = vadd.f32 %v1072, %v1282
        %v1347 = vadd.f32 %v1073, %v1283
        %v1348 = vadd.f32 %v1074, %v1284
        %v1349 = vadd.f32 %v1075, %v1285
        %v1350 = vadd.f32 %v1076, %v1286
        %v1351 = vadd.f32 %v1077, %v1287
        %v1352 = vadd.f32 %v1078, %v1288
        %v1353 = vadd.f32 %v1079, %v1289
        %v1354 = vadd.f32 %v1080, %v1290
        %v1355 = vadd.f32 %v1081, %v1291
        %v1356 = vadd.f32 %v1082, %v1292
        %v1357 = vadd.f32 %v1083, %v1293
        %v1358 = vadd.f32 %v1084, %v1294
        %v1359 = vadd.f32 %v1085, %v1295
        %v1360 = vadd.f32 %v1086, %v1296
        %v1361 = vadd.f32 %v1087, %v1297
        %v1362 = vadd.f32 %v1088, %v1298
        %v1363 = vadd.f32 %v1089, %v1299
        %v1364 = vadd.f32 %v1090, %v1300
        %v1365 = vadd.f32 %v1091, %v1301
        %v1366 = vadd.f32 %v1092, %v1302
        %v1367 = vadd.f32 %v1093, %v1303
        %v1368 = vadd.f32 %v1094, %v1304
        %v1369 = vadd.f32 %v1095, %v1305
        %v1370 = vadd.f32 %v1096, %v1306
        %v1371 = vadd.f32 %v1097, %v1307
        %v1372 = vadd.f32 %v1098, %v1308
        %v1373 = vadd.f32 %v1099, %v1309
        %v1374 = vadd.f32 %v1100, %v1310
        %v1375 = vadd.f32 %v1101, %v1311
        %v1376 = vadd.f32 %v1102, %v1312
        %v1377 = vadd.f32 %v1103, %v1313
        %v1378 = vadd.f32 %v1104, %v1314
        %v1379 = vadd.f32 %v1105, %v1315
        %v1380 = vadd.f32 %v1106, %v1316
        %v1381 = vadd.f32 %v1107, %v1317
        %v1382 = vadd.f32 %v1108, %v1318
        %v1383 = vadd.f32 %v1109, %v1319
        %v1384 = vadd.f32 %v1110, %v1320
        %v1385 = vadd.f32 %v1111, %v1321
        %v1386 = vadd.f32 %v1112, %v1322
        %v1387 = vadd.f32 %v1113, %v1323
        %v1388 = vadd.f32 %v1114, %v1324
        %v1389 = vadd.f32 %v1115, %v1325
        %v1390 = vadd.f32 %v1116, %v1326
        %v1391 = vadd.f32 %v1117, %v1327
        %v1392 = vadd.f32 %v1118, %v1328
        %v1393 = vadd.f32 %v1119, %v1329
        %v1394 = vadd.f32 %v1120, %v1330
        %v1395 = vadd.f32 %v1121, %v1331
        %v1396 = vadd.f32 %v1122, %v1332
        %v1397 = vadd.f32 %v1123, %v1333
        %v1398 = vadd.f32 %v1124, %v1334
        %1399 = vset.pattern.permute.xlu0 3
        %1400 = vperm.xlu0 %1399, %v576
        %v1401 = vpop.permute.xlu0 %1400
        %1403 = vset.pattern.permute.xlu0 3
        %1404 = vperm.xlu0 %1403, %v577
        %v1405 = vpop.permute.xlu0 %1404
        %1407 = vset.pattern.permute.xlu0 3
        %1408 = vperm.xlu0 %1407, %v578
        %v1409 = vpop.permute.xlu0 %1408
        %1411 = vset.pattern.permute.xlu0 3
        %1412 = vperm.xlu0 %1411, %v579
        %v1413 = vpop.permute.xlu0 %1412
        %1415 = vset.pattern.permute.xlu0 3
        %1416 = vperm.xlu0 %1415, %v580
        %v1417 = vpop.permute.xlu0 %1416
        %1419 = vset.pattern.permute.xlu0 3
        %1420 = vperm.xlu0 %1419, %v581
        %v1421 = vpop.permute.xlu0 %1420
        %1423 = vset.pattern.permute.xlu0 3
        %1424 = vperm.xlu0 %1423, %v582
        %v1425 = vpop.permute.xlu0 %1424
        %1427 = vset.pattern.permute.xlu0 3
        %1428 = vperm.xlu0 %1427, %v583
        %v1429 = vpop.permute.xlu0 %1428
        %1431 = vset.pattern.permute.xlu0 3
        %1432 = vperm.xlu0 %1431, %v584
        %v1433 = vpop.permute.xlu0 %1432
        %1435 = vset.pattern.permute.xlu0 3
        %1436 = vperm.xlu0 %1435, %v585
        %v1437 = vpop.permute.xlu0 %1436
        %1439 = vset.pattern.permute.xlu0 3
        %1440 = vperm.xlu0 %1439, %v586
        %v1441 = vpop.permute.xlu0 %1440
        %1443 = vset.pattern.permute.xlu0 3
        %1444 = vperm.xlu0 %1443, %v587
        %v1445 = vpop.permute.xlu0 %1444
        %1447 = vset.pattern.permute.xlu0 3
        %1448 = vperm.xlu0 %1447, %v588
        %v1449 = vpop.permute.xlu0 %1448
        %1451 = vset.pattern.permute.xlu0 3
        %1452 = vperm.xlu0 %1451, %v589
        %v1453 = vpop.permute.xlu0 %1452
        %1455 = vset.pattern.permute.xlu0 3
        %1456 = vperm.xlu0 %1455, %v590
        %v1457 = vpop.permute.xlu0 %1456
        %1459 = vset.pattern.permute.xlu0 3
        %1460 = vperm.xlu0 %1459, %v591
        %v1461 = vpop.permute.xlu0 %1460
        %1463 = vset.pattern.permute.xlu0 3
        %1464 = vperm.xlu0 %1463, %v592
        %v1465 = vpop.permute.xlu0 %1464
        %1467 = vset.pattern.permute.xlu0 3
        %1468 = vperm.xlu0 %1467, %v593
        %v1469 = vpop.permute.xlu0 %1468
        %1471 = vset.pattern.permute.xlu0 3
        %1472 = vperm.xlu0 %1471, %v594
        %v1473 = vpop.permute.xlu0 %1472
        %1475 = vset.pattern.permute.xlu0 3
        %1476 = vperm.xlu0 %1475, %v595
        %v1477 = vpop.permute.xlu0 %1476
        %1479 = vset.pattern.permute.xlu0 3
        %1480 = vperm.xlu0 %1479, %v596
        %v1481 = vpop.permute.xlu0 %1480
        %1483 = vset.pattern.permute.xlu0 3
        %1484 = vperm.xlu0 %1483, %v597
        %v1485 = vpop.permute.xlu0 %1484
        %1487 = vset.pattern.permute.xlu0 3
        %1488 = vperm.xlu0 %1487, %v598
        %v1489 = vpop.permute.xlu0 %1488
        %1491 = vset.pattern.permute.xlu0 3
        %1492 = vperm.xlu0 %1491, %v599
        %v1493 = vpop.permute.xlu0 %1492
        %1495 = vset.pattern.permute.xlu0 3
        %1496 = vperm.xlu0 %1495, %v600
        %v1497 = vpop.permute.xlu0 %1496
        %1499 = vset.pattern.permute.xlu0 3
        %1500 = vperm.xlu0 %1499, %v601
        %v1501 = vpop.permute.xlu0 %1500
        %1503 = vset.pattern.permute.xlu0 3
        %1504 = vperm.xlu0 %1503, %v602
        %v1505 = vpop.permute.xlu0 %1504
        %1507 = vset.pattern.permute.xlu0 3
        %1508 = vperm.xlu0 %1507, %v603
        %v1509 = vpop.permute.xlu0 %1508
        %1511 = vset.pattern.permute.xlu0 3
        %1512 = vperm.xlu0 %1511, %v604
        %v1513 = vpop.permute.xlu0 %1512
        %1515 = vset.pattern.permute.xlu0 3
        %1516 = vperm.xlu0 %1515, %v605
        %v1517 = vpop.permute.xlu0 %1516
        %1519 = vset.pattern.permute.xlu0 3
        %1520 = vperm.xlu0 %1519, %v606
        %v1521 = vpop.permute.xlu0 %1520
        %1523 = vset.pattern.permute.xlu0 3
        %1524 = vperm.xlu0 %1523, %v607
        %v1525 = vpop.permute.xlu0 %1524
        %v1527 = vlaneseq
        %v1528 = vshrl.u32 %v1527, 7
        %v1529 = vsub.s32 3, %v1528
        %v1530 = vrot.slane %v575, %v1529
        %v1531 = vlaneseq
        %v1532 = vshrl.u32 %v1531, 7
        %v1533 = vsub.s32 7, %v1532
        %v1534 = vrot.slane %v575, %v1533
        %v1537 = vlaneseq
        %v1538 = vshrl.u32 %v1537, 7
        %v1539 = vsub.s32 3, %v1538
        %v1540 = vrot.slane %v1530, %v1539
        %v1541 = vlaneseq
        %v1542 = vshrl.u32 %v1541, 7
        %v1543 = vsub.s32 3, %v1542
        %v1544 = vrot.slane %v1534, %v1543
        %v1545 = vmul.f32 %v1401, %v1540
        %v1546 = vmul.f32 %v1401, %v1544
        %v1547 = vmul.f32 %v1405, %v1540
        %v1548 = vmul.f32 %v1405, %v1544
        %v1549 = vmul.f32 %v1409, %v1540
        %v1550 = vmul.f32 %v1409, %v1544
        %v1551 = vmul.f32 %v1413, %v1540
        %v1552 = vmul.f32 %v1413, %v1544
        %v1553 = vmul.f32 %v1417, %v1540
        %v1554 = vmul.f32 %v1417, %v1544
        %v1555 = vmul.f32 %v1421, %v1540
        %v1556 = vmul.f32 %v1421, %v1544
        %v1557 = vmul.f32 %v1425, %v1540
        %v1558 = vmul.f32 %v1425, %v1544
        %v1559 = vmul.f32 %v1429, %v1540
        %v1560 = vmul.f32 %v1429, %v1544
        %v1561 = vmul.f32 %v1433, %v1540
        %v1562 = vmul.f32 %v1433, %v1544
        %v1563 = vmul.f32 %v1437, %v1540
        %v1564 = vmul.f32 %v1437, %v1544
        %v1565 = vmul.f32 %v1441, %v1540
        %v1566 = vmul.f32 %v1441, %v1544
        %v1567 = vmul.f32 %v1445, %v1540
        %v1568 = vmul.f32 %v1445, %v1544
        %v1569 = vmul.f32 %v1449, %v1540
        %v1570 = vmul.f32 %v1449, %v1544
        %v1571 = vmul.f32 %v1453, %v1540
        %v1572 = vmul.f32 %v1453, %v1544
        %v1573 = vmul.f32 %v1457, %v1540
        %v1574 = vmul.f32 %v1457, %v1544
        %v1575 = vmul.f32 %v1461, %v1540
        %v1576 = vmul.f32 %v1461, %v1544
        %v1577 = vmul.f32 %v1465, %v1540
        %v1578 = vmul.f32 %v1465, %v1544
        %v1579 = vmul.f32 %v1469, %v1540
        %v1580 = vmul.f32 %v1469, %v1544
        %v1581 = vmul.f32 %v1473, %v1540
        %v1582 = vmul.f32 %v1473, %v1544
        %v1583 = vmul.f32 %v1477, %v1540
        %v1584 = vmul.f32 %v1477, %v1544
        %v1585 = vmul.f32 %v1481, %v1540
        %v1586 = vmul.f32 %v1481, %v1544
        %v1587 = vmul.f32 %v1485, %v1540
        %v1588 = vmul.f32 %v1485, %v1544
        %v1589 = vmul.f32 %v1489, %v1540
        %v1590 = vmul.f32 %v1489, %v1544
        %v1591 = vmul.f32 %v1493, %v1540
        %v1592 = vmul.f32 %v1493, %v1544
        %v1593 = vmul.f32 %v1497, %v1540
        %v1594 = vmul.f32 %v1497, %v1544
        %v1595 = vmul.f32 %v1501, %v1540
        %v1596 = vmul.f32 %v1501, %v1544
        %v1597 = vmul.f32 %v1505, %v1540
        %v1598 = vmul.f32 %v1505, %v1544
        %v1599 = vmul.f32 %v1509, %v1540
        %v1600 = vmul.f32 %v1509, %v1544
        %v1601 = vmul.f32 %v1513, %v1540
        %v1602 = vmul.f32 %v1513, %v1544
        %v1603 = vmul.f32 %v1517, %v1540
        %v1604 = vmul.f32 %v1517, %v1544
        %v1605 = vmul.f32 %v1521, %v1540
        %v1606 = vmul.f32 %v1521, %v1544
        %v1607 = vmul.f32 %v1525, %v1540
        %v1608 = vmul.f32 %v1525, %v1544
        %v1609 = vadd.f32 %v1335, %v1545
        %v1610 = vadd.f32 %v1336, %v1546
        %v1611 = vadd.f32 %v1337, %v1547
        %v1612 = vadd.f32 %v1338, %v1548
        %v1613 = vadd.f32 %v1339, %v1549
        %v1614 = vadd.f32 %v1340, %v1550
        %v1615 = vadd.f32 %v1341, %v1551
        %v1616 = vadd.f32 %v1342, %v1552
        %v1617 = vadd.f32 %v1343, %v1553
        %v1618 = vadd.f32 %v1344, %v1554
        %v1619 = vadd.f32 %v1345, %v1555
        %v1620 = vadd.f32 %v1346, %v1556
        %v1621 = vadd.f32 %v1347, %v1557
        %v1622 = vadd.f32 %v1348, %v1558
        %v1623 = vadd.f32 %v1349, %v1559
        %v1624 = vadd.f32 %v1350, %v1560
        %v1625 = vadd.f32 %v1351, %v1561
        %v1626 = vadd.f32 %v1352, %v1562
        %v1627 = vadd.f32 %v1353, %v1563
        %v1628 = vadd.f32 %v1354, %v1564
        %v1629 = vadd.f32 %v1355, %v1565
        %v1630 = vadd.f32 %v1356, %v1566
        %v1631 = vadd.f32 %v1357, %v1567
        %v1632 = vadd.f32 %v1358, %v1568
        %v1633 = vadd.f32 %v1359, %v1569
        %v1634 = vadd.f32 %v1360, %v1570
        %v1635 = vadd.f32 %v1361, %v1571
        %v1636 = vadd.f32 %v1362, %v1572
        %v1637 = vadd.f32 %v1363, %v1573
        %v1638 = vadd.f32 %v1364, %v1574
        %v1639 = vadd.f32 %v1365, %v1575
        %v1640 = vadd.f32 %v1366, %v1576
        %v1641 = vadd.f32 %v1367, %v1577
        %v1642 = vadd.f32 %v1368, %v1578
        %v1643 = vadd.f32 %v1369, %v1579
        %v1644 = vadd.f32 %v1370, %v1580
        %v1645 = vadd.f32 %v1371, %v1581
        %v1646 = vadd.f32 %v1372, %v1582
        %v1647 = vadd.f32 %v1373, %v1583
        %v1648 = vadd.f32 %v1374, %v1584
        %v1649 = vadd.f32 %v1375, %v1585
        %v1650 = vadd.f32 %v1376, %v1586
        %v1651 = vadd.f32 %v1377, %v1587
        %v1652 = vadd.f32 %v1378, %v1588
        %v1653 = vadd.f32 %v1379, %v1589
        %v1654 = vadd.f32 %v1380, %v1590
        %v1655 = vadd.f32 %v1381, %v1591
        %v1656 = vadd.f32 %v1382, %v1592
        %v1657 = vadd.f32 %v1383, %v1593
        %v1658 = vadd.f32 %v1384, %v1594
        %v1659 = vadd.f32 %v1385, %v1595
        %v1660 = vadd.f32 %v1386, %v1596
        %v1661 = vadd.f32 %v1387, %v1597
        %v1662 = vadd.f32 %v1388, %v1598
        %v1663 = vadd.f32 %v1389, %v1599
        %v1664 = vadd.f32 %v1390, %v1600
        %v1665 = vadd.f32 %v1391, %v1601
        %v1666 = vadd.f32 %v1392, %v1602
        %v1667 = vadd.f32 %v1393, %v1603
        %v1668 = vadd.f32 %v1394, %v1604
        %v1669 = vadd.f32 %v1395, %v1605
        %v1670 = vadd.f32 %v1396, %v1606
        %v1671 = vadd.f32 %v1397, %v1607
        %v1672 = vadd.f32 %v1398, %v1608
        %v1673 = vld [vmem:[%s3] sm:$0xff]
        %v1674 = vld [vmem:[%s3 + $0x8] sm:$0xff]
        %v1675 = vld [vmem:[%s3 + $0x10] sm:$0xff]
        %v1676 = vld [vmem:[%s3 + $0x18] sm:$0xff]
        %v1677 = vld [vmem:[%s3 + $0x20] sm:$0xff]
        %v1678 = vld [vmem:[%s3 + $0x28] sm:$0xff]
        %v1679 = vld [vmem:[%s3 + $0x30] sm:$0xff]
        %v1680 = vld [vmem:[%s3 + $0x38] sm:$0xff]
        %v1681 = vld [vmem:[%s3 + $0x40] sm:$0xff]
        %v1682 = vld [vmem:[%s3 + $0x48] sm:$0xff]
        %v1683 = vld [vmem:[%s3 + $0x50] sm:$0xff]
        %v1684 = vld [vmem:[%s3 + $0x58] sm:$0xff]
        %v1685 = vld [vmem:[%s3 + $0x60] sm:$0xff]
        %v1686 = vld [vmem:[%s3 + $0x68] sm:$0xff]
        %v1687 = vld [vmem:[%s3 + $0x70] sm:$0xff]
        %v1688 = vld [vmem:[%s3 + $0x78] sm:$0xff]
        %v1689 = vld [vmem:[%s3 + $0x80] sm:$0xff]
        %v1690 = vld [vmem:[%s3 + $0x88] sm:$0xff]
        %v1691 = vld [vmem:[%s3 + $0x90] sm:$0xff]
        %v1692 = vld [vmem:[%s3 + $0x98] sm:$0xff]
        %v1693 = vld [vmem:[%s3 + $0xa0] sm:$0xff]
        %v1694 = vld [vmem:[%s3 + $0xa8] sm:$0xff]
        %v1695 = vld [vmem:[%s3 + $0xb0] sm:$0xff]
        %v1696 = vld [vmem:[%s3 + $0xb8] sm:$0xff]
        %v1697 = vld [vmem:[%s3 + $0xc0] sm:$0xff]
        %v1698 = vld [vmem:[%s3 + $0xc8] sm:$0xff]
        %v1699 = vld [vmem:[%s3 + $0xd0] sm:$0xff]
        %v1700 = vld [vmem:[%s3 + $0xd8] sm:$0xff]
        %v1701 = vld [vmem:[%s3 + $0xe0] sm:$0xff]
        %v1702 = vld [vmem:[%s3 + $0xe8] sm:$0xff]
        %v1703 = vld [vmem:[%s3 + $0xf0] sm:$0xff]
        %v1704 = vld [vmem:[%s3 + $0xf8] sm:$0xff]
        %1706 = vset.pattern.permute.xlu0 0
        %1707 = vperm.xlu0 %1706, %v1673
        %v1708 = vpop.permute.xlu0 %1707
        %1711 = vset.pattern.permute.xlu0 0
        %1712 = vperm.xlu0 %1711, %v1674
        %v1713 = vpop.permute.xlu0 %1712
        %1716 = vset.pattern.permute.xlu0 0
        %1717 = vperm.xlu0 %1716, %v1675
        %v1718 = vpop.permute.xlu0 %1717
        %1721 = vset.pattern.permute.xlu0 0
        %1722 = vperm.xlu0 %1721, %v1676
        %v1723 = vpop.permute.xlu0 %1722
        %1726 = vset.pattern.permute.xlu0 0
        %1727 = vperm.xlu0 %1726, %v1677
        %v1728 = vpop.permute.xlu0 %1727
        %1731 = vset.pattern.permute.xlu0 0
        %1732 = vperm.xlu0 %1731, %v1678
        %v1733 = vpop.permute.xlu0 %1732
        %1736 = vset.pattern.permute.xlu0 0
        %1737 = vperm.xlu0 %1736, %v1679
        %v1738 = vpop.permute.xlu0 %1737
        %1741 = vset.pattern.permute.xlu0 0
        %1742 = vperm.xlu0 %1741, %v1680
        %v1743 = vpop.permute.xlu0 %1742
        %1746 = vset.pattern.permute.xlu0 0
        %1747 = vperm.xlu0 %1746, %v1681
        %v1748 = vpop.permute.xlu0 %1747
        %1751 = vset.pattern.permute.xlu0 0
        %1752 = vperm.xlu0 %1751, %v1682
        %v1753 = vpop.permute.xlu0 %1752
        %1756 = vset.pattern.permute.xlu0 0
        %1757 = vperm.xlu0 %1756, %v1683
        %v1758 = vpop.permute.xlu0 %1757
        %1761 = vset.pattern.permute.xlu0 0
        %1762 = vperm.xlu0 %1761, %v1684
        %v1763 = vpop.permute.xlu0 %1762
        %1766 = vset.pattern.permute.xlu0 0
        %1767 = vperm.xlu0 %1766, %v1685
        %v1768 = vpop.permute.xlu0 %1767
        %1771 = vset.pattern.permute.xlu0 0
        %1772 = vperm.xlu0 %1771, %v1686
        %v1773 = vpop.permute.xlu0 %1772
        %1776 = vset.pattern.permute.xlu0 0
        %1777 = vperm.xlu0 %1776, %v1687
        %v1778 = vpop.permute.xlu0 %1777
        %1781 = vset.pattern.permute.xlu0 0
        %1782 = vperm.xlu0 %1781, %v1688
        %v1783 = vpop.permute.xlu0 %1782
        %1786 = vset.pattern.permute.xlu0 0
        %1787 = vperm.xlu0 %1786, %v1689
        %v1788 = vpop.permute.xlu0 %1787
        %1791 = vset.pattern.permute.xlu0 0
        %1792 = vperm.xlu0 %1791, %v1690
        %v1793 = vpop.permute.xlu0 %1792
        %1796 = vset.pattern.permute.xlu0 0
        %1797 = vperm.xlu0 %1796, %v1691
        %v1798 = vpop.permute.xlu0 %1797
        %1801 = vset.pattern.permute.xlu0 0
        %1802 = vperm.xlu0 %1801, %v1692
        %v1803 = vpop.permute.xlu0 %1802
        %1806 = vset.pattern.permute.xlu0 0
        %1807 = vperm.xlu0 %1806, %v1693
        %v1808 = vpop.permute.xlu0 %1807
        %1811 = vset.pattern.permute.xlu0 0
        %1812 = vperm.xlu0 %1811, %v1694
        %v1813 = vpop.permute.xlu0 %1812
        %1816 = vset.pattern.permute.xlu0 0
        %1817 = vperm.xlu0 %1816, %v1695
        %v1818 = vpop.permute.xlu0 %1817
        %1821 = vset.pattern.permute.xlu0 0
        %1822 = vperm.xlu0 %1821, %v1696
        %v1823 = vpop.permute.xlu0 %1822
        %1826 = vset.pattern.permute.xlu0 0
        %1827 = vperm.xlu0 %1826, %v1697
        %v1828 = vpop.permute.xlu0 %1827
        %1831 = vset.pattern.permute.xlu0 0
        %1832 = vperm.xlu0 %1831, %v1698
        %v1833 = vpop.permute.xlu0 %1832
        %1836 = vset.pattern.permute.xlu0 0
        %1837 = vperm.xlu0 %1836, %v1699
        %v1838 = vpop.permute.xlu0 %1837
        %1841 = vset.pattern.permute.xlu0 0
        %1842 = vperm.xlu0 %1841, %v1700
        %v1843 = vpop.permute.xlu0 %1842
        %1846 = vset.pattern.permute.xlu0 0
        %1847 = vperm.xlu0 %1846, %v1701
        %v1848 = vpop.permute.xlu0 %1847
        %1851 = vset.pattern.permute.xlu0 0
        %1852 = vperm.xlu0 %1851, %v1702
        %v1853 = vpop.permute.xlu0 %1852
        %1856 = vset.pattern.permute.xlu0 0
        %1857 = vperm.xlu0 %1856, %v1703
        %v1858 = vpop.permute.xlu0 %1857
        %1861 = vset.pattern.permute.xlu0 0
        %1862 = vperm.xlu0 %1861, %v1704
        %v1863 = vpop.permute.xlu0 %1862
        %v1865 = vadd.f32 %v1609, %v1708
        %v1866 = vadd.f32 %v1610, %v1708
        %v1867 = vadd.f32 %v1611, %v1713
        %v1868 = vadd.f32 %v1612, %v1713
        %v1869 = vadd.f32 %v1613, %v1718
        %v1870 = vadd.f32 %v1614, %v1718
        %v1871 = vadd.f32 %v1615, %v1723
        %v1872 = vadd.f32 %v1616, %v1723
        %v1873 = vadd.f32 %v1617, %v1728
        %v1874 = vadd.f32 %v1618, %v1728
        %v1875 = vadd.f32 %v1619, %v1733
        %v1876 = vadd.f32 %v1620, %v1733
        %v1877 = vadd.f32 %v1621, %v1738
        %v1878 = vadd.f32 %v1622, %v1738
        %v1879 = vadd.f32 %v1623, %v1743
        %v1880 = vadd.f32 %v1624, %v1743
        %v1881 = vadd.f32 %v1625, %v1748
        %v1882 = vadd.f32 %v1626, %v1748
        %v1883 = vadd.f32 %v1627, %v1753
        %v1884 = vadd.f32 %v1628, %v1753
        %v1885 = vadd.f32 %v1629, %v1758
        %v1886 = vadd.f32 %v1630, %v1758
        %v1887 = vadd.f32 %v1631, %v1763
        %v1888 = vadd.f32 %v1632, %v1763
        %v1889 = vadd.f32 %v1633, %v1768
        %v1890 = vadd.f32 %v1634, %v1768
        %v1891 = vadd.f32 %v1635, %v1773
        %v1892 = vadd.f32 %v1636, %v1773
        %v1893 = vadd.f32 %v1637, %v1778
        %v1894 = vadd.f32 %v1638, %v1778
        %v1895 = vadd.f32 %v1639, %v1783
        %v1896 = vadd.f32 %v1640, %v1783
        %v1897 = vadd.f32 %v1641, %v1788
        %v1898 = vadd.f32 %v1642, %v1788
        %v1899 = vadd.f32 %v1643, %v1793
        %v1900 = vadd.f32 %v1644, %v1793
        %v1901 = vadd.f32 %v1645, %v1798
        %v1902 = vadd.f32 %v1646, %v1798
        %v1903 = vadd.f32 %v1647, %v1803
        %v1904 = vadd.f32 %v1648, %v1803
        %v1905 = vadd.f32 %v1649, %v1808
        %v1906 = vadd.f32 %v1650, %v1808
        %v1907 = vadd.f32 %v1651, %v1813
        %v1908 = vadd.f32 %v1652, %v1813
        %v1909 = vadd.f32 %v1653, %v1818
        %v1910 = vadd.f32 %v1654, %v1818
        %v1911 = vadd.f32 %v1655, %v1823
        %v1912 = vadd.f32 %v1656, %v1823
        %v1913 = vadd.f32 %v1657, %v1828
        %v1914 = vadd.f32 %v1658, %v1828
        %v1915 = vadd.f32 %v1659, %v1833
        %v1916 = vadd.f32 %v1660, %v1833
        %v1917 = vadd.f32 %v1661, %v1838
        %v1918 = vadd.f32 %v1662, %v1838
        %v1919 = vadd.f32 %v1663, %v1843
        %v1920 = vadd.f32 %v1664, %v1843
        %v1921 = vadd.f32 %v1665, %v1848
        %v1922 = vadd.f32 %v1666, %v1848
        %v1923 = vadd.f32 %v1667, %v1853
        %v1924 = vadd.f32 %v1668, %v1853
        %v1925 = vadd.f32 %v1669, %v1858
        %v1926 = vadd.f32 %v1670, %v1858
        %v1927 = vadd.f32 %v1671, %v1863
        %v1928 = vadd.f32 %v1672, %v1863
        %v1929 = vmax.f32 %v1865, 0.0
        %v1930 = vmax.f32 %v1866, 0.0
        %v1931 = vmax.f32 %v1867, 0.0
        %v1932 = vmax.f32 %v1868, 0.0
        %v1933 = vmax.f32 %v1869, 0.0
        %v1934 = vmax.f32 %v1870, 0.0
        %v1935 = vmax.f32 %v1871, 0.0
        %v1936 = vmax.f32 %v1872, 0.0
        %v1937 = vmax.f32 %v1873, 0.0
        %v1938 = vmax.f32 %v1874, 0.0
        %v1939 = vmax.f32 %v1875, 0.0
        %v1940 = vmax.f32 %v1876, 0.0
        %v1941 = vmax.f32 %v1877, 0.0
        %v1942 = vmax.f32 %v1878, 0.0
        %v1943 = vmax.f32 %v1879, 0.0
        %v1944 = vmax.f32 %v1880, 0.0
        %v1945 = vmax.f32 %v1881, 0.0
        %v1946 = vmax.f32 %v1882, 0.0
        %v1947 = vmax.f32 %v1883, 0.0
        %v1948 = vmax.f32 %v1884, 0.0
        %v1949 = vmax.f32 %v1885, 0.0
        %v1950 = vmax.f32 %v1886, 0.0
        %v1951 = vmax.f32 %v1887, 0.0
        %v1952 = vmax.f32 %v1888, 0.0
        %v1953 = vmax.f32 %v1889, 0.0
        %v1954 = vmax.f32 %v1890, 0.0
        %v1955 = vmax.f32 %v1891, 0.0
        %v1956 = vmax.f32 %v1892, 0.0
        %v1957 = vmax.f32 %v1893, 0.0
        %v1958 = vmax.f32 %v1894, 0.0
        %v1959 = vmax.f32 %v1895, 0.0
        %v1960 = vmax.f32 %v1896, 0.0
        %v1961 = vmax.f32 %v1897, 0.0
        %v1962 = vmax.f32 %v1898, 0.0
        %v1963 = vmax.f32 %v1899, 0.0
        %v1964 = vmax.f32 %v1900, 0.0
        %v1965 = vmax.f32 %v1901, 0.0
        %v1966 = vmax.f32 %v1902, 0.0
        %v1967 = vmax.f32 %v1903, 0.0
        %v1968 = vmax.f32 %v1904, 0.0
        %v1969 = vmax.f32 %v1905, 0.0
        %v1970 = vmax.f32 %v1906, 0.0
        %v1971 = vmax.f32 %v1907, 0.0
        %v1972 = vmax.f32 %v1908, 0.0
        %v1973 = vmax.f32 %v1909, 0.0
        %v1974 = vmax.f32 %v1910, 0.0
        %v1975 = vmax.f32 %v1911, 0.0
        %v1976 = vmax.f32 %v1912, 0.0
        %v1977 = vmax.f32 %v1913, 0.0
        %v1978 = vmax.f32 %v1914, 0.0
        %v1979 = vmax.f32 %v1915, 0.0
        %v1980 = vmax.f32 %v1916, 0.0
        %v1981 = vmax.f32 %v1917, 0.0
        %v1982 = vmax.f32 %v1918, 0.0
        %v1983 = vmax.f32 %v1919, 0.0
        %v1984 = vmax.f32 %v1920, 0.0
        %v1985 = vmax.f32 %v1921, 0.0
        %v1986 = vmax.f32 %v1922, 0.0
        %v1987 = vmax.f32 %v1923, 0.0
        %v1988 = vmax.f32 %v1924, 0.0
        %v1989 = vmax.f32 %v1925, 0.0
        %v1990 = vmax.f32 %v1926, 0.0
        %v1991 = vmax.f32 %v1927, 0.0
        %v1992 = vmax.f32 %v1928, 0.0
        %v1993 = vpack.c.bf16 %v1931, %v1929
        %v1994 = vpack.c.bf16 %v1932, %v1930
        %v1995 = vpack.c.bf16 %v1935, %v1933
        %v1996 = vpack.c.bf16 %v1936, %v1934
        %v1997 = vpack.c.bf16 %v1939, %v1937
        %v1998 = vpack.c.bf16 %v1940, %v1938
        %v1999 = vpack.c.bf16 %v1943, %v1941
        %v2000 = vpack.c.bf16 %v1944, %v1942
        %v2001 = vpack.c.bf16 %v1947, %v1945
        %v2002 = vpack.c.bf16 %v1948, %v1946
        %v2003 = vpack.c.bf16 %v1951, %v1949
        %v2004 = vpack.c.bf16 %v1952, %v1950
        %v2005 = vpack.c.bf16 %v1955, %v1953
        %v2006 = vpack.c.bf16 %v1956, %v1954
        %v2007 = vpack.c.bf16 %v1959, %v1957
        %v2008 = vpack.c.bf16 %v1960, %v1958
        %v2009 = vpack.c.bf16 %v1963, %v1961
        %v2010 = vpack.c.bf16 %v1964, %v1962
        %v2011 = vpack.c.bf16 %v1967, %v1965
        %v2012 = vpack.c.bf16 %v1968, %v1966
        %v2013 = vpack.c.bf16 %v1971, %v1969
        %v2014 = vpack.c.bf16 %v1972, %v1970
        %v2015 = vpack.c.bf16 %v1975, %v1973
        %v2016 = vpack.c.bf16 %v1976, %v1974
        %v2017 = vpack.c.bf16 %v1979, %v1977
        %v2018 = vpack.c.bf16 %v1980, %v1978
        %v2019 = vpack.c.bf16 %v1983, %v1981
        %v2020 = vpack.c.bf16 %v1984, %v1982
        %v2021 = vpack.c.bf16 %v1987, %v1985
        %v2022 = vpack.c.bf16 %v1988, %v1986
        %v2023 = vpack.c.bf16 %v1991, %v1989
        %v2024 = vpack.c.bf16 %v1992, %v1990
        %v2025 = vld [vmem:[%s4] sm:$0xff]
        %v2026 = vld [vmem:[%s4 + $0x8] sm:$0xff]
        %v2027 = vld [vmem:[%s4 + $0x10] sm:$0xff]
        %v2028 = vld [vmem:[%s4 + $0x18] sm:$0xff]
        %v2029 = vld [vmem:[%s4 + $0x20] sm:$0xff]
        %v2030 = vld [vmem:[%s4 + $0x28] sm:$0xff]
        %v2031 = vld [vmem:[%s4 + $0x30] sm:$0xff]
        %v2032 = vld [vmem:[%s4 + $0x38] sm:$0xff]
        %v2033 = vld [vmem:[%s4 + $0x40] sm:$0xff]
        %v2034 = vld [vmem:[%s4 + $0x48] sm:$0xff]
        %v2035 = vld [vmem:[%s4 + $0x50] sm:$0xff]
        %v2036 = vld [vmem:[%s4 + $0x58] sm:$0xff]
        %v2037 = vld [vmem:[%s4 + $0x60] sm:$0xff]
        %v2038 = vld [vmem:[%s4 + $0x68] sm:$0xff]
        %v2039 = vld [vmem:[%s4 + $0x70] sm:$0xff]
        %v2040 = vld [vmem:[%s4 + $0x78] sm:$0xff]
        %v2041 = vld [vmem:[%s4 + $0x80] sm:$0xff]
        %v2042 = vld [vmem:[%s4 + $0x88] sm:$0xff]
        %v2043 = vld [vmem:[%s4 + $0x90] sm:$0xff]
        %v2044 = vld [vmem:[%s4 + $0x98] sm:$0xff]
        %v2045 = vld [vmem:[%s4 + $0xa0] sm:$0xff]
        %v2046 = vld [vmem:[%s4 + $0xa8] sm:$0xff]
        %v2047 = vld [vmem:[%s4 + $0xb0] sm:$0xff]
        %v2048 = vld [vmem:[%s4 + $0xb8] sm:$0xff]
        %v2049 = vld [vmem:[%s4 + $0xc0] sm:$0xff]
        %v2050 = vld [vmem:[%s4 + $0xc8] sm:$0xff]
        %v2051 = vld [vmem:[%s4 + $0xd0] sm:$0xff]
        %v2052 = vld [vmem:[%s4 + $0xd8] sm:$0xff]
        %v2053 = vld [vmem:[%s4 + $0xe0] sm:$0xff]
        %v2054 = vld [vmem:[%s4 + $0xe8] sm:$0xff]
        %v2055 = vld [vmem:[%s4 + $0xf0] sm:$0xff]
        %v2056 = vld [vmem:[%s4 + $0xf8] sm:$0xff]
        %v2057 = vld [vmem:[%s5] sm:$0xff]
        %v2058 = vld [vmem:[%s5 + $0x8] sm:$0xff]
        %v2059 = vld [vmem:[%s5 + $0x10] sm:$0xff]
        %v2060 = vld [vmem:[%s5 + $0x18] sm:$0xff]
        %v2061 = vld [vmem:[%s5 + $0x20] sm:$0xff]
        %v2062 = vld [vmem:[%s5 + $0x28] sm:$0xff]
        %v2063 = vld [vmem:[%s5 + $0x30] sm:$0xff]
        %v2064 = vld [vmem:[%s5 + $0x38] sm:$0xff]
        %v2065 = vld [vmem:[%s5 + $0x40] sm:$0xff]
        %v2066 = vld [vmem:[%s5 + $0x48] sm:$0xff]
        %v2067 = vld [vmem:[%s5 + $0x50] sm:$0xff]
        %v2068 = vld [vmem:[%s5 + $0x58] sm:$0xff]
        %v2069 = vld [vmem:[%s5 + $0x60] sm:$0xff]
        %v2070 = vld [vmem:[%s5 + $0x68] sm:$0xff]
        %v2071 = vld [vmem:[%s5 + $0x70] sm:$0xff]
        %v2072 = vld [vmem:[%s5 + $0x78] sm:$0xff]
        %v2073 = vld [vmem:[%s5 + $0x80] sm:$0xff]
        %v2074 = vld [vmem:[%s5 + $0x88] sm:$0xff]
        %v2075 = vld [vmem:[%s5 + $0x90] sm:$0xff]
        %v2076 = vld [vmem:[%s5 + $0x98] sm:$0xff]
        %v2077 = vld [vmem:[%s5 + $0xa0] sm:$0xff]
        %v2078 = vld [vmem:[%s5 + $0xa8] sm:$0xff]
        %v2079 = vld [vmem:[%s5 + $0xb0] sm:$0xff]
        %v2080 = vld [vmem:[%s5 + $0xb8] sm:$0xff]
        %v2081 = vld [vmem:[%s5 + $0xc0] sm:$0xff]
        %v2082 = vld [vmem:[%s5 + $0xc8] sm:$0xff]
        %v2083 = vld [vmem:[%s5 + $0xd0] sm:$0xff]
        %v2084 = vld [vmem:[%s5 + $0xd8] sm:$0xff]
        %v2085 = vld [vmem:[%s5 + $0xe0] sm:$0xff]
        %v2086 = vld [vmem:[%s5 + $0xe8] sm:$0xff]
        %v2087 = vld [vmem:[%s5 + $0xf0] sm:$0xff]
        %v2088 = vld [vmem:[%s5 + $0xf8] sm:$0xff]
        %2090 = vset.pattern.permute.xlu0 0
        %2091 = vperm.xlu0 %2090, %v2057
        %v2092 = vpop.permute.xlu0 %2091
        %2095 = vset.pattern.permute.xlu0 0
        %2096 = vperm.xlu0 %2095, %v2058
        %v2097 = vpop.permute.xlu0 %2096
        %2100 = vset.pattern.permute.xlu0 0
        %2101 = vperm.xlu0 %2100, %v2059
        %v2102 = vpop.permute.xlu0 %2101
        %2105 = vset.pattern.permute.xlu0 0
        %2106 = vperm.xlu0 %2105, %v2060
        %v2107 = vpop.permute.xlu0 %2106
        %2110 = vset.pattern.permute.xlu0 0
        %2111 = vperm.xlu0 %2110, %v2061
        %v2112 = vpop.permute.xlu0 %2111
        %2115 = vset.pattern.permute.xlu0 0
        %2116 = vperm.xlu0 %2115, %v2062
        %v2117 = vpop.permute.xlu0 %2116
        %2120 = vset.pattern.permute.xlu0 0
        %2121 = vperm.xlu0 %2120, %v2063
        %v2122 = vpop.permute.xlu0 %2121
        %2125 = vset.pattern.permute.xlu0 0
        %2126 = vperm.xlu0 %2125, %v2064
        %v2127 = vpop.permute.xlu0 %2126
        %2130 = vset.pattern.permute.xlu0 0
        %2131 = vperm.xlu0 %2130, %v2065
        %v2132 = vpop.permute.xlu0 %2131
        %2135 = vset.pattern.permute.xlu0 0
        %2136 = vperm.xlu0 %2135, %v2066
        %v2137 = vpop.permute.xlu0 %2136
        %2140 = vset.pattern.permute.xlu0 0
        %2141 = vperm.xlu0 %2140, %v2067
        %v2142 = vpop.permute.xlu0 %2141
        %2145 = vset.pattern.permute.xlu0 0
        %2146 = vperm.xlu0 %2145, %v2068
        %v2147 = vpop.permute.xlu0 %2146
        %2150 = vset.pattern.permute.xlu0 0
        %2151 = vperm.xlu0 %2150, %v2069
        %v2152 = vpop.permute.xlu0 %2151
        %2155 = vset.pattern.permute.xlu0 0
        %2156 = vperm.xlu0 %2155, %v2070
        %v2157 = vpop.permute.xlu0 %2156
        %2160 = vset.pattern.permute.xlu0 0
        %2161 = vperm.xlu0 %2160, %v2071
        %v2162 = vpop.permute.xlu0 %2161
        %2165 = vset.pattern.permute.xlu0 0
        %2166 = vperm.xlu0 %2165, %v2072
        %v2167 = vpop.permute.xlu0 %2166
        %2170 = vset.pattern.permute.xlu0 0
        %2171 = vperm.xlu0 %2170, %v2073
        %v2172 = vpop.permute.xlu0 %2171
        %2175 = vset.pattern.permute.xlu0 0
        %2176 = vperm.xlu0 %2175, %v2074
        %v2177 = vpop.permute.xlu0 %2176
        %2180 = vset.pattern.permute.xlu0 0
        %2181 = vperm.xlu0 %2180, %v2075
        %v2182 = vpop.permute.xlu0 %2181
        %2185 = vset.pattern.permute.xlu0 0
        %2186 = vperm.xlu0 %2185, %v2076
        %v2187 = vpop.permute.xlu0 %2186
        %2190 = vset.pattern.permute.xlu0 0
        %2191 = vperm.xlu0 %2190, %v2077
        %v2192 = vpop.permute.xlu0 %2191
        %2195 = vset.pattern.permute.xlu0 0
        %2196 = vperm.xlu0 %2195, %v2078
        %v2197 = vpop.permute.xlu0 %2196
        %2200 = vset.pattern.permute.xlu0 0
        %2201 = vperm.xlu0 %2200, %v2079
        %v2202 = vpop.permute.xlu0 %2201
        %2205 = vset.pattern.permute.xlu0 0
        %2206 = vperm.xlu0 %2205, %v2080
        %v2207 = vpop.permute.xlu0 %2206
        %2210 = vset.pattern.permute.xlu0 0
        %2211 = vperm.xlu0 %2210, %v2081
        %v2212 = vpop.permute.xlu0 %2211
        %2215 = vset.pattern.permute.xlu0 0
        %2216 = vperm.xlu0 %2215, %v2082
        %v2217 = vpop.permute.xlu0 %2216
        %2220 = vset.pattern.permute.xlu0 0
        %2221 = vperm.xlu0 %2220, %v2083
        %v2222 = vpop.permute.xlu0 %2221
        %2225 = vset.pattern.permute.xlu0 0
        %2226 = vperm.xlu0 %2225, %v2084
        %v2227 = vpop.permute.xlu0 %2226
        %2230 = vset.pattern.permute.xlu0 0
        %2231 = vperm.xlu0 %2230, %v2085
        %v2232 = vpop.permute.xlu0 %2231
        %2235 = vset.pattern.permute.xlu0 0
        %2236 = vperm.xlu0 %2235, %v2086
        %v2237 = vpop.permute.xlu0 %2236
        %2240 = vset.pattern.permute.xlu0 0
        %2241 = vperm.xlu0 %2240, %v2087
        %v2242 = vpop.permute.xlu0 %2241
        %2245 = vset.pattern.permute.xlu0 0
        %2246 = vperm.xlu0 %2245, %v2088
        %v2247 = vpop.permute.xlu0 %2246
        %v2281 = vunpack.c.l.b16 %v2025
        %v2282 = vunpack.c.h.b16 %v2025
        %v2283 = vunpack.c.l.b16 %v2026
        %v2284 = vunpack.c.h.b16 %v2026
        %v2285 = vunpack.c.l.b16 %v2027
        %v2286 = vunpack.c.h.b16 %v2027
        %v2287 = vunpack.c.l.b16 %v2028
        %v2288 = vunpack.c.h.b16 %v2028
        %v2289 = vunpack.c.l.b16 %v2029
        %v2290 = vunpack.c.h.b16 %v2029
        %v2291 = vunpack.c.l.b16 %v2030
        %v2292 = vunpack.c.h.b16 %v2030
        %v2293 = vunpack.c.l.b16 %v2031
        %v2294 = vunpack.c.h.b16 %v2031
        %v2295 = vunpack.c.l.b16 %v2032
        %v2296 = vunpack.c.h.b16 %v2032
        %v2297 = vunpack.c.l.b16 %v2033
        %v2298 = vunpack.c.h.b16 %v2033
        %v2299 = vunpack.c.l.b16 %v2034
        %v2300 = vunpack.c.h.b16 %v2034
        %v2301 = vunpack.c.l.b16 %v2035
        %v2302 = vunpack.c.h.b16 %v2035
        %v2303 = vunpack.c.l.b16 %v2036
        %v2304 = vunpack.c.h.b16 %v2036
        %v2305 = vunpack.c.l.b16 %v2037
        %v2306 = vunpack.c.h.b16 %v2037
        %v2307 = vunpack.c.l.b16 %v2038
        %v2308 = vunpack.c.h.b16 %v2038
        %v2309 = vunpack.c.l.b16 %v2039
        %v2310 = vunpack.c.h.b16 %v2039
        %v2311 = vunpack.c.l.b16 %v2040
        %v2312 = vunpack.c.h.b16 %v2040
        %v2313 = vunpack.c.l.b16 %v2041
        %v2314 = vunpack.c.h.b16 %v2041
        %v2315 = vunpack.c.l.b16 %v2042
        %v2316 = vunpack.c.h.b16 %v2042
        %v2317 = vunpack.c.l.b16 %v2043
        %v2318 = vunpack.c.h.b16 %v2043
        %v2319 = vunpack.c.l.b16 %v2044
        %v2320 = vunpack.c.h.b16 %v2044
        %v2321 = vunpack.c.l.b16 %v2045
        %v2322 = vunpack.c.h.b16 %v2045
        %v2323 = vunpack.c.l.b16 %v2046
        %v2324 = vunpack.c.h.b16 %v2046
        %v2325 = vunpack.c.l.b16 %v2047
        %v2326 = vunpack.c.h.b16 %v2047
        %v2327 = vunpack.c.l.b16 %v2048
        %v2328 = vunpack.c.h.b16 %v2048
        %v2329 = vunpack.c.l.b16 %v2049
        %v2330 = vunpack.c.h.b16 %v2049
        %v2331 = vunpack.c.l.b16 %v2050
        %v2332 = vunpack.c.h.b16 %v2050
        %v2333 = vunpack.c.l.b16 %v2051
        %v2334 = vunpack.c.h.b16 %v2051
        %v2335 = vunpack.c.l.b16 %v2052
        %v2336 = vunpack.c.h.b16 %v2052
        %v2337 = vunpack.c.l.b16 %v2053
        %v2338 = vunpack.c.h.b16 %v2053
        %v2339 = vunpack.c.l.b16 %v2054
        %v2340 = vunpack.c.h.b16 %v2054
        %v2341 = vunpack.c.l.b16 %v2055
        %v2342 = vunpack.c.h.b16 %v2055
        %v2343 = vunpack.c.l.b16 %v2056
        %v2344 = vunpack.c.h.b16 %v2056
        %v2345 = vpack.c.b16 %v2283, %v2281
        %v2346 = vpack.c.b16 %v2284, %v2282
        %v2347 = vpack.c.b16 %v2287, %v2285
        %v2348 = vpack.c.b16 %v2288, %v2286
        %v2349 = vpack.c.b16 %v2291, %v2289
        %v2350 = vpack.c.b16 %v2292, %v2290
        %v2351 = vpack.c.b16 %v2295, %v2293
        %v2352 = vpack.c.b16 %v2296, %v2294
        %v2353 = vpack.c.b16 %v2299, %v2297
        %v2354 = vpack.c.b16 %v2300, %v2298
        %v2355 = vpack.c.b16 %v2303, %v2301
        %v2356 = vpack.c.b16 %v2304, %v2302
        %v2357 = vpack.c.b16 %v2307, %v2305
        %v2358 = vpack.c.b16 %v2308, %v2306
        %v2359 = vpack.c.b16 %v2311, %v2309
        %v2360 = vpack.c.b16 %v2312, %v2310
        %v2361 = vpack.c.b16 %v2315, %v2313
        %v2362 = vpack.c.b16 %v2316, %v2314
        %v2363 = vpack.c.b16 %v2319, %v2317
        %v2364 = vpack.c.b16 %v2320, %v2318
        %v2365 = vpack.c.b16 %v2323, %v2321
        %v2366 = vpack.c.b16 %v2324, %v2322
        %v2367 = vpack.c.b16 %v2327, %v2325
        %v2368 = vpack.c.b16 %v2328, %v2326
        %v2369 = vpack.c.b16 %v2331, %v2329
        %v2370 = vpack.c.b16 %v2332, %v2330
        %v2371 = vpack.c.b16 %v2335, %v2333
        %v2372 = vpack.c.b16 %v2336, %v2334
        %v2373 = vpack.c.b16 %v2339, %v2337
        %v2374 = vpack.c.b16 %v2340, %v2338
        %v2375 = vpack.c.b16 %v2343, %v2341
        %v2376 = vpack.c.b16 %v2344, %v2342
        %2409 = vmatprep.subr.bf16.mxu0 %v1994
        %2410 = vmatpush1.bf16.msra.mxu0 %v1993
        %2411 = vmatprep.subr.bf16.mxu0 %v1996
        %2412 = vmatpush1.bf16.msra.mxu0 %v1995
        %2413 = vmatprep.subr.bf16.mxu0 %v1998
        %2414 = vmatpush1.bf16.msra.mxu0 %v1997
        %2415 = vmatprep.subr.bf16.mxu0 %v2000
        %2416 = vmatpush1.bf16.msra.mxu0 %v1999
        %2417 = vmatprep.subr.bf16.mxu0 %v2002
        %2418 = vmatpush1.bf16.msra.mxu0 %v2001
        %2419 = vmatprep.subr.bf16.mxu0 %v2004
        %2420 = vmatpush1.bf16.msra.mxu0 %v2003
        %2421 = vmatprep.subr.bf16.mxu0 %v2006
        %2422 = vmatpush1.bf16.msra.mxu0 %v2005
        %2423 = vmatprep.subr.bf16.mxu0 %v2008
        %2424 = vmatpush1.bf16.msra.mxu0 %v2007
        %2425 = vmatprep.subr.bf16.mxu0 %v2010
        %2426 = vmatpush1.bf16.msra.mxu0 %v2009
        %2427 = vmatprep.subr.bf16.mxu0 %v2012
        %2428 = vmatpush1.bf16.msra.mxu0 %v2011
        %2429 = vmatprep.subr.bf16.mxu0 %v2014
        %2430 = vmatpush1.bf16.msra.mxu0 %v2013
        %2431 = vmatprep.subr.bf16.mxu0 %v2016
        %2432 = vmatpush1.bf16.msra.mxu0 %v2015
        %2433 = vmatprep.subr.bf16.mxu0 %v2018
        %2434 = vmatpush1.bf16.msra.mxu0 %v2017
        %2435 = vmatprep.subr.bf16.mxu0 %v2020
        %2436 = vmatpush1.bf16.msra.mxu0 %v2019
        %2437 = vmatprep.subr.bf16.mxu0 %v2022
        %2438 = vmatpush1.bf16.msra.mxu0 %v2021
        %2439 = vmatprep.subr.bf16.mxu0 %v2024
        %2440 = vmatpush1.bf16.msra.mxu0 %v2023
        %2441 = vmatprep.mubr.bf16.mxu0 %v2346
        %2442 = vmatmul.mubr.bf16.gmra.mrb[0].mxu0 %v2345
        %v2443 = vpop.f32.mrb[0].mxu0
        %v2444 = vadd.f32 %v2092, %v2443
        %v2445 = vpop.f32.mrb[0].mxu0
        %v2446 = vadd.f32 %v2092, %v2445
        %v2447 = vpop.f32.mrb[0].mxu0
        %v2448 = vadd.f32 %v2097, %v2447
        %v2449 = vpop.f32.mrb[0].mxu0
        %v2450 = vadd.f32 %v2097, %v2449
        %2451 = vmatprep.mubr.bf16.mxu0 %v2348
        %2452 = vmatmul.mubr.bf16.gmra.mrb[0].mxu0 %v2347
        %v2453 = vpop.f32.mrb[0].mxu0
        %v2454 = vadd.f32 %v2102, %v2453
        %v2455 = vpop.f32.mrb[0].mxu0
        %v2456 = vadd.f32 %v2102, %v2455
        %v2457 = vpop.f32.mrb[0].mxu0
        %v2458 = vadd.f32 %v2107, %v2457
        %v2459 = vpop.f32.mrb[0].mxu0
        %v2460 = vadd.f32 %v2107, %v2459
        %2461 = vmatprep.mubr.bf16.mxu0 %v2350
        %2462 = vmatmul.mubr.bf16.gmra.mrb[0].mxu0 %v2349
        %v2463 = vpop.f32.mrb[0].mxu0
        %v2464 = vadd.f32 %v2112, %v2463
        %v2465 = vpop.f32.mrb[0].mxu0
        %v2466 = vadd.f32 %v2112, %v2465
        %v2467 = vpop.f32.mrb[0].mxu0
        %v2468 = vadd.f32 %v2117, %v2467
        %v2469 = vpop.f32.mrb[0].mxu0
        %v2470 = vadd.f32 %v2117, %v2469
        %2471 = vmatprep.mubr.bf16.mxu0 %v2352
        %2472 = vmatmul.mubr.bf16.gmra.mrb[0].mxu0 %v2351
        %v2473 = vpop.f32.mrb[0].mxu0
        %v2474 = vadd.f32 %v2122, %v2473
        %v2475 = vpop.f32.mrb[0].mxu0
        %v2476 = vadd.f32 %v2122, %v2475
        %v2477 = vpop.f32.mrb[0].mxu0
        %v2478 = vadd.f32 %v2127, %v2477
        %v2479 = vpop.f32.mrb[0].mxu0
        %v2480 = vadd.f32 %v2127, %v2479
        %2481 = vmatprep.mubr.bf16.mxu0 %v2354
        %2482 = vmatmul.mubr.bf16.gmra.mrb[0].mxu0 %v2353
        %v2483 = vpop.f32.mrb[0].mxu0
        %v2484 = vadd.f32 %v2132, %v2483
        %v2485 = vpop.f32.mrb[0].mxu0
        %v2486 = vadd.f32 %v2132, %v2485
        %v2487 = vpop.f32.mrb[0].mxu0
        %v2488 = vadd.f32 %v2137, %v2487
        %v2489 = vpop.f32.mrb[0].mxu0
        %v2490 = vadd.f32 %v2137, %v2489
        %2491 = vmatprep.mubr.bf16.mxu0 %v2356
        %2492 = vmatmul.mubr.bf16.gmra.mrb[0].mxu0 %v2355
        %v2493 = vpop.f32.mrb[0].mxu0
        %v2494 = vadd.f32 %v2142, %v2493
        %v2495 = vpop.f32.mrb[0].mxu0
        %v2496 = vadd.f32 %v2142, %v2495
        %v2497 = vpop.f32.mrb[0].mxu0
        %v2498 = vadd.f32 %v2147, %v2497
        %v2499 = vpop.f32.mrb[0].mxu0
        %v2500 = vadd.f32 %v2147, %v2499
        %2501 = vmatprep.mubr.bf16.mxu0 %v2358
        %2502 = vmatmul.mubr.bf16.gmra.mrb[0].mxu0 %v2357
        %v2503 = vpop.f32.mrb[0].mxu0
        %v2504 = vadd.f32 %v2152, %v2503
        %v2505 = vpop.f32.mrb[0].mxu0
        %v2506 = vadd.f32 %v2152, %v2505
        %v2507 = vpop.f32.mrb[0].mxu0
        %v2508 = vadd.f32 %v2157, %v2507
        %v2509 = vpop.f32.mrb[0].mxu0
        %v2510 = vadd.f32 %v2157, %v2509
        %2511 = vmatprep.mubr.bf16.mxu0 %v2360
        %2512 = vmatmul.mubr.bf16.gmra.mrb[0].mxu0 %v2359
        %v2513 = vpop.f32.mrb[0].mxu0
        %v2514 = vadd.f32 %v2162, %v2513
        %v2515 = vpop.f32.mrb[0].mxu0
        %v2516 = vadd.f32 %v2162, %v2515
        %v2517 = vpop.f32.mrb[0].mxu0
        %v2518 = vadd.f32 %v2167, %v2517
        %v2519 = vpop.f32.mrb[0].mxu0
        %v2520 = vadd.f32 %v2167, %v2519
        %2521 = vmatprep.mubr.bf16.mxu0 %v2362
        %2522 = vmatmul.mubr.bf16.gmra.mrb[0].mxu0 %v2361
        %v2523 = vpop.f32.mrb[0].mxu0
        %v2524 = vadd.f32 %v2172, %v2523
        %v2525 = vpop.f32.mrb[0].mxu0
        %v2526 = vadd.f32 %v2172, %v2525
        %v2527 = vpop.f32.mrb[0].mxu0
        %v2528 = vadd.f32 %v2177, %v2527
        %v2529 = vpop.f32.mrb[0].mxu0
        %v2530 = vadd.f32 %v2177, %v2529
        %2531 = vmatprep.mubr.bf16.mxu0 %v2364
        %2532 = vmatmul.mubr.bf16.gmra.mrb[0].mxu0 %v2363
        %v2533 = vpop.f32.mrb[0].mxu0
        %v2534 = vadd.f32 %v2182, %v2533
        %v2535 = vpop.f32.mrb[0].mxu0
        %v2536 = vadd.f32 %v2182, %v2535
        %v2537 = vpop.f32.mrb[0].mxu0
        %v2538 = vadd.f32 %v2187, %v2537
        %v2539 = vpop.f32.mrb[0].mxu0
        %v2540 = vadd.f32 %v2187, %v2539
        %2541 = vmatprep.mubr.bf16.mxu0 %v2366
        %2542 = vmatmul.mubr.bf16.gmra.mrb[0].mxu0 %v2365
        %v2543 = vpop.f32.mrb[0].mxu0
        %v2544 = vadd.f32 %v2192, %v2543
        %v2545 = vpop.f32.mrb[0].mxu0
        %v2546 = vadd.f32 %v2192, %v2545
        %v2547 = vpop.f32.mrb[0].mxu0
        %v2548 = vadd.f32 %v2197, %v2547
        %v2549 = vpop.f32.mrb[0].mxu0
        %v2550 = vadd.f32 %v2197, %v2549
        %2551 = vmatprep.mubr.bf16.mxu0 %v2368
        %2552 = vmatmul.mubr.bf16.gmra.mrb[0].mxu0 %v2367
        %v2553 = vpop.f32.mrb[0].mxu0
        %v2554 = vadd.f32 %v2202, %v2553
        %v2555 = vpop.f32.mrb[0].mxu0
        %v2556 = vadd.f32 %v2202, %v2555
        %v2557 = vpop.f32.mrb[0].mxu0
        %v2558 = vadd.f32 %v2207, %v2557
        %v2559 = vpop.f32.mrb[0].mxu0
        %v2560 = vadd.f32 %v2207, %v2559
        %2561 = vmatprep.mubr.bf16.mxu0 %v2370
        %2562 = vmatmul.mubr.bf16.gmra.mrb[0].mxu0 %v2369
        %v2563 = vpop.f32.mrb[0].mxu0
        %v2564 = vadd.f32 %v2212, %v2563
        %v2565 = vpop.f32.mrb[0].mxu0
        %v2566 = vadd.f32 %v2212, %v2565
        %v2567 = vpop.f32.mrb[0].mxu0
        %v2568 = vadd.f32 %v2217, %v2567
        %v2569 = vpop.f32.mrb[0].mxu0
        %v2570 = vadd.f32 %v2217, %v2569
        %2571 = vmatprep.mubr.bf16.mxu0 %v2372
        %2572 = vmatmul.mubr.bf16.gmra.mrb[0].mxu0 %v2371
        %v2573 = vpop.f32.mrb[0].mxu0
        %v2574 = vadd.f32 %v2222, %v2573
        %v2575 = vpop.f32.mrb[0].mxu0
        %v2576 = vadd.f32 %v2222, %v2575
        %v2577 = vpop.f32.mrb[0].mxu0
        %v2578 = vadd.f32 %v2227, %v2577
        %v2579 = vpop.f32.mrb[0].mxu0
        %v2580 = vadd.f32 %v2227, %v2579
        %2581 = vmatprep.mubr.bf16.mxu0 %v2374
        %2582 = vmatmul.mubr.bf16.gmra.mrb[0].mxu0 %v2373
        %v2583 = vpop.f32.mrb[0].mxu0
        %v2584 = vadd.f32 %v2232, %v2583
        %v2585 = vpop.f32.mrb[0].mxu0
        %v2586 = vadd.f32 %v2232, %v2585
        %v2587 = vpop.f32.mrb[0].mxu0
        %v2588 = vadd.f32 %v2237, %v2587
        %v2589 = vpop.f32.mrb[0].mxu0
        %v2590 = vadd.f32 %v2237, %v2589
        %2591 = vmatprep.mubr.bf16.mxu0 %v2376
        %2592 = vmatmul.mubr.bf16.gmra.mrb[0].mxu0 %v2375
        %v2593 = vpop.f32.mrb[0].mxu0
        %v2594 = vadd.f32 %v2242, %v2593
        %v2595 = vpop.f32.mrb[0].mxu0
        %v2596 = vadd.f32 %v2242, %v2595
        %v2597 = vpop.f32.mrb[0].mxu0
        %v2598 = vadd.f32 %v2247, %v2597
        %v2599 = vpop.f32.mrb[0].mxu0
        %v2600 = vadd.f32 %v2247, %v2599
        %2601 = vdwg.mxu0
        %v2602 = vmax.f32 %v2444, 0.0
        %v2603 = vmax.f32 %v2446, 0.0
        %v2604 = vmax.f32 %v2448, 0.0
        %v2605 = vmax.f32 %v2450, 0.0
        %v2606 = vmax.f32 %v2454, 0.0
        %v2607 = vmax.f32 %v2456, 0.0
        %v2608 = vmax.f32 %v2458, 0.0
        %v2609 = vmax.f32 %v2460, 0.0
        %v2610 = vmax.f32 %v2464, 0.0
        %v2611 = vmax.f32 %v2466, 0.0
        %v2612 = vmax.f32 %v2468, 0.0
        %v2613 = vmax.f32 %v2470, 0.0
        %v2614 = vmax.f32 %v2474, 0.0
        %v2615 = vmax.f32 %v2476, 0.0
        %v2616 = vmax.f32 %v2478, 0.0
        %v2617 = vmax.f32 %v2480, 0.0
        %v2618 = vmax.f32 %v2484, 0.0
        %v2619 = vmax.f32 %v2486, 0.0
        %v2620 = vmax.f32 %v2488, 0.0
        %v2621 = vmax.f32 %v2490, 0.0
        %v2622 = vmax.f32 %v2494, 0.0
        %v2623 = vmax.f32 %v2496, 0.0
        %v2624 = vmax.f32 %v2498, 0.0
        %v2625 = vmax.f32 %v2500, 0.0
        %v2626 = vmax.f32 %v2504, 0.0
        %v2627 = vmax.f32 %v2506, 0.0
        %v2628 = vmax.f32 %v2508, 0.0
        %v2629 = vmax.f32 %v2510, 0.0
        %v2630 = vmax.f32 %v2514, 0.0
        %v2631 = vmax.f32 %v2516, 0.0
        %v2632 = vmax.f32 %v2518, 0.0
        %v2633 = vmax.f32 %v2520, 0.0
        %v2634 = vmax.f32 %v2524, 0.0
        %v2635 = vmax.f32 %v2526, 0.0
        %v2636 = vmax.f32 %v2528, 0.0
        %v2637 = vmax.f32 %v2530, 0.0
        %v2638 = vmax.f32 %v2534, 0.0
        %v2639 = vmax.f32 %v2536, 0.0
        %v2640 = vmax.f32 %v2538, 0.0
        %v2641 = vmax.f32 %v2540, 0.0
        %v2642 = vmax.f32 %v2544, 0.0
        %v2643 = vmax.f32 %v2546, 0.0
        %v2644 = vmax.f32 %v2548, 0.0
        %v2645 = vmax.f32 %v2550, 0.0
        %v2646 = vmax.f32 %v2554, 0.0
        %v2647 = vmax.f32 %v2556, 0.0
        %v2648 = vmax.f32 %v2558, 0.0
        %v2649 = vmax.f32 %v2560, 0.0
        %v2650 = vmax.f32 %v2564, 0.0
        %v2651 = vmax.f32 %v2566, 0.0
        %v2652 = vmax.f32 %v2568, 0.0
        %v2653 = vmax.f32 %v2570, 0.0
        %v2654 = vmax.f32 %v2574, 0.0
        %v2655 = vmax.f32 %v2576, 0.0
        %v2656 = vmax.f32 %v2578, 0.0
        %v2657 = vmax.f32 %v2580, 0.0
        %v2658 = vmax.f32 %v2584, 0.0
        %v2659 = vmax.f32 %v2586, 0.0
        %v2660 = vmax.f32 %v2588, 0.0
        %v2661 = vmax.f32 %v2590, 0.0
        %v2662 = vmax.f32 %v2594, 0.0
        %v2663 = vmax.f32 %v2596, 0.0
        %v2664 = vmax.f32 %v2598, 0.0
        %v2665 = vmax.f32 %v2600, 0.0
        %v2666 = vpack.c.bf16 %v2604, %v2602
        %v2667 = vpack.c.bf16 %v2605, %v2603
        %v2668 = vpack.c.bf16 %v2608, %v2606
        %v2669 = vpack.c.bf16 %v2609, %v2607
        %v2670 = vpack.c.bf16 %v2612, %v2610
        %v2671 = vpack.c.bf16 %v2613, %v2611
        %v2672 = vpack.c.bf16 %v2616, %v2614
        %v2673 = vpack.c.bf16 %v2617, %v2615
        %v2674 = vpack.c.bf16 %v2620, %v2618
        %v2675 = vpack.c.bf16 %v2621, %v2619
        %v2676 = vpack.c.bf16 %v2624, %v2622
        %v2677 = vpack.c.bf16 %v2625, %v2623
        %v2678 = vpack.c.bf16 %v2628, %v2626
        %v2679 = vpack.c.bf16 %v2629, %v2627
        %v2680 = vpack.c.bf16 %v2632, %v2630
        %v2681 = vpack.c.bf16 %v2633, %v2631
        %v2682 = vpack.c.bf16 %v2636, %v2634
        %v2683 = vpack.c.bf16 %v2637, %v2635
        %v2684 = vpack.c.bf16 %v2640, %v2638
        %v2685 = vpack.c.bf16 %v2641, %v2639
        %v2686 = vpack.c.bf16 %v2644, %v2642
        %v2687 = vpack.c.bf16 %v2645, %v2643
        %v2688 = vpack.c.bf16 %v2648, %v2646
        %v2689 = vpack.c.bf16 %v2649, %v2647
        %v2690 = vpack.c.bf16 %v2652, %v2650
        %v2691 = vpack.c.bf16 %v2653, %v2651
        %v2692 = vpack.c.bf16 %v2656, %v2654
        %v2693 = vpack.c.bf16 %v2657, %v2655
        %v2694 = vpack.c.bf16 %v2660, %v2658
        %v2695 = vpack.c.bf16 %v2661, %v2659
        %v2696 = vpack.c.bf16 %v2664, %v2662
        %v2697 = vpack.c.bf16 %v2665, %v2663
        %v2698 = vld [vmem:[%s6] sm:$0xff]
        %v2699 = vld [vmem:[%s6 + $0x8] sm:$0xff]
        %v2700 = vld [vmem:[%s6 + $0x10] sm:$0xff]
        %v2701 = vld [vmem:[%s6 + $0x18] sm:$0xff]
        %v2702 = vld [vmem:[%s6 + $0x20] sm:$0xff]
        %v2703 = vld [vmem:[%s6 + $0x28] sm:$0xff]
        %v2704 = vld [vmem:[%s6 + $0x30] sm:$0xff]
        %v2705 = vld [vmem:[%s6 + $0x38] sm:$0xff]
        %v2706 = vld [vmem:[%s6 + $0x40] sm:$0xff]
        %v2707 = vld [vmem:[%s6 + $0x48] sm:$0xff]
        %v2708 = vld [vmem:[%s6 + $0x50] sm:$0xff]
        %v2709 = vld [vmem:[%s6 + $0x58] sm:$0xff]
        %v2710 = vld [vmem:[%s6 + $0x60] sm:$0xff]
        %v2711 = vld [vmem:[%s6 + $0x68] sm:$0xff]
        %v2712 = vld [vmem:[%s6 + $0x70] sm:$0xff]
        %v2713 = vld [vmem:[%s6 + $0x78] sm:$0xff]
        %v2714 = vld [vmem:[%s6 + $0x80] sm:$0xff]
        %v2715 = vld [vmem:[%s6 + $0x88] sm:$0xff]
        %v2716 = vld [vmem:[%s6 + $0x90] sm:$0xff]
        %v2717 = vld [vmem:[%s6 + $0x98] sm:$0xff]
        %v2718 = vld [vmem:[%s6 + $0xa0] sm:$0xff]
        %v2719 = vld [vmem:[%s6 + $0xa8] sm:$0xff]
        %v2720 = vld [vmem:[%s6 + $0xb0] sm:$0xff]
        %v2721 = vld [vmem:[%s6 + $0xb8] sm:$0xff]
        %v2722 = vld [vmem:[%s6 + $0xc0] sm:$0xff]
        %v2723 = vld [vmem:[%s6 + $0xc8] sm:$0xff]
        %v2724 = vld [vmem:[%s6 + $0xd0] sm:$0xff]
        %v2725 = vld [vmem:[%s6 + $0xd8] sm:$0xff]
        %v2726 = vld [vmem:[%s6 + $0xe0] sm:$0xff]
        %v2727 = vld [vmem:[%s6 + $0xe8] sm:$0xff]
        %v2728 = vld [vmem:[%s6 + $0xf0] sm:$0xff]
        %v2729 = vld [vmem:[%s6 + $0xf8] sm:$0xff]
        %v2730 = vld [vmem:[%s7] sm:$0xff]
        %v2731 = vld [vmem:[%s7 + $0x8] sm:$0xff]
        %v2732 = vld [vmem:[%s7 + $0x10] sm:$0xff]
        %v2733 = vld [vmem:[%s7 + $0x18] sm:$0xff]
        %v2734 = vld [vmem:[%s7 + $0x20] sm:$0xff]
        %v2735 = vld [vmem:[%s7 + $0x28] sm:$0xff]
        %v2736 = vld [vmem:[%s7 + $0x30] sm:$0xff]
        %v2737 = vld [vmem:[%s7 + $0x38] sm:$0xff]
        %v2738 = vld [vmem:[%s7 + $0x40] sm:$0xff]
        %v2739 = vld [vmem:[%s7 + $0x48] sm:$0xff]
        %v2740 = vld [vmem:[%s7 + $0x50] sm:$0xff]
        %v2741 = vld [vmem:[%s7 + $0x58] sm:$0xff]
        %v2742 = vld [vmem:[%s7 + $0x60] sm:$0xff]
        %v2743 = vld [vmem:[%s7 + $0x68] sm:$0xff]
        %v2744 = vld [vmem:[%s7 + $0x70] sm:$0xff]
        %v2745 = vld [vmem:[%s7 + $0x78] sm:$0xff]
        %v2746 = vld [vmem:[%s7 + $0x80] sm:$0xff]
        %v2747 = vld [vmem:[%s7 + $0x88] sm:$0xff]
        %v2748 = vld [vmem:[%s7 + $0x90] sm:$0xff]
        %v2749 = vld [vmem:[%s7 + $0x98] sm:$0xff]
        %v2750 = vld [vmem:[%s7 + $0xa0] sm:$0xff]
        %v2751 = vld [vmem:[%s7 + $0xa8] sm:$0xff]
        %v2752 = vld [vmem:[%s7 + $0xb0] sm:$0xff]
        %v2753 = vld [vmem:[%s7 + $0xb8] sm:$0xff]
        %v2754 = vld [vmem:[%s7 + $0xc0] sm:$0xff]
        %v2755 = vld [vmem:[%s7 + $0xc8] sm:$0xff]
        %v2756 = vld [vmem:[%s7 + $0xd0] sm:$0xff]
        %v2757 = vld [vmem:[%s7 + $0xd8] sm:$0xff]
        %v2758 = vld [vmem:[%s7 + $0xe0] sm:$0xff]
        %v2759 = vld [vmem:[%s7 + $0xe8] sm:$0xff]
        %v2760 = vld [vmem:[%s7 + $0xf0] sm:$0xff]
        %v2761 = vld [vmem:[%s7 + $0xf8] sm:$0xff]
        %2763 = vset.pattern.permute.xlu0 0
        %2764 = vperm.xlu0 %2763, %v2730
        %v2765 = vpop.permute.xlu0 %2764
        %2768 = vset.pattern.permute.xlu0 0
        %2769 = vperm.xlu0 %2768, %v2731
        %v2770 = vpop.permute.xlu0 %2769
        %2773 = vset.pattern.permute.xlu0 0
        %2774 = vperm.xlu0 %2773, %v2732
        %v2775 = vpop.permute.xlu0 %2774
        %2778 = vset.pattern.permute.xlu0 0
        %2779 = vperm.xlu0 %2778, %v2733
        %v2780 = vpop.permute.xlu0 %2779
        %2783 = vset.pattern.permute.xlu0 0
        %2784 = vperm.xlu0 %2783, %v2734
        %v2785 = vpop.permute.xlu0 %2784
        %2788 = vset.pattern.permute.xlu0 0
        %2789 = vperm.xlu0 %2788, %v2735
        %v2790 = vpop.permute.xlu0 %2789
        %2793 = vset.pattern.permute.xlu0 0
        %2794 = vperm.xlu0 %2793, %v2736
        %v2795 = vpop.permute.xlu0 %2794
        %2798 = vset.pattern.permute.xlu0 0
        %2799 = vperm.xlu0 %2798, %v2737
        %v2800 = vpop.permute.xlu0 %2799
        %2803 = vset.pattern.permute.xlu0 0
        %2804 = vperm.xlu0 %2803, %v2738
        %v2805 = vpop.permute.xlu0 %2804
        %2808 = vset.pattern.permute.xlu0 0
        %2809 = vperm.xlu0 %2808, %v2739
        %v2810 = vpop.permute.xlu0 %2809
        %2813 = vset.pattern.permute.xlu0 0
        %2814 = vperm.xlu0 %2813, %v2740
        %v2815 = vpop.permute.xlu0 %2814
        %2818 = vset.pattern.permute.xlu0 0
        %2819 = vperm.xlu0 %2818, %v2741
        %v2820 = vpop.permute.xlu0 %2819
        %2823 = vset.pattern.permute.xlu0 0
        %2824 = vperm.xlu0 %2823, %v2742
        %v2825 = vpop.permute.xlu0 %2824
        %2828 = vset.pattern.permute.xlu0 0
        %2829 = vperm.xlu0 %2828, %v2743
        %v2830 = vpop.permute.xlu0 %2829
        %2833 = vset.pattern.permute.xlu0 0
        %2834 = vperm.xlu0 %2833, %v2744
        %v2835 = vpop.permute.xlu0 %2834
        %2838 = vset.pattern.permute.xlu0 0
        %2839 = vperm.xlu0 %2838, %v2745
        %v2840 = vpop.permute.xlu0 %2839
        %2843 = vset.pattern.permute.xlu0 0
        %2844 = vperm.xlu0 %2843, %v2746
        %v2845 = vpop.permute.xlu0 %2844
        %2848 = vset.pattern.permute.xlu0 0
        %2849 = vperm.xlu0 %2848, %v2747
        %v2850 = vpop.permute.xlu0 %2849
        %2853 = vset.pattern.permute.xlu0 0
        %2854 = vperm.xlu0 %2853, %v2748
        %v2855 = vpop.permute.xlu0 %2854
        %2858 = vset.pattern.permute.xlu0 0
        %2859 = vperm.xlu0 %2858, %v2749
        %v2860 = vpop.permute.xlu0 %2859
        %2863 = vset.pattern.permute.xlu0 0
        %2864 = vperm.xlu0 %2863, %v2750
        %v2865 = vpop.permute.xlu0 %2864
        %2868 = vset.pattern.permute.xlu0 0
        %2869 = vperm.xlu0 %2868, %v2751
        %v2870 = vpop.permute.xlu0 %2869
        %2873 = vset.pattern.permute.xlu0 0
        %2874 = vperm.xlu0 %2873, %v2752
        %v2875 = vpop.permute.xlu0 %2874
        %2878 = vset.pattern.permute.xlu0 0
        %2879 = vperm.xlu0 %2878, %v2753
        %v2880 = vpop.permute.xlu0 %2879
        %2883 = vset.pattern.permute.xlu0 0
        %2884 = vperm.xlu0 %2883, %v2754
        %v2885 = vpop.permute.xlu0 %2884
        %2888 = vset.pattern.permute.xlu0 0
        %2889 = vperm.xlu0 %2888, %v2755
        %v2890 = vpop.permute.xlu0 %2889
        %2893 = vset.pattern.permute.xlu0 0
        %2894 = vperm.xlu0 %2893, %v2756
        %v2895 = vpop.permute.xlu0 %2894
        %2898 = vset.pattern.permute.xlu0 0
        %2899 = vperm.xlu0 %2898, %v2757
        %v2900 = vpop.permute.xlu0 %2899
        %2903 = vset.pattern.permute.xlu0 0
        %2904 = vperm.xlu0 %2903, %v2758
        %v2905 = vpop.permute.xlu0 %2904
        %2908 = vset.pattern.permute.xlu0 0
        %2909 = vperm.xlu0 %2908, %v2759
        %v2910 = vpop.permute.xlu0 %2909
        %2913 = vset.pattern.permute.xlu0 0
        %2914 = vperm.xlu0 %2913, %v2760
        %v2915 = vpop.permute.xlu0 %2914
        %2918 = vset.pattern.permute.xlu0 0
        %2919 = vperm.xlu0 %2918, %v2761
        %v2920 = vpop.permute.xlu0 %2919
        %v2954 = vunpack.c.l.b16 %v2698
        %v2955 = vunpack.c.h.b16 %v2698
        %v2956 = vunpack.c.l.b16 %v2699
        %v2957 = vunpack.c.h.b16 %v2699
        %v2958 = vunpack.c.l.b16 %v2700
        %v2959 = vunpack.c.h.b16 %v2700
        %v2960 = vunpack.c.l.b16 %v2701
        %v2961 = vunpack.c.h.b16 %v2701
        %v2962 = vunpack.c.l.b16 %v2702
        %v2963 = vunpack.c.h.b16 %v2702
        %v2964 = vunpack.c.l.b16 %v2703
        %v2965 = vunpack.c.h.b16 %v2703
        %v2966 = vunpack.c.l.b16 %v2704
        %v2967 = vunpack.c.h.b16 %v2704
        %v2968 = vunpack.c.l.b16 %v2705
        %v2969 = vunpack.c.h.b16 %v2705
        %v2970 = vunpack.c.l.b16 %v2706
        %v2971 = vunpack.c.h.b16 %v2706
        %v2972 = vunpack.c.l.b16 %v2707
        %v2973 = vunpack.c.h.b16 %v2707
        %v2974 = vunpack.c.l.b16 %v2708
        %v2975 = vunpack.c.h.b16 %v2708
        %v2976 = vunpack.c.l.b16 %v2709
        %v2977 = vunpack.c.h.b16 %v2709
        %v2978 = vunpack.c.l.b16 %v2710
        %v2979 = vunpack.c.h.b16 %v2710
        %v2980 = vunpack.c.l.b16 %v2711
        %v2981 = vunpack.c.h.b16 %v2711
        %v2982 = vunpack.c.l.b16 %v2712
        %v2983 = vunpack.c.h.b16 %v2712
        %v2984 = vunpack.c.l.b16 %v2713
        %v2985 = vunpack.c.h.b16 %v2713
        %v2986 = vunpack.c.l.b16 %v2714
        %v2987 = vunpack.c.h.b16 %v2714
        %v2988 = vunpack.c.l.b16 %v2715
        %v2989 = vunpack.c.h.b16 %v2715
        %v2990 = vunpack.c.l.b16 %v2716
        %v2991 = vunpack.c.h.b16 %v2716
        %v2992 = vunpack.c.l.b16 %v2717
        %v2993 = vunpack.c.h.b16 %v2717
        %v2994 = vunpack.c.l.b16 %v2718
        %v2995 = vunpack.c.h.b16 %v2718
        %v2996 = vunpack.c.l.b16 %v2719
        %v2997 = vunpack.c.h.b16 %v2719
        %v2998 = vunpack.c.l.b16 %v2720
        %v2999 = vunpack.c.h.b16 %v2720
        %v3000 = vunpack.c.l.b16 %v2721
        %v3001 = vunpack.c.h.b16 %v2721
        %v3002 = vunpack.c.l.b16 %v2722
        %v3003 = vunpack.c.h.b16 %v2722
        %v3004 = vunpack.c.l.b16 %v2723
        %v3005 = vunpack.c.h.b16 %v2723
        %v3006 = vunpack.c.l.b16 %v2724
        %v3007 = vunpack.c.h.b16 %v2724
        %v3008 = vunpack.c.l.b16 %v2725
        %v3009 = vunpack.c.h.b16 %v2725
        %v3010 = vunpack.c.l.b16 %v2726
        %v3011 = vunpack.c.h.b16 %v2726
        %v3012 = vunpack.c.l.b16 %v2727
        %v3013 = vunpack.c.h.b16 %v2727
        %v3014 = vunpack.c.l.b16 %v2728
        %v3015 = vunpack.c.h.b16 %v2728
        %v3016 = vunpack.c.l.b16 %v2729
        %v3017 = vunpack.c.h.b16 %v2729
        %v3018 = vpack.c.b16 %v2956, %v2954
        %v3019 = vpack.c.b16 %v2957, %v2955
        %v3020 = vpack.c.b16 %v2960, %v2958
        %v3021 = vpack.c.b16 %v2961, %v2959
        %v3022 = vpack.c.b16 %v2964, %v2962
        %v3023 = vpack.c.b16 %v2965, %v2963
        %v3024 = vpack.c.b16 %v2968, %v2966
        %v3025 = vpack.c.b16 %v2969, %v2967
        %v3026 = vpack.c.b16 %v2972, %v2970
        %v3027 = vpack.c.b16 %v2973, %v2971
        %v3028 = vpack.c.b16 %v2976, %v2974
        %v3029 = vpack.c.b16 %v2977, %v2975
        %v3030 = vpack.c.b16 %v2980, %v2978
        %v3031 = vpack.c.b16 %v2981, %v2979
        %v3032 = vpack.c.b16 %v2984, %v2982
        %v3033 = vpack.c.b16 %v2985, %v2983
        %v3034 = vpack.c.b16 %v2988, %v2986
        %v3035 = vpack.c.b16 %v2989, %v2987
        %v3036 = vpack.c.b16 %v2992, %v2990
        %v3037 = vpack.c.b16 %v2993, %v2991
        %v3038 = vpack.c.b16 %v2996, %v2994
        %v3039 = vpack.c.b16 %v2997, %v2995
        %v3040 = vpack.c.b16 %v3000, %v2998
        %v3041 = vpack.c.b16 %v3001, %v2999
        %v3042 = vpack.c.b16 %v3004, %v3002
        %v3043 = vpack.c.b16 %v3005, %v3003
        %v3044 = vpack.c.b16 %v3008, %v3006
        %v3045 = vpack.c.b16 %v3009, %v3007
        %v3046 = vpack.c.b16 %v3012, %v3010
        %v3047 = vpack.c.b16 %v3013, %v3011
        %v3048 = vpack.c.b16 %v3016, %v3014
        %v3049 = vpack.c.b16 %v3017, %v3015
        %3082 = vmatprep.subr.bf16.mxu0 %v2667
        %3083 = vmatpush1.bf16.msra.mxu0 %v2666
        %3084 = vmatprep.subr.bf16.mxu0 %v2669
        %3085 = vmatpush1.bf16.msra.mxu0 %v2668
        %3086 = vmatprep.subr.bf16.mxu0 %v2671
        %3087 = vmatpush1.bf16.msra.mxu0 %v2670
        %3088 = vmatprep.subr.bf16.mxu0 %v2673
        %3089 = vmatpush1.bf16.msra.mxu0 %v2672
        %3090 = vmatprep.subr.bf16.mxu0 %v2675
        %3091 = vmatpush1.bf16.msra.mxu0 %v2674
        %3092 = vmatprep.subr.bf16.mxu0 %v2677
        %3093 = vmatpush1.bf16.msra.mxu0 %v2676
        %3094 = vmatprep.subr.bf16.mxu0 %v2679
        %3095 = vmatpush1.bf16.msra.mxu0 %v2678
        %3096 = vmatprep.subr.bf16.mxu0 %v2681
        %3097 = vmatpush1.bf16.msra.mxu0 %v2680
        %3098 = vmatprep.subr.bf16.mxu0 %v2683
        %3099 = vmatpush1.bf16.msra.mxu0 %v2682
        %3100 = vmatprep.subr.bf16.mxu0 %v2685
        %3101 = vmatpush1.bf16.msra.mxu0 %v2684
        %3102 = vmatprep.subr.bf16.mxu0 %v2687
        %3103 = vmatpush1.bf16.msra.mxu0 %v2686
        %3104 = vmatprep.subr.bf16.mxu0 %v2689
        %3105 = vmatpush1.bf16.msra.mxu0 %v2688
        %3106 = vmatprep.subr.bf16.mxu0 %v2691
        %3107 = vmatpush1.bf16.msra.mxu0 %v2690
        %3108 = vmatprep.subr.bf16.mxu0 %v2693
        %3109 = vmatpush1.bf16.msra.mxu0 %v2692
        %3110 = vmatprep.subr.bf16.mxu0 %v2695
        %3111 = vmatpush1.bf16.msra.mxu0 %v2694
        %3112 = vmatprep.subr.bf16.mxu0 %v2697
        %3113 = vmatpush1.bf16.msra.mxu0 %v2696
        %3114 = vmatprep.mubr.bf16.mxu0 %v3019
        %3115 = vmatmul.mubr.bf16.gmra.mrb[0].mxu0 %v3018
        %v3116 = vpop.f32.mrb[0].mxu0
        %v3117 = vadd.f32 %v2765, %v3116
        %v3118 = vpop.f32.mrb[0].mxu0
        %v3119 = vadd.f32 %v2765, %v3118
        %v3120 = vpop.f32.mrb[0].mxu0
        %v3121 = vadd.f32 %v2770, %v3120
        %v3122 = vpop.f32.mrb[0].mxu0
        %v3123 = vadd.f32 %v2770, %v3122
        %3124 = vmatprep.mubr.bf16.mxu0 %v3021
        %3125 = vmatmul.mubr.bf16.gmra.mrb[0].mxu0 %v3020
        %v3126 = vpop.f32.mrb[0].mxu0
        %v3127 = vadd.f32 %v2775, %v3126
        %v3128 = vpop.f32.mrb[0].mxu0
        %v3129 = vadd.f32 %v2775, %v3128
        %v3130 = vpop.f32.mrb[0].mxu0
        %v3131 = vadd.f32 %v2780, %v3130
        %v3132 = vpop.f32.mrb[0].mxu0
        %v3133 = vadd.f32 %v2780, %v3132
        %3134 = vmatprep.mubr.bf16.mxu0 %v3023
        %3135 = vmatmul.mubr.bf16.gmra.mrb[0].mxu0 %v3022
        %v3136 = vpop.f32.mrb[0].mxu0
        %v3137 = vadd.f32 %v2785, %v3136
        %v3138 = vpop.f32.mrb[0].mxu0
        %v3139 = vadd.f32 %v2785, %v3138
        %v3140 = vpop.f32.mrb[0].mxu0
        %v3141 = vadd.f32 %v2790, %v3140
        %v3142 = vpop.f32.mrb[0].mxu0
        %v3143 = vadd.f32 %v2790, %v3142
        %3144 = vmatprep.mubr.bf16.mxu0 %v3025
        %3145 = vmatmul.mubr.bf16.gmra.mrb[0].mxu0 %v3024
        %v3146 = vpop.f32.mrb[0].mxu0
        %v3147 = vadd.f32 %v2795, %v3146
        %v3148 = vpop.f32.mrb[0].mxu0
        %v3149 = vadd.f32 %v2795, %v3148
        %v3150 = vpop.f32.mrb[0].mxu0
        %v3151 = vadd.f32 %v2800, %v3150
        %v3152 = vpop.f32.mrb[0].mxu0
        %v3153 = vadd.f32 %v2800, %v3152
        %3154 = vmatprep.mubr.bf16.mxu0 %v3027
        %3155 = vmatmul.mubr.bf16.gmra.mrb[0].mxu0 %v3026
        %v3156 = vpop.f32.mrb[0].mxu0
        %v3157 = vadd.f32 %v2805, %v3156
        %v3158 = vpop.f32.mrb[0].mxu0
        %v3159 = vadd.f32 %v2805, %v3158
        %v3160 = vpop.f32.mrb[0].mxu0
        %v3161 = vadd.f32 %v2810, %v3160
        %v3162 = vpop.f32.mrb[0].mxu0
        %v3163 = vadd.f32 %v2810, %v3162
        %3164 = vmatprep.mubr.bf16.mxu0 %v3029
        %3165 = vmatmul.mubr.bf16.gmra.mrb[0].mxu0 %v3028
        %v3166 = vpop.f32.mrb[0].mxu0
        %v3167 = vadd.f32 %v2815, %v3166
        %v3168 = vpop.f32.mrb[0].mxu0
        %v3169 = vadd.f32 %v2815, %v3168
        %v3170 = vpop.f32.mrb[0].mxu0
        %v3171 = vadd.f32 %v2820, %v3170
        %v3172 = vpop.f32.mrb[0].mxu0
        %v3173 = vadd.f32 %v2820, %v3172
        %3174 = vmatprep.mubr.bf16.mxu0 %v3031
        %3175 = vmatmul.mubr.bf16.gmra.mrb[0].mxu0 %v3030
        %v3176 = vpop.f32.mrb[0].mxu0
        %v3177 = vadd.f32 %v2825, %v3176
        %v3178 = vpop.f32.mrb[0].mxu0
        %v3179 = vadd.f32 %v2825, %v3178
        %v3180 = vpop.f32.mrb[0].mxu0
        %v3181 = vadd.f32 %v2830, %v3180
        %v3182 = vpop.f32.mrb[0].mxu0
        %v3183 = vadd.f32 %v2830, %v3182
        %3184 = vmatprep.mubr.bf16.mxu0 %v3033
        %3185 = vmatmul.mubr.bf16.gmra.mrb[0].mxu0 %v3032
        %v3186 = vpop.f32.mrb[0].mxu0
        %v3187 = vadd.f32 %v2835, %v3186
        %v3188 = vpop.f32.mrb[0].mxu0
        %v3189 = vadd.f32 %v2835, %v3188
        %v3190 = vpop.f32.mrb[0].mxu0
        %v3191 = vadd.f32 %v2840, %v3190
        %v3192 = vpop.f32.mrb[0].mxu0
        %v3193 = vadd.f32 %v2840, %v3192
        %3194 = vmatprep.mubr.bf16.mxu0 %v3035
        %3195 = vmatmul.mubr.bf16.gmra.mrb[0].mxu0 %v3034
        %v3196 = vpop.f32.mrb[0].mxu0
        %v3197 = vadd.f32 %v2845, %v3196
        %v3198 = vpop.f32.mrb[0].mxu0
        %v3199 = vadd.f32 %v2845, %v3198
        %v3200 = vpop.f32.mrb[0].mxu0
        %v3201 = vadd.f32 %v2850, %v3200
        %v3202 = vpop.f32.mrb[0].mxu0
        %v3203 = vadd.f32 %v2850, %v3202
        %3204 = vmatprep.mubr.bf16.mxu0 %v3037
        %3205 = vmatmul.mubr.bf16.gmra.mrb[0].mxu0 %v3036
        %v3206 = vpop.f32.mrb[0].mxu0
        %v3207 = vadd.f32 %v2855, %v3206
        %v3208 = vpop.f32.mrb[0].mxu0
        %v3209 = vadd.f32 %v2855, %v3208
        %v3210 = vpop.f32.mrb[0].mxu0
        %v3211 = vadd.f32 %v2860, %v3210
        %v3212 = vpop.f32.mrb[0].mxu0
        %v3213 = vadd.f32 %v2860, %v3212
        %3214 = vmatprep.mubr.bf16.mxu0 %v3039
        %3215 = vmatmul.mubr.bf16.gmra.mrb[0].mxu0 %v3038
        %v3216 = vpop.f32.mrb[0].mxu0
        %v3217 = vadd.f32 %v2865, %v3216
        %v3218 = vpop.f32.mrb[0].mxu0
        %v3219 = vadd.f32 %v2865, %v3218
        %v3220 = vpop.f32.mrb[0].mxu0
        %v3221 = vadd.f32 %v2870, %v3220
        %v3222 = vpop.f32.mrb[0].mxu0
        %v3223 = vadd.f32 %v2870, %v3222
        %3224 = vmatprep.mubr.bf16.mxu0 %v3041
        %3225 = vmatmul.mubr.bf16.gmra.mrb[0].mxu0 %v3040
        %v3226 = vpop.f32.mrb[0].mxu0
        %v3227 = vadd.f32 %v2875, %v3226
        %v3228 = vpop.f32.mrb[0].mxu0
        %v3229 = vadd.f32 %v2875, %v3228
        %v3230 = vpop.f32.mrb[0].mxu0
        %v3231 = vadd.f32 %v2880, %v3230
        %v3232 = vpop.f32.mrb[0].mxu0
        %v3233 = vadd.f32 %v2880, %v3232
        %3234 = vmatprep.mubr.bf16.mxu0 %v3043
        %3235 = vmatmul.mubr.bf16.gmra.mrb[0].mxu0 %v3042
        %v3236 = vpop.f32.mrb[0].mxu0
        %v3237 = vadd.f32 %v2885, %v3236
        %v3238 = vpop.f32.mrb[0].mxu0
        %v3239 = vadd.f32 %v2885, %v3238
        %v3240 = vpop.f32.mrb[0].mxu0
        %v3241 = vadd.f32 %v2890, %v3240
        %v3242 = vpop.f32.mrb[0].mxu0
        %v3243 = vadd.f32 %v2890, %v3242
        %3244 = vmatprep.mubr.bf16.mxu0 %v3045
        %3245 = vmatmul.mubr.bf16.gmra.mrb[0].mxu0 %v3044
        %v3246 = vpop.f32.mrb[0].mxu0
        %v3247 = vadd.f32 %v2895, %v3246
        %v3248 = vpop.f32.mrb[0].mxu0
        %v3249 = vadd.f32 %v2895, %v3248
        %v3250 = vpop.f32.mrb[0].mxu0
        %v3251 = vadd.f32 %v2900, %v3250
        %v3252 = vpop.f32.mrb[0].mxu0
        %v3253 = vadd.f32 %v2900, %v3252
        %3254 = vmatprep.mubr.bf16.mxu0 %v3047
        %3255 = vmatmul.mubr.bf16.gmra.mrb[0].mxu0 %v3046
        %v3256 = vpop.f32.mrb[0].mxu0
        %v3257 = vadd.f32 %v2905, %v3256
        %v3258 = vpop.f32.mrb[0].mxu0
        %v3259 = vadd.f32 %v2905, %v3258
        %v3260 = vpop.f32.mrb[0].mxu0
        %v3261 = vadd.f32 %v2910, %v3260
        %v3262 = vpop.f32.mrb[0].mxu0
        %v3263 = vadd.f32 %v2910, %v3262
        %3264 = vmatprep.mubr.bf16.mxu0 %v3049
        %3265 = vmatmul.mubr.bf16.gmra.mrb[0].mxu0 %v3048
        %v3266 = vpop.f32.mrb[0].mxu0
        %v3267 = vadd.f32 %v2915, %v3266
        %v3268 = vpop.f32.mrb[0].mxu0
        %v3269 = vadd.f32 %v2915, %v3268
        %v3270 = vpop.f32.mrb[0].mxu0
        %v3271 = vadd.f32 %v2920, %v3270
        %v3272 = vpop.f32.mrb[0].mxu0
        %v3273 = vadd.f32 %v2920, %v3272
        %3274 = vdwg.mxu0
        %v3275 = vmax.f32 %v3117, 0.0
        %v3276 = vmax.f32 %v3119, 0.0
        %v3277 = vmax.f32 %v3121, 0.0
        %v3278 = vmax.f32 %v3123, 0.0
        %v3279 = vmax.f32 %v3127, 0.0
        %v3280 = vmax.f32 %v3129, 0.0
        %v3281 = vmax.f32 %v3131, 0.0
        %v3282 = vmax.f32 %v3133, 0.0
        %v3283 = vmax.f32 %v3137, 0.0
        %v3284 = vmax.f32 %v3139, 0.0
        %v3285 = vmax.f32 %v3141, 0.0
        %v3286 = vmax.f32 %v3143, 0.0
        %v3287 = vmax.f32 %v3147, 0.0
        %v3288 = vmax.f32 %v3149, 0.0
        %v3289 = vmax.f32 %v3151, 0.0
        %v3290 = vmax.f32 %v3153, 0.0
        %v3291 = vmax.f32 %v3157, 0.0
        %v3292 = vmax.f32 %v3159, 0.0
        %v3293 = vmax.f32 %v3161, 0.0
        %v3294 = vmax.f32 %v3163, 0.0
        %v3295 = vmax.f32 %v3167, 0.0
        %v3296 = vmax.f32 %v3169, 0.0
        %v3297 = vmax.f32 %v3171, 0.0
        %v3298 = vmax.f32 %v3173, 0.0
        %v3299 = vmax.f32 %v3177, 0.0
        %v3300 = vmax.f32 %v3179, 0.0
        %v3301 = vmax.f32 %v3181, 0.0
        %v3302 = vmax.f32 %v3183, 0.0
        %v3303 = vmax.f32 %v3187, 0.0
        %v3304 = vmax.f32 %v3189, 0.0
        %v3305 = vmax.f32 %v3191, 0.0
        %v3306 = vmax.f32 %v3193, 0.0
        %v3307 = vmax.f32 %v3197, 0.0
        %v3308 = vmax.f32 %v3199, 0.0
        %v3309 = vmax.f32 %v3201, 0.0
        %v3310 = vmax.f32 %v3203, 0.0
        %v3311 = vmax.f32 %v3207, 0.0
        %v3312 = vmax.f32 %v3209, 0.0
        %v3313 = vmax.f32 %v3211, 0.0
        %v3314 = vmax.f32 %v3213, 0.0
        %v3315 = vmax.f32 %v3217, 0.0
        %v3316 = vmax.f32 %v3219, 0.0
        %v3317 = vmax.f32 %v3221, 0.0
        %v3318 = vmax.f32 %v3223, 0.0
        %v3319 = vmax.f32 %v3227, 0.0
        %v3320 = vmax.f32 %v3229, 0.0
        %v3321 = vmax.f32 %v3231, 0.0
        %v3322 = vmax.f32 %v3233, 0.0
        %v3323 = vmax.f32 %v3237, 0.0
        %v3324 = vmax.f32 %v3239, 0.0
        %v3325 = vmax.f32 %v3241, 0.0
        %v3326 = vmax.f32 %v3243, 0.0
        %v3327 = vmax.f32 %v3247, 0.0
        %v3328 = vmax.f32 %v3249, 0.0
        %v3329 = vmax.f32 %v3251, 0.0
        %v3330 = vmax.f32 %v3253, 0.0
        %v3331 = vmax.f32 %v3257, 0.0
        %v3332 = vmax.f32 %v3259, 0.0
        %v3333 = vmax.f32 %v3261, 0.0
        %v3334 = vmax.f32 %v3263, 0.0
        %v3335 = vmax.f32 %v3267, 0.0
        %v3336 = vmax.f32 %v3269, 0.0
        %v3337 = vmax.f32 %v3271, 0.0
        %v3338 = vmax.f32 %v3273, 0.0
        %v3339 = vpack.c.bf16 %v3277, %v3275
        %v3340 = vpack.c.bf16 %v3278, %v3276
        %v3341 = vpack.c.bf16 %v3281, %v3279
        %v3342 = vpack.c.bf16 %v3282, %v3280
        %v3343 = vpack.c.bf16 %v3285, %v3283
        %v3344 = vpack.c.bf16 %v3286, %v3284
        %v3345 = vpack.c.bf16 %v3289, %v3287
        %v3346 = vpack.c.bf16 %v3290, %v3288
        %v3347 = vpack.c.bf16 %v3293, %v3291
        %v3348 = vpack.c.bf16 %v3294, %v3292
        %v3349 = vpack.c.bf16 %v3297, %v3295
        %v3350 = vpack.c.bf16 %v3298, %v3296
        %v3351 = vpack.c.bf16 %v3301, %v3299
        %v3352 = vpack.c.bf16 %v3302, %v3300
        %v3353 = vpack.c.bf16 %v3305, %v3303
        %v3354 = vpack.c.bf16 %v3306, %v3304
        %v3355 = vpack.c.bf16 %v3309, %v3307
        %v3356 = vpack.c.bf16 %v3310, %v3308
        %v3357 = vpack.c.bf16 %v3313, %v3311
        %v3358 = vpack.c.bf16 %v3314, %v3312
        %v3359 = vpack.c.bf16 %v3317, %v3315
        %v3360 = vpack.c.bf16 %v3318, %v3316
        %v3361 = vpack.c.bf16 %v3321, %v3319
        %v3362 = vpack.c.bf16 %v3322, %v3320
        %v3363 = vpack.c.bf16 %v3325, %v3323
        %v3364 = vpack.c.bf16 %v3326, %v3324
        %v3365 = vpack.c.bf16 %v3329, %v3327
        %v3366 = vpack.c.bf16 %v3330, %v3328
        %v3367 = vpack.c.bf16 %v3333, %v3331
        %v3368 = vpack.c.bf16 %v3334, %v3332
        %v3369 = vpack.c.bf16 %v3337, %v3335
        %v3370 = vpack.c.bf16 %v3338, %v3336
        %v3371 = vld [vmem:[%s8] sm:$0xff]
        %v3372 = vld [vmem:[%s8 + $0x8] sm:$0xff]
        %v3373 = vld [vmem:[%s8 + $0x10] sm:$0xff]
        %v3374 = vld [vmem:[%s8 + $0x18] sm:$0xff]
        %v3375 = vld [vmem:[%s8 + $0x20] sm:$0xff]
        %v3376 = vld [vmem:[%s8 + $0x28] sm:$0xff]
        %v3377 = vld [vmem:[%s8 + $0x30] sm:$0xff]
        %v3378 = vld [vmem:[%s8 + $0x38] sm:$0xff]
        %v3379 = vld [vmem:[%s8 + $0x40] sm:$0xff]
        %v3380 = vld [vmem:[%s8 + $0x48] sm:$0xff]
        %v3381 = vld [vmem:[%s8 + $0x50] sm:$0xff]
        %v3382 = vld [vmem:[%s8 + $0x58] sm:$0xff]
        %v3383 = vld [vmem:[%s8 + $0x60] sm:$0xff]
        %v3384 = vld [vmem:[%s8 + $0x68] sm:$0xff]
        %v3385 = vld [vmem:[%s8 + $0x70] sm:$0xff]
        %v3386 = vld [vmem:[%s8 + $0x78] sm:$0xff]
        %v3387 = vld [vmem:[%s8 + $0x80] sm:$0xff]
        %v3388 = vld [vmem:[%s8 + $0x88] sm:$0xff]
        %v3389 = vld [vmem:[%s8 + $0x90] sm:$0xff]
        %v3390 = vld [vmem:[%s8 + $0x98] sm:$0xff]
        %v3391 = vld [vmem:[%s8 + $0xa0] sm:$0xff]
        %v3392 = vld [vmem:[%s8 + $0xa8] sm:$0xff]
        %v3393 = vld [vmem:[%s8 + $0xb0] sm:$0xff]
        %v3394 = vld [vmem:[%s8 + $0xb8] sm:$0xff]
        %v3395 = vld [vmem:[%s8 + $0xc0] sm:$0xff]
        %v3396 = vld [vmem:[%s8 + $0xc8] sm:$0xff]
        %v3397 = vld [vmem:[%s8 + $0xd0] sm:$0xff]
        %v3398 = vld [vmem:[%s8 + $0xd8] sm:$0xff]
        %v3399 = vld [vmem:[%s8 + $0xe0] sm:$0xff]
        %v3400 = vld [vmem:[%s8 + $0xe8] sm:$0xff]
        %v3401 = vld [vmem:[%s8 + $0xf0] sm:$0xff]
        %v3402 = vld [vmem:[%s8 + $0xf8] sm:$0xff]
        %v3403 = vld [vmem:[%s9] sm:$0xff]
        %v3404 = vld [vmem:[%s9 + $0x8] sm:$0xff]
        %v3405 = vld [vmem:[%s9 + $0x10] sm:$0xff]
        %v3406 = vld [vmem:[%s9 + $0x18] sm:$0xff]
        %v3407 = vld [vmem:[%s9 + $0x20] sm:$0xff]
        %v3408 = vld [vmem:[%s9 + $0x28] sm:$0xff]
        %v3409 = vld [vmem:[%s9 + $0x30] sm:$0xff]
        %v3410 = vld [vmem:[%s9 + $0x38] sm:$0xff]
        %v3411 = vld [vmem:[%s9 + $0x40] sm:$0xff]
        %v3412 = vld [vmem:[%s9 + $0x48] sm:$0xff]
        %v3413 = vld [vmem:[%s9 + $0x50] sm:$0xff]
        %v3414 = vld [vmem:[%s9 + $0x58] sm:$0xff]
        %v3415 = vld [vmem:[%s9 + $0x60] sm:$0xff]
        %v3416 = vld [vmem:[%s9 + $0x68] sm:$0xff]
        %v3417 = vld [vmem:[%s9 + $0x70] sm:$0xff]
        %v3418 = vld [vmem:[%s9 + $0x78] sm:$0xff]
        %v3419 = vld [vmem:[%s9 + $0x80] sm:$0xff]
        %v3420 = vld [vmem:[%s9 + $0x88] sm:$0xff]
        %v3421 = vld [vmem:[%s9 + $0x90] sm:$0xff]
        %v3422 = vld [vmem:[%s9 + $0x98] sm:$0xff]
        %v3423 = vld [vmem:[%s9 + $0xa0] sm:$0xff]
        %v3424 = vld [vmem:[%s9 + $0xa8] sm:$0xff]
        %v3425 = vld [vmem:[%s9 + $0xb0] sm:$0xff]
        %v3426 = vld [vmem:[%s9 + $0xb8] sm:$0xff]
        %v3427 = vld [vmem:[%s9 + $0xc0] sm:$0xff]
        %v3428 = vld [vmem:[%s9 + $0xc8] sm:$0xff]
        %v3429 = vld [vmem:[%s9 + $0xd0] sm:$0xff]
        %v3430 = vld [vmem:[%s9 + $0xd8] sm:$0xff]
        %v3431 = vld [vmem:[%s9 + $0xe0] sm:$0xff]
        %v3432 = vld [vmem:[%s9 + $0xe8] sm:$0xff]
        %v3433 = vld [vmem:[%s9 + $0xf0] sm:$0xff]
        %v3434 = vld [vmem:[%s9 + $0xf8] sm:$0xff]
        %3436 = vset.pattern.permute.xlu0 0
        %3437 = vperm.xlu0 %3436, %v3403
        %v3438 = vpop.permute.xlu0 %3437
        %3441 = vset.pattern.permute.xlu0 0
        %3442 = vperm.xlu0 %3441, %v3404
        %v3443 = vpop.permute.xlu0 %3442
        %3446 = vset.pattern.permute.xlu0 0
        %3447 = vperm.xlu0 %3446, %v3405
        %v3448 = vpop.permute.xlu0 %3447
        %3451 = vset.pattern.permute.xlu0 0
        %3452 = vperm.xlu0 %3451, %v3406
        %v3453 = vpop.permute.xlu0 %3452
        %3456 = vset.pattern.permute.xlu0 0
        %3457 = vperm.xlu0 %3456, %v3407
        %v3458 = vpop.permute.xlu0 %3457
        %3461 = vset.pattern.permute.xlu0 0
        %3462 = vperm.xlu0 %3461, %v3408
        %v3463 = vpop.permute.xlu0 %3462
        %3466 = vset.pattern.permute.xlu0 0
        %3467 = vperm.xlu0 %3466, %v3409
        %v3468 = vpop.permute.xlu0 %3467
        %3471 = vset.pattern.permute.xlu0 0
        %3472 = vperm.xlu0 %3471, %v3410
        %v3473 = vpop.permute.xlu0 %3472
        %3476 = vset.pattern.permute.xlu0 0
        %3477 = vperm.xlu0 %3476, %v3411
        %v3478 = vpop.permute.xlu0 %3477
        %3481 = vset.pattern.permute.xlu0 0
        %3482 = vperm.xlu0 %3481, %v3412
        %v3483 = vpop.permute.xlu0 %3482
        %3486 = vset.pattern.permute.xlu0 0
        %3487 = vperm.xlu0 %3486, %v3413
        %v3488 = vpop.permute.xlu0 %3487
        %3491 = vset.pattern.permute.xlu0 0
        %3492 = vperm.xlu0 %3491, %v3414
        %v3493 = vpop.permute.xlu0 %3492
        %3496 = vset.pattern.permute.xlu0 0
        %3497 = vperm.xlu0 %3496, %v3415
        %v3498 = vpop.permute.xlu0 %3497
        %3501 = vset.pattern.permute.xlu0 0
        %3502 = vperm.xlu0 %3501, %v3416
        %v3503 = vpop.permute.xlu0 %3502
        %3506 = vset.pattern.permute.xlu0 0
        %3507 = vperm.xlu0 %3506, %v3417
        %v3508 = vpop.permute.xlu0 %3507
        %3511 = vset.pattern.permute.xlu0 0
        %3512 = vperm.xlu0 %3511, %v3418
        %v3513 = vpop.permute.xlu0 %3512
        %3516 = vset.pattern.permute.xlu0 0
        %3517 = vperm.xlu0 %3516, %v3419
        %v3518 = vpop.permute.xlu0 %3517
        %3521 = vset.pattern.permute.xlu0 0
        %3522 = vperm.xlu0 %3521, %v3420
        %v3523 = vpop.permute.xlu0 %3522
        %3526 = vset.pattern.permute.xlu0 0
        %3527 = vperm.xlu0 %3526, %v3421
        %v3528 = vpop.permute.xlu0 %3527
        %3531 = vset.pattern.permute.xlu0 0
        %3532 = vperm.xlu0 %3531, %v3422
        %v3533 = vpop.permute.xlu0 %3532
        %3536 = vset.pattern.permute.xlu0 0
        %3537 = vperm.xlu0 %3536, %v3423
        %v3538 = vpop.permute.xlu0 %3537
        %3541 = vset.pattern.permute.xlu0 0
        %3542 = vperm.xlu0 %3541, %v3424
        %v3543 = vpop.permute.xlu0 %3542
        %3546 = vset.pattern.permute.xlu0 0
        %3547 = vperm.xlu0 %3546, %v3425
        %v3548 = vpop.permute.xlu0 %3547
        %3551 = vset.pattern.permute.xlu0 0
        %3552 = vperm.xlu0 %3551, %v3426
        %v3553 = vpop.permute.xlu0 %3552
        %3556 = vset.pattern.permute.xlu0 0
        %3557 = vperm.xlu0 %3556, %v3427
        %v3558 = vpop.permute.xlu0 %3557
        %3561 = vset.pattern.permute.xlu0 0
        %3562 = vperm.xlu0 %3561, %v3428
        %v3563 = vpop.permute.xlu0 %3562
        %3566 = vset.pattern.permute.xlu0 0
        %3567 = vperm.xlu0 %3566, %v3429
        %v3568 = vpop.permute.xlu0 %3567
        %3571 = vset.pattern.permute.xlu0 0
        %3572 = vperm.xlu0 %3571, %v3430
        %v3573 = vpop.permute.xlu0 %3572
        %3576 = vset.pattern.permute.xlu0 0
        %3577 = vperm.xlu0 %3576, %v3431
        %v3578 = vpop.permute.xlu0 %3577
        %3581 = vset.pattern.permute.xlu0 0
        %3582 = vperm.xlu0 %3581, %v3432
        %v3583 = vpop.permute.xlu0 %3582
        %3586 = vset.pattern.permute.xlu0 0
        %3587 = vperm.xlu0 %3586, %v3433
        %v3588 = vpop.permute.xlu0 %3587
        %3591 = vset.pattern.permute.xlu0 0
        %3592 = vperm.xlu0 %3591, %v3434
        %v3593 = vpop.permute.xlu0 %3592
        %v3627 = vunpack.c.l.b16 %v3371
        %v3628 = vunpack.c.h.b16 %v3371
        %v3629 = vunpack.c.l.b16 %v3372
        %v3630 = vunpack.c.h.b16 %v3372
        %v3631 = vunpack.c.l.b16 %v3373
        %v3632 = vunpack.c.h.b16 %v3373
        %v3633 = vunpack.c.l.b16 %v3374
        %v3634 = vunpack.c.h.b16 %v3374
        %v3635 = vunpack.c.l.b16 %v3375
        %v3636 = vunpack.c.h.b16 %v3375
        %v3637 = vunpack.c.l.b16 %v3376
        %v3638 = vunpack.c.h.b16 %v3376
        %v3639 = vunpack.c.l.b16 %v3377
        %v3640 = vunpack.c.h.b16 %v3377
        %v3641 = vunpack.c.l.b16 %v3378
        %v3642 = vunpack.c.h.b16 %v3378
        %v3643 = vunpack.c.l.b16 %v3379
        %v3644 = vunpack.c.h.b16 %v3379
        %v3645 = vunpack.c.l.b16 %v3380
        %v3646 = vunpack.c.h.b16 %v3380
        %v3647 = vunpack.c.l.b16 %v3381
        %v3648 = vunpack.c.h.b16 %v3381
        %v3649 = vunpack.c.l.b16 %v3382
        %v3650 = vunpack.c.h.b16 %v3382
        %v3651 = vunpack.c.l.b16 %v3383
        %v3652 = vunpack.c.h.b16 %v3383
        %v3653 = vunpack.c.l.b16 %v3384
        %v3654 = vunpack.c.h.b16 %v3384
        %v3655 = vunpack.c.l.b16 %v3385
        %v3656 = vunpack.c.h.b16 %v3385
        %v3657 = vunpack.c.l.b16 %v3386
        %v3658 = vunpack.c.h.b16 %v3386
        %v3659 = vunpack.c.l.b16 %v3387
        %v3660 = vunpack.c.h.b16 %v3387
        %v3661 = vunpack.c.l.b16 %v3388
        %v3662 = vunpack.c.h.b16 %v3388
        %v3663 = vunpack.c.l.b16 %v3389
        %v3664 = vunpack.c.h.b16 %v3389
        %v3665 = vunpack.c.l.b16 %v3390
        %v3666 = vunpack.c.h.b16 %v3390
        %v3667 = vunpack.c.l.b16 %v3391
        %v3668 = vunpack.c.h.b16 %v3391
        %v3669 = vunpack.c.l.b16 %v3392
        %v3670 = vunpack.c.h.b16 %v3392
        %v3671 = vunpack.c.l.b16 %v3393
        %v3672 = vunpack.c.h.b16 %v3393
        %v3673 = vunpack.c.l.b16 %v3394
        %v3674 = vunpack.c.h.b16 %v3394
        %v3675 = vunpack.c.l.b16 %v3395
        %v3676 = vunpack.c.h.b16 %v3395
        %v3677 = vunpack.c.l.b16 %v3396
        %v3678 = vunpack.c.h.b16 %v3396
        %v3679 = vunpack.c.l.b16 %v3397
        %v3680 = vunpack.c.h.b16 %v3397
        %v3681 = vunpack.c.l.b16 %v3398
        %v3682 = vunpack.c.h.b16 %v3398
        %v3683 = vunpack.c.l.b16 %v3399
        %v3684 = vunpack.c.h.b16 %v3399
        %v3685 = vunpack.c.l.b16 %v3400
        %v3686 = vunpack.c.h.b16 %v3400
        %v3687 = vunpack.c.l.b16 %v3401
        %v3688 = vunpack.c.h.b16 %v3401
        %v3689 = vunpack.c.l.b16 %v3402
        %v3690 = vunpack.c.h.b16 %v3402
        %v3691 = vpack.c.b16 %v3629, %v3627
        %v3692 = vpack.c.b16 %v3630, %v3628
        %v3693 = vpack.c.b16 %v3633, %v3631
        %v3694 = vpack.c.b16 %v3634, %v3632
        %v3695 = vpack.c.b16 %v3637, %v3635
        %v3696 = vpack.c.b16 %v3638, %v3636
        %v3697 = vpack.c.b16 %v3641, %v3639
        %v3698 = vpack.c.b16 %v3642, %v3640
        %v3699 = vpack.c.b16 %v3645, %v3643
        %v3700 = vpack.c.b16 %v3646, %v3644
        %v3701 = vpack.c.b16 %v3649, %v3647
        %v3702 = vpack.c.b16 %v3650, %v3648
        %v3703 = vpack.c.b16 %v3653, %v3651
        %v3704 = vpack.c.b16 %v3654, %v3652
        %v3705 = vpack.c.b16 %v3657, %v3655
        %v3706 = vpack.c.b16 %v3658, %v3656
        %v3707 = vpack.c.b16 %v3661, %v3659
        %v3708 = vpack.c.b16 %v3662, %v3660
        %v3709 = vpack.c.b16 %v3665, %v3663
        %v3710 = vpack.c.b16 %v3666, %v3664
        %v3711 = vpack.c.b16 %v3669, %v3667
        %v3712 = vpack.c.b16 %v3670, %v3668
        %v3713 = vpack.c.b16 %v3673, %v3671
        %v3714 = vpack.c.b16 %v3674, %v3672
        %v3715 = vpack.c.b16 %v3677, %v3675
        %v3716 = vpack.c.b16 %v3678, %v3676
        %v3717 = vpack.c.b16 %v3681, %v3679
        %v3718 = vpack.c.b16 %v3682, %v3680
        %v3719 = vpack.c.b16 %v3685, %v3683
        %v3720 = vpack.c.b16 %v3686, %v3684
        %v3721 = vpack.c.b16 %v3689, %v3687
        %v3722 = vpack.c.b16 %v3690, %v3688
        %3755 = vmatprep.subr.bf16.mxu0 %v3340
        %3756 = vmatpush1.bf16.msra.mxu0 %v3339
        %3757 = vmatprep.subr.bf16.mxu0 %v3342
        %3758 = vmatpush1.bf16.msra.mxu0 %v3341
        %3759 = vmatprep.subr.bf16.mxu0 %v3344
        %3760 = vmatpush1.bf16.msra.mxu0 %v3343
        %3761 = vmatprep.subr.bf16.mxu0 %v3346
        %3762 = vmatpush1.bf16.msra.mxu0 %v3345
        %3763 = vmatprep.subr.bf16.mxu0 %v3348
        %3764 = vmatpush1.bf16.msra.mxu0 %v3347
        %3765 = vmatprep.subr.bf16.mxu0 %v3350
        %3766 = vmatpush1.bf16.msra.mxu0 %v3349
        %3767 = vmatprep.subr.bf16.mxu0 %v3352
        %3768 = vmatpush1.bf16.msra.mxu0 %v3351
        %3769 = vmatprep.subr.bf16.mxu0 %v3354
        %3770 = vmatpush1.bf16.msra.mxu0 %v3353
        %3771 = vmatprep.subr.bf16.mxu0 %v3356
        %3772 = vmatpush1.bf16.msra.mxu0 %v3355
        %3773 = vmatprep.subr.bf16.mxu0 %v3358
        %3774 = vmatpush1.bf16.msra.mxu0 %v3357
        %3775 = vmatprep.subr.bf16.mxu0 %v3360
        %3776 = vmatpush1.bf16.msra.mxu0 %v3359
        %3777 = vmatprep.subr.bf16.mxu0 %v3362
        %3778 = vmatpush1.bf16.msra.mxu0 %v3361
        %3779 = vmatprep.subr.bf16.mxu0 %v3364
        %3780 = vmatpush1.bf16.msra.mxu0 %v3363
        %3781 = vmatprep.subr.bf16.mxu0 %v3366
        %3782 = vmatpush1.bf16.msra.mxu0 %v3365
        %3783 = vmatprep.subr.bf16.mxu0 %v3368
        %3784 = vmatpush1.bf16.msra.mxu0 %v3367
        %3785 = vmatprep.subr.bf16.mxu0 %v3370
        %3786 = vmatpush1.bf16.msra.mxu0 %v3369
        %3787 = vmatprep.mubr.bf16.mxu0 %v3692
        %3788 = vmatmul.mubr.bf16.gmra.mrb[0].mxu0 %v3691
        %v3789 = vpop.f32.mrb[0].mxu0
        %v3790 = vadd.f32 %v3438, %v3789
        %v3791 = vpop.f32.mrb[0].mxu0
        %v3792 = vadd.f32 %v3438, %v3791
        %v3793 = vpop.f32.mrb[0].mxu0
        %v3794 = vadd.f32 %v3443, %v3793
        %v3795 = vpop.f32.mrb[0].mxu0
        %v3796 = vadd.f32 %v3443, %v3795
        %3797 = vmatprep.mubr.bf16.mxu0 %v3694
        %3798 = vmatmul.mubr.bf16.gmra.mrb[0].mxu0 %v3693
        %v3799 = vpop.f32.mrb[0].mxu0
        %v3800 = vadd.f32 %v3448, %v3799
        %v3801 = vpop.f32.mrb[0].mxu0
        %v3802 = vadd.f32 %v3448, %v3801
        %v3803 = vpop.f32.mrb[0].mxu0
        %v3804 = vadd.f32 %v3453, %v3803
        %v3805 = vpop.f32.mrb[0].mxu0
        %v3806 = vadd.f32 %v3453, %v3805
        %3807 = vmatprep.mubr.bf16.mxu0 %v3696
        %3808 = vmatmul.mubr.bf16.gmra.mrb[0].mxu0 %v3695
        %v3809 = vpop.f32.mrb[0].mxu0
        %v3810 = vadd.f32 %v3458, %v3809
        %v3811 = vpop.f32.mrb[0].mxu0
        %v3812 = vadd.f32 %v3458, %v3811
        %v3813 = vpop.f32.mrb[0].mxu0
        %v3814 = vadd.f32 %v3463, %v3813
        %v3815 = vpop.f32.mrb[0].mxu0
        %v3816 = vadd.f32 %v3463, %v3815
        %3817 = vmatprep.mubr.bf16.mxu0 %v3698
        %3818 = vmatmul.mubr.bf16.gmra.mrb[0].mxu0 %v3697
        %v3819 = vpop.f32.mrb[0].mxu0
        %v3820 = vadd.f32 %v3468, %v3819
        %v3821 = vpop.f32.mrb[0].mxu0
        %v3822 = vadd.f32 %v3468, %v3821
        %v3823 = vpop.f32.mrb[0].mxu0
        %v3824 = vadd.f32 %v3473, %v3823
        %v3825 = vpop.f32.mrb[0].mxu0
        %v3826 = vadd.f32 %v3473, %v3825
        %3827 = vmatprep.mubr.bf16.mxu0 %v3700
        %3828 = vmatmul.mubr.bf16.gmra.mrb[0].mxu0 %v3699
        %v3829 = vpop.f32.mrb[0].mxu0
        %v3830 = vadd.f32 %v3478, %v3829
        %v3831 = vpop.f32.mrb[0].mxu0
        %v3832 = vadd.f32 %v3478, %v3831
        %v3833 = vpop.f32.mrb[0].mxu0
        %v3834 = vadd.f32 %v3483, %v3833
        %v3835 = vpop.f32.mrb[0].mxu0
        %v3836 = vadd.f32 %v3483, %v3835
        %3837 = vmatprep.mubr.bf16.mxu0 %v3702
        %3838 = vmatmul.mubr.bf16.gmra.mrb[0].mxu0 %v3701
        %v3839 = vpop.f32.mrb[0].mxu0
        %v3840 = vadd.f32 %v3488, %v3839
        %v3841 = vpop.f32.mrb[0].mxu0
        %v3842 = vadd.f32 %v3488, %v3841
        %v3843 = vpop.f32.mrb[0].mxu0
        %v3844 = vadd.f32 %v3493, %v3843
        %v3845 = vpop.f32.mrb[0].mxu0
        %v3846 = vadd.f32 %v3493, %v3845
        %3847 = vmatprep.mubr.bf16.mxu0 %v3704
        %3848 = vmatmul.mubr.bf16.gmra.mrb[0].mxu0 %v3703
        %v3849 = vpop.f32.mrb[0].mxu0
        %v3850 = vadd.f32 %v3498, %v3849
        %v3851 = vpop.f32.mrb[0].mxu0
        %v3852 = vadd.f32 %v3498, %v3851
        %v3853 = vpop.f32.mrb[0].mxu0
        %v3854 = vadd.f32 %v3503, %v3853
        %v3855 = vpop.f32.mrb[0].mxu0
        %v3856 = vadd.f32 %v3503, %v3855
        %3857 = vmatprep.mubr.bf16.mxu0 %v3706
        %3858 = vmatmul.mubr.bf16.gmra.mrb[0].mxu0 %v3705
        %v3859 = vpop.f32.mrb[0].mxu0
        %v3860 = vadd.f32 %v3508, %v3859
        %v3861 = vpop.f32.mrb[0].mxu0
        %v3862 = vadd.f32 %v3508, %v3861
        %v3863 = vpop.f32.mrb[0].mxu0
        %v3864 = vadd.f32 %v3513, %v3863
        %v3865 = vpop.f32.mrb[0].mxu0
        %v3866 = vadd.f32 %v3513, %v3865
        %3867 = vmatprep.mubr.bf16.mxu0 %v3708
        %3868 = vmatmul.mubr.bf16.gmra.mrb[0].mxu0 %v3707
        %v3869 = vpop.f32.mrb[0].mxu0
        %v3870 = vadd.f32 %v3518, %v3869
        %v3871 = vpop.f32.mrb[0].mxu0
        %v3872 = vadd.f32 %v3518, %v3871
        %v3873 = vpop.f32.mrb[0].mxu0
        %v3874 = vadd.f32 %v3523, %v3873
        %v3875 = vpop.f32.mrb[0].mxu0
        %v3876 = vadd.f32 %v3523, %v3875
        %3877 = vmatprep.mubr.bf16.mxu0 %v3710
        %3878 = vmatmul.mubr.bf16.gmra.mrb[0].mxu0 %v3709
        %v3879 = vpop.f32.mrb[0].mxu0
        %v3880 = vadd.f32 %v3528, %v3879
        %v3881 = vpop.f32.mrb[0].mxu0
        %v3882 = vadd.f32 %v3528, %v3881
        %v3883 = vpop.f32.mrb[0].mxu0
        %v3884 = vadd.f32 %v3533, %v3883
        %v3885 = vpop.f32.mrb[0].mxu0
        %v3886 = vadd.f32 %v3533, %v3885
        %3887 = vmatprep.mubr.bf16.mxu0 %v3712
        %3888 = vmatmul.mubr.bf16.gmra.mrb[0].mxu0 %v3711
        %v3889 = vpop.f32.mrb[0].mxu0
        %v3890 = vadd.f32 %v3538, %v3889
        %v3891 = vpop.f32.mrb[0].mxu0
        %v3892 = vadd.f32 %v3538, %v3891
        %v3893 = vpop.f32.mrb[0].mxu0
        %v3894 = vadd.f32 %v3543, %v3893
        %v3895 = vpop.f32.mrb[0].mxu0
        %v3896 = vadd.f32 %v3543, %v3895
        %3897 = vmatprep.mubr.bf16.mxu0 %v3714
        %3898 = vmatmul.mubr.bf16.gmra.mrb[0].mxu0 %v3713
        %v3899 = vpop.f32.mrb[0].mxu0
        %v3900 = vadd.f32 %v3548, %v3899
        %v3901 = vpop.f32.mrb[0].mxu0
        %v3902 = vadd.f32 %v3548, %v3901
        %v3903 = vpop.f32.mrb[0].mxu0
        %v3904 = vadd.f32 %v3553, %v3903
        %v3905 = vpop.f32.mrb[0].mxu0
        %v3906 = vadd.f32 %v3553, %v3905
        %3907 = vmatprep.mubr.bf16.mxu0 %v3716
        %3908 = vmatmul.mubr.bf16.gmra.mrb[0].mxu0 %v3715
        %v3909 = vpop.f32.mrb[0].mxu0
        %v3910 = vadd.f32 %v3558, %v3909
        %v3911 = vpop.f32.mrb[0].mxu0
        %v3912 = vadd.f32 %v3558, %v3911
        %v3913 = vpop.f32.mrb[0].mxu0
        %v3914 = vadd.f32 %v3563, %v3913
        %v3915 = vpop.f32.mrb[0].mxu0
        %v3916 = vadd.f32 %v3563, %v3915
        %3917 = vmatprep.mubr.bf16.mxu0 %v3718
        %3918 = vmatmul.mubr.bf16.gmra.mrb[0].mxu0 %v3717
        %v3919 = vpop.f32.mrb[0].mxu0
        %v3920 = vadd.f32 %v3568, %v3919
        %v3921 = vpop.f32.mrb[0].mxu0
        %v3922 = vadd.f32 %v3568, %v3921
        %v3923 = vpop.f32.mrb[0].mxu0
        %v3924 = vadd.f32 %v3573, %v3923
        %v3925 = vpop.f32.mrb[0].mxu0
        %v3926 = vadd.f32 %v3573, %v3925
        %3927 = vmatprep.mubr.bf16.mxu0 %v3720
        %3928 = vmatmul.mubr.bf16.gmra.mrb[0].mxu0 %v3719
        %v3929 = vpop.f32.mrb[0].mxu0
        %v3930 = vadd.f32 %v3578, %v3929
        %v3931 = vpop.f32.mrb[0].mxu0
        %v3932 = vadd.f32 %v3578, %v3931
        %v3933 = vpop.f32.mrb[0].mxu0
        %v3934 = vadd.f32 %v3583, %v3933
        %v3935 = vpop.f32.mrb[0].mxu0
        %v3936 = vadd.f32 %v3583, %v3935
        %3937 = vmatprep.mubr.bf16.mxu0 %v3722
        %3938 = vmatmul.mubr.bf16.gmra.mrb[0].mxu0 %v3721
        %v3939 = vpop.f32.mrb[0].mxu0
        %v3940 = vadd.f32 %v3588, %v3939
        %v3941 = vpop.f32.mrb[0].mxu0
        %v3942 = vadd.f32 %v3588, %v3941
        %v3943 = vpop.f32.mrb[0].mxu0
        %v3944 = vadd.f32 %v3593, %v3943
        %v3945 = vpop.f32.mrb[0].mxu0
        %v3946 = vadd.f32 %v3593, %v3945
        %3947 = vdwg.mxu0
        %v3948 = vmax.f32 %v3790, 0.0
        %v3949 = vmax.f32 %v3792, 0.0
        %v3950 = vmax.f32 %v3794, 0.0
        %v3951 = vmax.f32 %v3796, 0.0
        %v3952 = vmax.f32 %v3800, 0.0
        %v3953 = vmax.f32 %v3802, 0.0
        %v3954 = vmax.f32 %v3804, 0.0
        %v3955 = vmax.f32 %v3806, 0.0
        %v3956 = vmax.f32 %v3810, 0.0
        %v3957 = vmax.f32 %v3812, 0.0
        %v3958 = vmax.f32 %v3814, 0.0
        %v3959 = vmax.f32 %v3816, 0.0
        %v3960 = vmax.f32 %v3820, 0.0
        %v3961 = vmax.f32 %v3822, 0.0
        %v3962 = vmax.f32 %v3824, 0.0
        %v3963 = vmax.f32 %v3826, 0.0
        %v3964 = vmax.f32 %v3830, 0.0
        %v3965 = vmax.f32 %v3832, 0.0
        %v3966 = vmax.f32 %v3834, 0.0
        %v3967 = vmax.f32 %v3836, 0.0
        %v3968 = vmax.f32 %v3840, 0.0
        %v3969 = vmax.f32 %v3842, 0.0
        %v3970 = vmax.f32 %v3844, 0.0
        %v3971 = vmax.f32 %v3846, 0.0
        %v3972 = vmax.f32 %v3850, 0.0
        %v3973 = vmax.f32 %v3852, 0.0
        %v3974 = vmax.f32 %v3854, 0.0
        %v3975 = vmax.f32 %v3856, 0.0
        %v3976 = vmax.f32 %v3860, 0.0
        %v3977 = vmax.f32 %v3862, 0.0
        %v3978 = vmax.f32 %v3864, 0.0
        %v3979 = vmax.f32 %v3866, 0.0
        %v3980 = vmax.f32 %v3870, 0.0
        %v3981 = vmax.f32 %v3872, 0.0
        %v3982 = vmax.f32 %v3874, 0.0
        %v3983 = vmax.f32 %v3876, 0.0
        %v3984 = vmax.f32 %v3880, 0.0
        %v3985 = vmax.f32 %v3882, 0.0
        %v3986 = vmax.f32 %v3884, 0.0
        %v3987 = vmax.f32 %v3886, 0.0
        %v3988 = vmax.f32 %v3890, 0.0
        %v3989 = vmax.f32 %v3892, 0.0
        %v3990 = vmax.f32 %v3894, 0.0
        %v3991 = vmax.f32 %v3896, 0.0
        %v3992 = vmax.f32 %v3900, 0.0
        %v3993 = vmax.f32 %v3902, 0.0
        %v3994 = vmax.f32 %v3904, 0.0
        %v3995 = vmax.f32 %v3906, 0.0
        %v3996 = vmax.f32 %v3910, 0.0
        %v3997 = vmax.f32 %v3912, 0.0
        %v3998 = vmax.f32 %v3914, 0.0
        %v3999 = vmax.f32 %v3916, 0.0
        %v4000 = vmax.f32 %v3920, 0.0
        %v4001 = vmax.f32 %v3922, 0.0
        %v4002 = vmax.f32 %v3924, 0.0
        %v4003 = vmax.f32 %v3926, 0.0
        %v4004 = vmax.f32 %v3930, 0.0
        %v4005 = vmax.f32 %v3932, 0.0
        %v4006 = vmax.f32 %v3934, 0.0
        %v4007 = vmax.f32 %v3936, 0.0
        %v4008 = vmax.f32 %v3940, 0.0
        %v4009 = vmax.f32 %v3942, 0.0
        %v4010 = vmax.f32 %v3944, 0.0
        %v4011 = vmax.f32 %v3946, 0.0
        %v4012 = vpack.c.bf16 %v3950, %v3948
        %v4013 = vpack.c.bf16 %v3951, %v3949
        %v4014 = vpack.c.bf16 %v3954, %v3952
        %v4015 = vpack.c.bf16 %v3955, %v3953
        %v4016 = vpack.c.bf16 %v3958, %v3956
        %v4017 = vpack.c.bf16 %v3959, %v3957
        %v4018 = vpack.c.bf16 %v3962, %v3960
        %v4019 = vpack.c.bf16 %v3963, %v3961
        %v4020 = vpack.c.bf16 %v3966, %v3964
        %v4021 = vpack.c.bf16 %v3967, %v3965
        %v4022 = vpack.c.bf16 %v3970, %v3968
        %v4023 = vpack.c.bf16 %v3971, %v3969
        %v4024 = vpack.c.bf16 %v3974, %v3972
        %v4025 = vpack.c.bf16 %v3975, %v3973
        %v4026 = vpack.c.bf16 %v3978, %v3976
        %v4027 = vpack.c.bf16 %v3979, %v3977
        %v4028 = vpack.c.bf16 %v3982, %v3980
        %v4029 = vpack.c.bf16 %v3983, %v3981
        %v4030 = vpack.c.bf16 %v3986, %v3984
        %v4031 = vpack.c.bf16 %v3987, %v3985
        %v4032 = vpack.c.bf16 %v3990, %v3988
        %v4033 = vpack.c.bf16 %v3991, %v3989
        %v4034 = vpack.c.bf16 %v3994, %v3992
        %v4035 = vpack.c.bf16 %v3995, %v3993
        %v4036 = vpack.c.bf16 %v3998, %v3996
        %v4037 = vpack.c.bf16 %v3999, %v3997
        %v4038 = vpack.c.bf16 %v4002, %v4000
        %v4039 = vpack.c.bf16 %v4003, %v4001
        %v4040 = vpack.c.bf16 %v4006, %v4004
        %v4041 = vpack.c.bf16 %v4007, %v4005
        %v4042 = vpack.c.bf16 %v4010, %v4008
        %v4043 = vpack.c.bf16 %v4011, %v4009
        %v4044 = vld [vmem:[%s10] sm:$0xff]
        %v4045 = vld [vmem:[%s10 + $0x8] sm:$0xff]
        %v4046 = vld [vmem:[%s10 + $0x10] sm:$0xff]
        %v4047 = vld [vmem:[%s10 + $0x18] sm:$0xff]
        %v4048 = vld [vmem:[%s10 + $0x20] sm:$0xff]
        %v4049 = vld [vmem:[%s10 + $0x28] sm:$0xff]
        %v4050 = vld [vmem:[%s10 + $0x30] sm:$0xff]
        %v4051 = vld [vmem:[%s10 + $0x38] sm:$0xff]
        %v4052 = vld [vmem:[%s10 + $0x40] sm:$0xff]
        %v4053 = vld [vmem:[%s10 + $0x48] sm:$0xff]
        %v4054 = vld [vmem:[%s10 + $0x50] sm:$0xff]
        %v4055 = vld [vmem:[%s10 + $0x58] sm:$0xff]
        %v4056 = vld [vmem:[%s10 + $0x60] sm:$0xff]
        %v4057 = vld [vmem:[%s10 + $0x68] sm:$0xff]
        %v4058 = vld [vmem:[%s10 + $0x70] sm:$0xff]
        %v4059 = vld [vmem:[%s10 + $0x78] sm:$0xff]
        %v4060 = vld [vmem:[%s10 + $0x80] sm:$0xff]
        %v4061 = vld [vmem:[%s10 + $0x88] sm:$0xff]
        %v4062 = vld [vmem:[%s10 + $0x90] sm:$0xff]
        %v4063 = vld [vmem:[%s10 + $0x98] sm:$0xff]
        %v4064 = vld [vmem:[%s10 + $0xa0] sm:$0xff]
        %v4065 = vld [vmem:[%s10 + $0xa8] sm:$0xff]
        %v4066 = vld [vmem:[%s10 + $0xb0] sm:$0xff]
        %v4067 = vld [vmem:[%s10 + $0xb8] sm:$0xff]
        %v4068 = vld [vmem:[%s10 + $0xc0] sm:$0xff]
        %v4069 = vld [vmem:[%s10 + $0xc8] sm:$0xff]
        %v4070 = vld [vmem:[%s10 + $0xd0] sm:$0xff]
        %v4071 = vld [vmem:[%s11] sm:$0xff]
        %v4072 = vld [vmem:[%s11 + $0x8] sm:$0xff]
        %v4073 = vld [vmem:[%s11 + $0x10] sm:$0xff]
        %v4074 = vld [vmem:[%s11 + $0x18] sm:$0xff]
        %v4075 = vld [vmem:[%s11 + $0x20] sm:$0xff]
        %v4076 = vld [vmem:[%s11 + $0x28] sm:$0xff]
        %v4077 = vld [vmem:[%s11 + $0x30] sm:$0xff]
        %v4078 = vld [vmem:[%s11 + $0x38] sm:$0xff]
        %v4079 = vld [vmem:[%s11 + $0x40] sm:$0xff]
        %v4080 = vld [vmem:[%s11 + $0x48] sm:$0xff]
        %v4081 = vld [vmem:[%s11 + $0x50] sm:$0xff]
        %v4082 = vld [vmem:[%s11 + $0x58] sm:$0xff]
        %v4083 = vld [vmem:[%s11 + $0x60] sm:$0xff]
        %v4084 = vld [vmem:[%s11 + $0x68] sm:$0xff]
        %v4085 = vld [vmem:[%s11 + $0x70] sm:$0xff]
        %v4086 = vld [vmem:[%s11 + $0x78] sm:$0xff]
        %v4087 = vld [vmem:[%s11 + $0x80] sm:$0xff]
        %v4088 = vld [vmem:[%s11 + $0x88] sm:$0xff]
        %v4089 = vld [vmem:[%s11 + $0x90] sm:$0xff]
        %v4090 = vld [vmem:[%s11 + $0x98] sm:$0xff]
        %v4091 = vld [vmem:[%s11 + $0xa0] sm:$0xff]
        %v4092 = vld [vmem:[%s11 + $0xa8] sm:$0xff]
        %v4093 = vld [vmem:[%s11 + $0xb0] sm:$0xff]
        %v4094 = vld [vmem:[%s11 + $0xb8] sm:$0xff]
        %v4095 = vld [vmem:[%s11 + $0xc0] sm:$0xff]
        %v4096 = vld [vmem:[%s11 + $0xc8] sm:$0xff]
        %v4097 = vld [vmem:[%s11 + $0xd0] sm:$0xff]
        %4099 = vset.pattern.permute.xlu0 0
        %4100 = vperm.xlu0 %4099, %v4071
        %v4101 = vpop.permute.xlu0 %4100
        %4104 = vset.pattern.permute.xlu0 0
        %4105 = vperm.xlu0 %4104, %v4072
        %v4106 = vpop.permute.xlu0 %4105
        %4109 = vset.pattern.permute.xlu0 0
        %4110 = vperm.xlu0 %4109, %v4073
        %v4111 = vpop.permute.xlu0 %4110
        %4114 = vset.pattern.permute.xlu0 0
        %4115 = vperm.xlu0 %4114, %v4074
        %v4116 = vpop.permute.xlu0 %4115
        %4119 = vset.pattern.permute.xlu0 0
        %4120 = vperm.xlu0 %4119, %v4075
        %v4121 = vpop.permute.xlu0 %4120
        %4124 = vset.pattern.permute.xlu0 0
        %4125 = vperm.xlu0 %4124, %v4076
        %v4126 = vpop.permute.xlu0 %4125
        %4129 = vset.pattern.permute.xlu0 0
        %4130 = vperm.xlu0 %4129, %v4077
        %v4131 = vpop.permute.xlu0 %4130
        %4134 = vset.pattern.permute.xlu0 0
        %4135 = vperm.xlu0 %4134, %v4078
        %v4136 = vpop.permute.xlu0 %4135
        %4139 = vset.pattern.permute.xlu0 0
        %4140 = vperm.xlu0 %4139, %v4079
        %v4141 = vpop.permute.xlu0 %4140
        %4144 = vset.pattern.permute.xlu0 0
        %4145 = vperm.xlu0 %4144, %v4080
        %v4146 = vpop.permute.xlu0 %4145
        %4149 = vset.pattern.permute.xlu0 0
        %4150 = vperm.xlu0 %4149, %v4081
        %v4151 = vpop.permute.xlu0 %4150
        %4154 = vset.pattern.permute.xlu0 0
        %4155 = vperm.xlu0 %4154, %v4082
        %v4156 = vpop.permute.xlu0 %4155
        %4159 = vset.pattern.permute.xlu0 0
        %4160 = vperm.xlu0 %4159, %v4083
        %v4161 = vpop.permute.xlu0 %4160
        %4164 = vset.pattern.permute.xlu0 0
        %4165 = vperm.xlu0 %4164, %v4084
        %v4166 = vpop.permute.xlu0 %4165
        %4169 = vset.pattern.permute.xlu0 0
        %4170 = vperm.xlu0 %4169, %v4085
        %v4171 = vpop.permute.xlu0 %4170
        %4174 = vset.pattern.permute.xlu0 0
        %4175 = vperm.xlu0 %4174, %v4086
        %v4176 = vpop.permute.xlu0 %4175
        %4179 = vset.pattern.permute.xlu0 0
        %4180 = vperm.xlu0 %4179, %v4087
        %v4181 = vpop.permute.xlu0 %4180
        %4184 = vset.pattern.permute.xlu0 0
        %4185 = vperm.xlu0 %4184, %v4088
        %v4186 = vpop.permute.xlu0 %4185
        %4189 = vset.pattern.permute.xlu0 0
        %4190 = vperm.xlu0 %4189, %v4089
        %v4191 = vpop.permute.xlu0 %4190
        %4194 = vset.pattern.permute.xlu0 0
        %4195 = vperm.xlu0 %4194, %v4090
        %v4196 = vpop.permute.xlu0 %4195
        %4199 = vset.pattern.permute.xlu0 0
        %4200 = vperm.xlu0 %4199, %v4091
        %v4201 = vpop.permute.xlu0 %4200
        %4204 = vset.pattern.permute.xlu0 0
        %4205 = vperm.xlu0 %4204, %v4092
        %v4206 = vpop.permute.xlu0 %4205
        %4209 = vset.pattern.permute.xlu0 0
        %4210 = vperm.xlu0 %4209, %v4093
        %v4211 = vpop.permute.xlu0 %4210
        %4214 = vset.pattern.permute.xlu0 0
        %4215 = vperm.xlu0 %4214, %v4094
        %v4216 = vpop.permute.xlu0 %4215
        %4219 = vset.pattern.permute.xlu0 0
        %4220 = vperm.xlu0 %4219, %v4095
        %v4221 = vpop.permute.xlu0 %4220
        %4224 = vset.pattern.permute.xlu0 0
        %4225 = vperm.xlu0 %4224, %v4096
        %v4226 = vpop.permute.xlu0 %4225
        %4229 = vset.pattern.permute.xlu0 0
        %4230 = vperm.xlu0 %4229, %v4097
        %v4231 = vpop.permute.xlu0 %4230
        %v4260 = vunpack.c.l.b16 %v4044
        %v4261 = vunpack.c.h.b16 %v4044
        %v4262 = vunpack.c.l.b16 %v4045
        %v4263 = vunpack.c.h.b16 %v4045
        %v4264 = vunpack.c.l.b16 %v4046
        %v4265 = vunpack.c.h.b16 %v4046
        %v4266 = vunpack.c.l.b16 %v4047
        %v4267 = vunpack.c.h.b16 %v4047
        %v4268 = vunpack.c.l.b16 %v4048
        %v4269 = vunpack.c.h.b16 %v4048
        %v4270 = vunpack.c.l.b16 %v4049
        %v4271 = vunpack.c.h.b16 %v4049
        %v4272 = vunpack.c.l.b16 %v4050
        %v4273 = vunpack.c.h.b16 %v4050
        %v4274 = vunpack.c.l.b16 %v4051
        %v4275 = vunpack.c.h.b16 %v4051
        %v4276 = vunpack.c.l.b16 %v4052
        %v4277 = vunpack.c.h.b16 %v4052
        %v4278 = vunpack.c.l.b16 %v4053
        %v4279 = vunpack.c.h.b16 %v4053
        %v4280 = vunpack.c.l.b16 %v4054
        %v4281 = vunpack.c.h.b16 %v4054
        %v4282 = vunpack.c.l.b16 %v4055
        %v4283 = vunpack.c.h.b16 %v4055
        %v4284 = vunpack.c.l.b16 %v4056
        %v4285 = vunpack.c.h.b16 %v4056
        %v4286 = vunpack.c.l.b16 %v4057
        %v4287 = vunpack.c.h.b16 %v4057
        %v4288 = vunpack.c.l.b16 %v4058
        %v4289 = vunpack.c.h.b16 %v4058
        %v4290 = vunpack.c.l.b16 %v4059
        %v4291 = vunpack.c.h.b16 %v4059
        %v4292 = vunpack.c.l.b16 %v4060
        %v4293 = vunpack.c.h.b16 %v4060
        %v4294 = vunpack.c.l.b16 %v4061
        %v4295 = vunpack.c.h.b16 %v4061
        %v4296 = vunpack.c.l.b16 %v4062
        %v4297 = vunpack.c.h.b16 %v4062
        %v4298 = vunpack.c.l.b16 %v4063
        %v4299 = vunpack.c.h.b16 %v4063
        %v4300 = vunpack.c.l.b16 %v4064
        %v4301 = vunpack.c.h.b16 %v4064
        %v4302 = vunpack.c.l.b16 %v4065
        %v4303 = vunpack.c.h.b16 %v4065
        %v4304 = vunpack.c.l.b16 %v4066
        %v4305 = vunpack.c.h.b16 %v4066
        %v4306 = vunpack.c.l.b16 %v4067
        %v4307 = vunpack.c.h.b16 %v4067
        %v4308 = vunpack.c.l.b16 %v4068
        %v4309 = vunpack.c.h.b16 %v4068
        %v4310 = vunpack.c.l.b16 %v4069
        %v4311 = vunpack.c.h.b16 %v4069
        %v4312 = vunpack.c.l.b16 %v4070
        %v4313 = vunpack.c.h.b16 %v4070
        %v4314 = vpack.c.b16 %v4262, %v4260
        %v4315 = vpack.c.b16 %v4263, %v4261
        %v4316 = vpack.c.b16 %v4266, %v4264
        %v4317 = vpack.c.b16 %v4267, %v4265
        %v4318 = vpack.c.b16 %v4270, %v4268
        %v4319 = vpack.c.b16 %v4271, %v4269
        %v4320 = vpack.c.b16 %v4274, %v4272
        %v4321 = vpack.c.b16 %v4275, %v4273
        %v4322 = vpack.c.b16 %v4278, %v4276
        %v4323 = vpack.c.b16 %v4279, %v4277
        %v4324 = vpack.c.b16 %v4282, %v4280
        %v4325 = vpack.c.b16 %v4283, %v4281
        %v4326 = vpack.c.b16 %v4286, %v4284
        %v4327 = vpack.c.b16 %v4287, %v4285
        %v4328 = vpack.c.b16 %v4290, %v4288
        %v4329 = vpack.c.b16 %v4291, %v4289
        %v4330 = vpack.c.b16 %v4294, %v4292
        %v4331 = vpack.c.b16 %v4295, %v4293
        %v4332 = vpack.c.b16 %v4298, %v4296
        %v4333 = vpack.c.b16 %v4299, %v4297
        %v4334 = vpack.c.b16 %v4302, %v4300
        %v4335 = vpack.c.b16 %v4303, %v4301
        %v4336 = vpack.c.b16 %v4306, %v4304
        %v4337 = vpack.c.b16 %v4307, %v4305
        %v4338 = vpack.c.b16 %v4310, %v4308
        %v4339 = vpack.c.b16 %v4311, %v4309
        %v4340 = vpack.c.b16 %v4312, %v4312
        %v4341 = vpack.c.b16 %v4313, %v4313
        %4370 = vmatprep.subr.bf16.mxu0 %v4013
        %4371 = vmatpush1.bf16.msra.mxu0 %v4012
        %4372 = vmatprep.subr.bf16.mxu0 %v4015
        %4373 = vmatpush1.bf16.msra.mxu0 %v4014
        %4374 = vmatprep.subr.bf16.mxu0 %v4017
        %4375 = vmatpush1.bf16.msra.mxu0 %v4016
        %4376 = vmatprep.subr.bf16.mxu0 %v4019
        %4377 = vmatpush1.bf16.msra.mxu0 %v4018
        %4378 = vmatprep.subr.bf16.mxu0 %v4021
        %4379 = vmatpush1.bf16.msra.mxu0 %v4020
        %4380 = vmatprep.subr.bf16.mxu0 %v4023
        %4381 = vmatpush1.bf16.msra.mxu0 %v4022
        %4382 = vmatprep.subr.bf16.mxu0 %v4025
        %4383 = vmatpush1.bf16.msra.mxu0 %v4024
        %4384 = vmatprep.subr.bf16.mxu0 %v4027
        %4385 = vmatpush1.bf16.msra.mxu0 %v4026
        %4386 = vmatprep.subr.bf16.mxu0 %v4029
        %4387 = vmatpush1.bf16.msra.mxu0 %v4028
        %4388 = vmatprep.subr.bf16.mxu0 %v4031
        %4389 = vmatpush1.bf16.msra.mxu0 %v4030
        %4390 = vmatprep.subr.bf16.mxu0 %v4033
        %4391 = vmatpush1.bf16.msra.mxu0 %v4032
        %4392 = vmatprep.subr.bf16.mxu0 %v4035
        %4393 = vmatpush1.bf16.msra.mxu0 %v4034
        %4394 = vmatprep.subr.bf16.mxu0 %v4037
        %4395 = vmatpush1.bf16.msra.mxu0 %v4036
        %4396 = vmatprep.subr.bf16.mxu0 %v4039
        %4397 = vmatpush1.bf16.msra.mxu0 %v4038
        %4398 = vmatprep.subr.bf16.mxu0 %v4041
        %4399 = vmatpush1.bf16.msra.mxu0 %v4040
        %4400 = vmatprep.subr.bf16.mxu0 %v4043
        %4401 = vmatpush1.bf16.msra.mxu0 %v4042
        %4402 = vmatprep.mubr.bf16.mxu0 %v4315
        %4403 = vmatmul.mubr.bf16.gmra.mrb[0].mxu0 %v4314
        %v4404 = vpop.f32.mrb[0].mxu0
        %v4405 = vadd.f32 %v4101, %v4404
        %v4406 = vpop.f32.mrb[0].mxu0
        %v4407 = vadd.f32 %v4101, %v4406
        %v4408 = vpop.f32.mrb[0].mxu0
        %v4409 = vadd.f32 %v4106, %v4408
        %v4410 = vpop.f32.mrb[0].mxu0
        %v4411 = vadd.f32 %v4106, %v4410
        %4412 = vmatprep.mubr.bf16.mxu0 %v4317
        %4413 = vmatmul.mubr.bf16.gmra.mrb[0].mxu0 %v4316
        %v4414 = vpop.f32.mrb[0].mxu0
        %v4415 = vadd.f32 %v4111, %v4414
        %v4416 = vpop.f32.mrb[0].mxu0
        %v4417 = vadd.f32 %v4111, %v4416
        %v4418 = vpop.f32.mrb[0].mxu0
        %v4419 = vadd.f32 %v4116, %v4418
        %v4420 = vpop.f32.mrb[0].mxu0
        %v4421 = vadd.f32 %v4116, %v4420
        %4422 = vmatprep.mubr.bf16.mxu0 %v4319
        %4423 = vmatmul.mubr.bf16.gmra.mrb[0].mxu0 %v4318
        %v4424 = vpop.f32.mrb[0].mxu0
        %v4425 = vadd.f32 %v4121, %v4424
        %v4426 = vpop.f32.mrb[0].mxu0
        %v4427 = vadd.f32 %v4121, %v4426
        %v4428 = vpop.f32.mrb[0].mxu0
        %v4429 = vadd.f32 %v4126, %v4428
        %v4430 = vpop.f32.mrb[0].mxu0
        %v4431 = vadd.f32 %v4126, %v4430
        %4432 = vmatprep.mubr.bf16.mxu0 %v4321
        %4433 = vmatmul.mubr.bf16.gmra.mrb[0].mxu0 %v4320
        %v4434 = vpop.f32.mrb[0].mxu0
        %v4435 = vadd.f32 %v4131, %v4434
        %v4436 = vpop.f32.mrb[0].mxu0
        %v4437 = vadd.f32 %v4131, %v4436
        %v4438 = vpop.f32.mrb[0].mxu0
        %v4439 = vadd.f32 %v4136, %v4438
        %v4440 = vpop.f32.mrb[0].mxu0
        %v4441 = vadd.f32 %v4136, %v4440
        %4442 = vmatprep.mubr.bf16.mxu0 %v4323
        %4443 = vmatmul.mubr.bf16.gmra.mrb[0].mxu0 %v4322
        %v4444 = vpop.f32.mrb[0].mxu0
        %v4445 = vadd.f32 %v4141, %v4444
        %v4446 = vpop.f32.mrb[0].mxu0
        %v4447 = vadd.f32 %v4141, %v4446
        %v4448 = vpop.f32.mrb[0].mxu0
        %v4449 = vadd.f32 %v4146, %v4448
        %v4450 = vpop.f32.mrb[0].mxu0
        %v4451 = vadd.f32 %v4146, %v4450
        %4452 = vmatprep.mubr.bf16.mxu0 %v4325
        %4453 = vmatmul.mubr.bf16.gmra.mrb[0].mxu0 %v4324
        %v4454 = vpop.f32.mrb[0].mxu0
        %v4455 = vadd.f32 %v4151, %v4454
        %v4456 = vpop.f32.mrb[0].mxu0
        %v4457 = vadd.f32 %v4151, %v4456
        %v4458 = vpop.f32.mrb[0].mxu0
        %v4459 = vadd.f32 %v4156, %v4458
        %v4460 = vpop.f32.mrb[0].mxu0
        %v4461 = vadd.f32 %v4156, %v4460
        %4462 = vmatprep.mubr.bf16.mxu0 %v4327
        %4463 = vmatmul.mubr.bf16.gmra.mrb[0].mxu0 %v4326
        %v4464 = vpop.f32.mrb[0].mxu0
        %v4465 = vadd.f32 %v4161, %v4464
        %v4466 = vpop.f32.mrb[0].mxu0
        %v4467 = vadd.f32 %v4161, %v4466
        %v4468 = vpop.f32.mrb[0].mxu0
        %v4469 = vadd.f32 %v4166, %v4468
        %v4470 = vpop.f32.mrb[0].mxu0
        %v4471 = vadd.f32 %v4166, %v4470
        %4472 = vmatprep.mubr.bf16.mxu0 %v4329
        %4473 = vmatmul.mubr.bf16.gmra.mrb[0].mxu0 %v4328
        %v4474 = vpop.f32.mrb[0].mxu0
        %v4475 = vadd.f32 %v4171, %v4474
        %v4476 = vpop.f32.mrb[0].mxu0
        %v4477 = vadd.f32 %v4171, %v4476
        %v4478 = vpop.f32.mrb[0].mxu0
        %v4479 = vadd.f32 %v4176, %v4478
        %v4480 = vpop.f32.mrb[0].mxu0
        %v4481 = vadd.f32 %v4176, %v4480
        %4482 = vmatprep.mubr.bf16.mxu0 %v4331
        %4483 = vmatmul.mubr.bf16.gmra.mrb[0].mxu0 %v4330
        %v4484 = vpop.f32.mrb[0].mxu0
        %v4485 = vadd.f32 %v4181, %v4484
        %v4486 = vpop.f32.mrb[0].mxu0
        %v4487 = vadd.f32 %v4181, %v4486
        %v4488 = vpop.f32.mrb[0].mxu0
        %v4489 = vadd.f32 %v4186, %v4488
        %v4490 = vpop.f32.mrb[0].mxu0
        %v4491 = vadd.f32 %v4186, %v4490
        %4492 = vmatprep.mubr.bf16.mxu0 %v4333
        %4493 = vmatmul.mubr.bf16.gmra.mrb[0].mxu0 %v4332
        %v4494 = vpop.f32.mrb[0].mxu0
        %v4495 = vadd.f32 %v4191, %v4494
        %v4496 = vpop.f32.mrb[0].mxu0
        %v4497 = vadd.f32 %v4191, %v4496
        %v4498 = vpop.f32.mrb[0].mxu0
        %v4499 = vadd.f32 %v4196, %v4498
        %v4500 = vpop.f32.mrb[0].mxu0
        %v4501 = vadd.f32 %v4196, %v4500
        %4502 = vmatprep.mubr.bf16.mxu0 %v4335
        %4503 = vmatmul.mubr.bf16.gmra.mrb[0].mxu0 %v4334
        %v4504 = vpop.f32.mrb[0].mxu0
        %v4505 = vadd.f32 %v4201, %v4504
        %v4506 = vpop.f32.mrb[0].mxu0
        %v4507 = vadd.f32 %v4201, %v4506
        %v4508 = vpop.f32.mrb[0].mxu0
        %v4509 = vadd.f32 %v4206, %v4508
        %v4510 = vpop.f32.mrb[0].mxu0
        %v4511 = vadd.f32 %v4206, %v4510
        %4512 = vmatprep.mubr.bf16.mxu0 %v4337
        %4513 = vmatmul.mubr.bf16.gmra.mrb[0].mxu0 %v4336
        %v4514 = vpop.f32.mrb[0].mxu0
        %v4515 = vadd.f32 %v4211, %v4514
        %v4516 = vpop.f32.mrb[0].mxu0
        %v4517 = vadd.f32 %v4211, %v4516
        %v4518 = vpop.f32.mrb[0].mxu0
        %v4519 = vadd.f32 %v4216, %v4518
        %v4520 = vpop.f32.mrb[0].mxu0
        %v4521 = vadd.f32 %v4216, %v4520
        %4522 = vmatprep.mubr.bf16.mxu0 %v4339
        %4523 = vmatmul.mubr.bf16.gmra.mrb[0].mxu0 %v4338
        %v4524 = vpop.f32.mrb[0].mxu0
        %v4525 = vadd.f32 %v4221, %v4524
        %v4526 = vpop.f32.mrb[0].mxu0
        %v4527 = vadd.f32 %v4221, %v4526
        %v4528 = vpop.f32.mrb[0].mxu0
        %v4529 = vadd.f32 %v4226, %v4528
        %v4530 = vpop.f32.mrb[0].mxu0
        %v4531 = vadd.f32 %v4226, %v4530
        %4532 = vmatprep.mubr.bf16.mxu0 %v4341
        %4533 = vmatmul.mubr.bf16.gmra.mrb[0].mxu0 %v4340
        %v4534 = vpop.f32.mrb[0].mxu0
        %v4535 = vadd.f32 %v4231, %v4534
        %v4536 = vpop.f32.mrb[0].mxu0
        %v4537 = vadd.f32 %v4231, %v4536
        %v4538 = vpop.f32.mrb[0].mxu0
        %v4539 = vpop.f32.mrb[0].mxu0
        %4540 = vdwg.mxu0
        %v4541 = vld [vmem:[%s523] sm:$0xff]
        %v4542 = vld [vmem:[%s523 + $0x8] sm:$0xff]
        %v4543 = vld [vmem:[%s523 + $0x10] sm:$0xff]
        %v4544 = vld [vmem:[%s523 + $0x18] sm:$0xff]
        %v4545 = vld [vmem:[%s523 + $0x20] sm:$0xff]
        %v4546 = vld [vmem:[%s523 + $0x28] sm:$0xff]
        %v4547 = vld [vmem:[%s523 + $0x30] sm:$0xff]
        %v4548 = vld [vmem:[%s523 + $0x38] sm:$0xff]
        %v4549 = vld [vmem:[%s523 + $0x40] sm:$0xff]
        %v4550 = vld [vmem:[%s523 + $0x48] sm:$0xff]
        %v4551 = vld [vmem:[%s523 + $0x50] sm:$0xff]
        %v4552 = vld [vmem:[%s523 + $0x58] sm:$0xff]
        %v4553 = vld [vmem:[%s523 + $0x60] sm:$0xff]
        %v4554 = vld [vmem:[%s523 + $0x68] sm:$0xff]
        %v4555 = vld [vmem:[%s523 + $0x70] sm:$0xff]
        %v4556 = vld [vmem:[%s523 + $0x78] sm:$0xff]
        %v4557 = vld [vmem:[%s523 + $0x80] sm:$0xff]
        %v4558 = vld [vmem:[%s523 + $0x88] sm:$0xff]
        %v4559 = vld [vmem:[%s523 + $0x90] sm:$0xff]
        %v4560 = vld [vmem:[%s523 + $0x98] sm:$0xff]
        %v4561 = vld [vmem:[%s523 + $0xa0] sm:$0xff]
        %v4562 = vld [vmem:[%s523 + $0xa8] sm:$0xff]
        %v4563 = vld [vmem:[%s523 + $0xb0] sm:$0xff]
        %v4564 = vld [vmem:[%s523 + $0xb8] sm:$0xff]
        %v4565 = vld [vmem:[%s523 + $0xc0] sm:$0xff]
        %v4566 = vld [vmem:[%s523 + $0xc8] sm:$0xff]
        %v4567 = vld [vmem:[%s523 + $0xd0] sm:$0xff]
        %v4568 = vunpack.c.l.bf16 %v4541
        %v4569 = vunpack.c.h.bf16 %v4541
        %v4570 = vunpack.c.l.bf16 %v4542
        %v4571 = vunpack.c.h.bf16 %v4542
        %v4572 = vunpack.c.l.bf16 %v4543
        %v4573 = vunpack.c.h.bf16 %v4543
        %v4574 = vunpack.c.l.bf16 %v4544
        %v4575 = vunpack.c.h.bf16 %v4544
        %v4576 = vunpack.c.l.bf16 %v4545
        %v4577 = vunpack.c.h.bf16 %v4545
        %v4578 = vunpack.c.l.bf16 %v4546
        %v4579 = vunpack.c.h.bf16 %v4546
        %v4580 = vunpack.c.l.bf16 %v4547
        %v4581 = vunpack.c.h.bf16 %v4547
        %v4582 = vunpack.c.l.bf16 %v4548
        %v4583 = vunpack.c.h.bf16 %v4548
        %v4584 = vunpack.c.l.bf16 %v4549
        %v4585 = vunpack.c.h.bf16 %v4549
        %v4586 = vunpack.c.l.bf16 %v4550
        %v4587 = vunpack.c.h.bf16 %v4550
        %v4588 = vunpack.c.l.bf16 %v4551
        %v4589 = vunpack.c.h.bf16 %v4551
        %v4590 = vunpack.c.l.bf16 %v4552
        %v4591 = vunpack.c.h.bf16 %v4552
        %v4592 = vunpack.c.l.bf16 %v4553
        %v4593 = vunpack.c.h.bf16 %v4553
        %v4594 = vunpack.c.l.bf16 %v4554
        %v4595 = vunpack.c.h.bf16 %v4554
        %v4596 = vunpack.c.l.bf16 %v4555
        %v4597 = vunpack.c.h.bf16 %v4555
        %v4598 = vunpack.c.l.bf16 %v4556
        %v4599 = vunpack.c.h.bf16 %v4556
        %v4600 = vunpack.c.l.bf16 %v4557
        %v4601 = vunpack.c.h.bf16 %v4557
        %v4602 = vunpack.c.l.bf16 %v4558
        %v4603 = vunpack.c.h.bf16 %v4558
        %v4604 = vunpack.c.l.bf16 %v4559
        %v4605 = vunpack.c.h.bf16 %v4559
        %v4606 = vunpack.c.l.bf16 %v4560
        %v4607 = vunpack.c.h.bf16 %v4560
        %v4608 = vunpack.c.l.bf16 %v4561
        %v4609 = vunpack.c.h.bf16 %v4561
        %v4610 = vunpack.c.l.bf16 %v4562
        %v4611 = vunpack.c.h.bf16 %v4562
        %v4612 = vunpack.c.l.bf16 %v4563
        %v4613 = vunpack.c.h.bf16 %v4563
        %v4614 = vunpack.c.l.bf16 %v4564
        %v4615 = vunpack.c.h.bf16 %v4564
        %v4616 = vunpack.c.l.bf16 %v4565
        %v4617 = vunpack.c.h.bf16 %v4565
        %v4618 = vunpack.c.l.bf16 %v4566
        %v4619 = vunpack.c.h.bf16 %v4566
        %v4620 = vunpack.c.l.bf16 %v4567
        %v4621 = vunpack.c.h.bf16 %v4567
        %v4622 = vmul.f32 %v4405, %v4568
        %v4623 = vmul.f32 %v4407, %v4569
        %v4624 = vmul.f32 %v4409, %v4570
        %v4625 = vmul.f32 %v4411, %v4571
        %v4626 = vmul.f32 %v4415, %v4572
        %v4627 = vmul.f32 %v4417, %v4573
        %v4628 = vmul.f32 %v4419, %v4574
        %v4629 = vmul.f32 %v4421, %v4575
        %v4630 = vmul.f32 %v4425, %v4576
        %v4631 = vmul.f32 %v4427, %v4577
        %v4632 = vmul.f32 %v4429, %v4578
        %v4633 = vmul.f32 %v4431, %v4579
        %v4634 = vmul.f32 %v4435, %v4580
        %v4635 = vmul.f32 %v4437, %v4581
        %v4636 = vmul.f32 %v4439, %v4582
        %v4637 = vmul.f32 %v4441, %v4583
        %v4638 = vmul.f32 %v4445, %v4584
        %v4639 = vmul.f32 %v4447, %v4585
        %v4640 = vmul.f32 %v4449, %v4586
        %v4641 = vmul.f32 %v4451, %v4587
        %v4642 = vmul.f32 %v4455, %v4588
        %v4643 = vmul.f32 %v4457, %v4589
        %v4644 = vmul.f32 %v4459, %v4590
        %v4645 = vmul.f32 %v4461, %v4591
        %v4646 = vmul.f32 %v4465, %v4592
        %v4647 = vmul.f32 %v4467, %v4593
        %v4648 = vmul.f32 %v4469, %v4594
        %v4649 = vmul.f32 %v4471, %v4595
        %v4650 = vmul.f32 %v4475, %v4596
        %v4651 = vmul.f32 %v4477, %v4597
        %v4652 = vmul.f32 %v4479, %v4598
        %v4653 = vmul.f32 %v4481, %v4599
        %v4654 = vmul.f32 %v4485, %v4600
        %v4655 = vmul.f32 %v4487, %v4601
        %v4656 = vmul.f32 %v4489, %v4602
        %v4657 = vmul.f32 %v4491, %v4603
        %v4658 = vmul.f32 %v4495, %v4604
        %v4659 = vmul.f32 %v4497, %v4605
        %v4660 = vmul.f32 %v4499, %v4606
        %v4661 = vmul.f32 %v4501, %v4607
        %v4662 = vmul.f32 %v4505, %v4608
        %v4663 = vmul.f32 %v4507, %v4609
        %v4664 = vmul.f32 %v4509, %v4610
        %v4665 = vmul.f32 %v4511, %v4611
        %v4666 = vmul.f32 %v4515, %v4612
        %v4667 = vmul.f32 %v4517, %v4613
        %v4668 = vmul.f32 %v4519, %v4614
        %v4669 = vmul.f32 %v4521, %v4615
        %v4670 = vmul.f32 %v4525, %v4616
        %v4671 = vmul.f32 %v4527, %v4617
        %v4672 = vmul.f32 %v4529, %v4618
        %v4673 = vmul.f32 %v4531, %v4619
        %v4674 = vmul.f32 %v4535, %v4620
        %v4675 = vmul.f32 %v4537, %v4621
        %v4676 = vadd.f32 %v4622, %v4624
        %v4677 = vadd.f32 %v4676, %v4626
        %v4678 = vadd.f32 %v4677, %v4628
        %v4679 = vadd.f32 %v4678, %v4630
        %v4680 = vadd.f32 %v4679, %v4632
        %v4681 = vadd.f32 %v4680, %v4634
        %v4682 = vadd.f32 %v4681, %v4636
        %v4683 = vadd.f32 %v4682, %v4638
        %v4684 = vadd.f32 %v4683, %v4640
        %v4685 = vadd.f32 %v4684, %v4642
        %v4686 = vadd.f32 %v4685, %v4644
        %v4687 = vadd.f32 %v4686, %v4646
        %v4688 = vadd.f32 %v4687, %v4648
        %v4689 = vadd.f32 %v4688, %v4650
        %v4690 = vadd.f32 %v4689, %v4652
        %v4691 = vadd.f32 %v4690, %v4654
        %v4692 = vadd.f32 %v4691, %v4656
        %v4693 = vadd.f32 %v4692, %v4658
        %v4694 = vadd.f32 %v4693, %v4660
        %v4695 = vadd.f32 %v4694, %v4662
        %v4696 = vadd.f32 %v4695, %v4664
        %v4697 = vadd.f32 %v4696, %v4666
        %v4698 = vadd.f32 %v4697, %v4668
        %v4699 = vadd.f32 %v4698, %v4670
        %v4700 = vadd.f32 %v4699, %v4672
        %v4701 = vadd.f32 %v4700, %v4674
        %v4702 = vrot.slane %v4701, 4
        %v4703 = vadd.f32 %v4701, %v4702
        %v4704 = vrot.slane %v4703, 2
        %v4705 = vadd.f32 %v4703, %v4704
        %v4706 = vrot.slane %v4705, 1
        %v4707 = vadd.f32 %v4705, %v4706
        %v4708 = vadd.f32 %v4623, %v4625
        %v4709 = vadd.f32 %v4708, %v4627
        %v4710 = vadd.f32 %v4709, %v4629
        %v4711 = vadd.f32 %v4710, %v4631
        %v4712 = vadd.f32 %v4711, %v4633
        %v4713 = vadd.f32 %v4712, %v4635
        %v4714 = vadd.f32 %v4713, %v4637
        %v4715 = vadd.f32 %v4714, %v4639
        %v4716 = vadd.f32 %v4715, %v4641
        %v4717 = vadd.f32 %v4716, %v4643
        %v4718 = vadd.f32 %v4717, %v4645
        %v4719 = vadd.f32 %v4718, %v4647
        %v4720 = vadd.f32 %v4719, %v4649
        %v4721 = vadd.f32 %v4720, %v4651
        %v4722 = vadd.f32 %v4721, %v4653
        %v4723 = vadd.f32 %v4722, %v4655
        %v4724 = vadd.f32 %v4723, %v4657
        %v4725 = vadd.f32 %v4724, %v4659
        %v4726 = vadd.f32 %v4725, %v4661
        %v4727 = vadd.f32 %v4726, %v4663
        %v4728 = vadd.f32 %v4727, %v4665
        %v4729 = vadd.f32 %v4728, %v4667
        %v4730 = vadd.f32 %v4729, %v4669
        %v4731 = vadd.f32 %v4730, %v4671
        %v4732 = vadd.f32 %v4731, %v4673
        %v4733 = vadd.f32 %v4732, %v4675
        %v4734 = vrot.slane %v4733, 4
        %v4735 = vadd.f32 %v4733, %v4734
        %v4736 = vrot.slane %v4735, 2
        %v4737 = vadd.f32 %v4735, %v4736
        %v4738 = vrot.slane %v4737, 1
        %v4739 = vadd.f32 %v4737, %v4738
        %v4742 = vcombine.low %v4707, %v4739
        %v4744 = vunpack.c.l.s4 1966171168
        %v4745 = vunpack.c.0.s8 %v4744
        %v4746 = vlaneseq
        %v4747 = vshrl.u32 %v4746, 7
        %v4748 = vsub.s32 %v4745, %v4747
        %v4749 = vrot.slane %v4742, %v4748
        %v4751 = vunpack.c.l.s4 1966171168
        %v4752 = vunpack.c.0.s8 %v4751
        %v4753 = vlaneseq
        %v4754 = vshrl.u32 %v4753, 7
        %v4755 = vsub.s32 %v4752, %v4754
        %v4756 = vrot.slane %v4749, %v4755
        %v4758 = vlaneseq
        %vm4759 = vcmp.ge.s32.totalorder %v4758, 0
        %vm4760 = vcmp.lt.s32.totalorder %v4758, 256
        %vm4761 = vmand %vm4759, %vm4760
        %4762 = vst.msk [vmem:[%s566] sm:$0x3] %vm4761, %v4756
        %s4763 = sand.u32 %s296, 1
        %s4764 = scalar_lea.sflag [#allocation4], %s4763
        %s4765 = sand.u32 %s296, 1
        %s4766 = smul.addr %s4765, 2
        %s4767 = scalar_lea.vmem [#allocation3], %s4766
        // Predicated region
        $region107: #{metasr_forward.3} parent=101 // pred_check
          %p4768 = pneg %p306
        $region108: #{metasr_forward.3} parent=101 // pred_check_branch
          %4770 = sbr.rel (%p4768) target = $region110
        $region109: #{metasr_forward.3} parent=101 // pred_region
          %s4771 = smul.u32 2, %s26
          %s4773 = ssub.s32 32, 32
          %4774 = vsyncadd %s4764, %s4773
          %s4775 = smul.addr %s4771, 16
          %s4776 = scalar_lea.hbm %s12, %s4775
          %s4778 = sshll.u32 %s4767, 4
          %s4779 = int_to_ptr.vmem [resolvable:$true] %s4778
          %4781 = dma.vmem_to_hbm [thread:$0]  %s4779, 32, %s4776, %s4764
        $region110: #{metasr_forward.3} parent=101 // pred_fallthru
          _
      $region102: #{metasr_forward.3} parent=5 // pred_fallthru
        _
      %p4782 = scmp.le.s32.totalorder 2, %s21
      // Predicated region
      $region111: #{metasr_forward.3} parent=5 // pred_check
        %p4783 = pneg %p4782
      $region112: #{metasr_forward.3} parent=5 // pred_check_branch
        %4785 = sbr.rel (%p4783) target = $region114
      $region113: #{metasr_forward.3} parent=5 // pred_region
        %s4786 = ssub.s32 %s21, 2
        // Predicated region
        $region115: #{metasr_forward.3} parent=113 // pred_check
          %p4787 = pneg %p312
        $region116: #{metasr_forward.3} parent=113 // pred_check_branch
          %4789 = sbr.rel (%p4787) target = $region118
        $region117: #{metasr_forward.3} parent=113 // pred_region
          %s4790 = sand.u32 %s297, 1
          %s4791 = scalar_lea.sflag [#allocation4], %s4790
          %s4792 = sand.u32 %s297, 1
          %s4793 = smul.addr %s4792, 2
          %s4794 = scalar_lea.vmem [#allocation3], %s4793
          %4795 = dma.done %s4791, 32
        $region118: #{metasr_forward.3} parent=113 // pred_fallthru
          _
      $region114: #{metasr_forward.3} parent=5 // pred_fallthru
        _
    $region6: #{metasr_forward.3} parent=1 // loop_footer
      %s25 = sadd.s32 1, %s21
    $region7: #{metasr_forward.3} parent=1 // loop_footer_branch
      %20 = sbr.rel target = $region3
    $region8: #{metasr_forward.3} parent=1 // loop_exit
      _
    %4796 = vsyncpa [#allocation4], 1
    %s4797 = scalar_lea.sflag [#allocation4], 1
    %4798 = vsyncpa %s4797, 1

</llo_original>
